<compile_context>
chip_gen: v5e
topology: v5e:2x2
jax: 0.10.0
libtpu: 0.0.40
codegen_flags: <defaults>
</compile_context>

<pallas_src>
import numpy as np

import jax
import jax.numpy as jnp
from jax.experimental import pallas as pl
from jax.experimental.pallas import tpu as pltpu


# ----------------------------------------------------------------------------
# Static layer configuration for input_shape=(3, 32, 32)
#   (H,  W,  C, K, stride, OH, OW, OC)
# ----------------------------------------------------------------------------
_LAYERS = (
    (32, 32, 3, 5, 2, 14, 14, 8),
    (14, 14, 8, 5, 2, 5, 5, 16),
    (5, 5, 16, 3, 2, 2, 2, 32),
)


# ----------------------------------------------------------------------------
# Pallas kernels
# ----------------------------------------------------------------------------
def _fused_branch_kernel(img_ref, rs1_ref, rs2_ref, rs3_ref,
                         cs1_ref, cs2_ref, cs3_ref,
                         ws1_ref, ws2_ref, ws3_ref,
                         cb1_ref, cb2_ref, cb3_ref,
                         fw1_ref, fb1_ref, fw2_ref, fb2_ref, fw3_ref, fb3_ref,
                         out_ref):
    """Whole CNN branch + MLP head for grid step i in {left, right}."""
    f32 = jnp.float32

    def conv_relu(x, rs_ref, cs_ref, ws_ref, cb_ref):
        # x : (B*H, W*C)               activation in dense 2-D layout
        # rs: (KH*B*OH, B*H)           row / tap-row 0/1 selector
        # cs: (W*C, OW*KW*C)           col / tap-col / channel 0/1 selector
        # ws: (1, KH, OW*KW*C, OW*OC)  per-tap block-diag folded conv weights
        # cb: (1, 1, OW*OC)            bias tiled across OW
        rs = rs_ref[...]
        u = jnp.dot(rs, x, preferred_element_type=f32)             # gather rows
        v = jnp.dot(u, cs_ref[...], preferred_element_type=f32)    # gather cols
        kh = ws_ref.shape[1]
        rows = rs.shape[0] // kh                                   # = B*OH
        y = jnp.dot(v[0:rows, :], ws_ref[0, 0], preferred_element_type=f32)
        for ki in range(1, kh):                                    # tap accumulation
            y = y + jnp.dot(v[ki * rows:(ki + 1) * rows, :], ws_ref[0, ki],
                            preferred_element_type=f32)
        return jnp.maximum(y + cb_ref[0], 0.0)                     # bias + ReLU

    x = img_ref[0]                                        # (B*32, 32*3)
    x = conv_relu(x, rs1_ref, cs1_ref, ws1_ref, cb1_ref)  # (B*14, 14*8)
    x = conv_relu(x, rs2_ref, cs2_ref, ws2_ref, cb2_ref)  # (B*5,  5*16)
    x = conv_relu(x, rs3_ref, cs3_ref, ws3_ref, cb3_ref)  # (OH3*B, OW3*OC3), rows=[h,b]

    # MLP head, batched over B.  fw1 is pre-split over the conv-output rows so
    # the NCHW flatten is a plain row-block contraction (no reshape needed).
    bsz = out_ref.shape[1]
    n_h = fw1_ref.shape[1]
    z = jnp.dot(x[0:bsz, :], fw1_ref[0, 0], preferred_element_type=f32)
    for h in range(1, n_h):
        z = z + jnp.dot(x[h * bsz:(h + 1) * bsz, :], fw1_ref[0, h],
                        preferred_element_type=f32)
    z = jnp.maximum(z + fb1_ref[0], 0.0)
    z = jnp.maximum(jnp.dot(z, fw2_ref[0], preferred_element_type=f32) + fb2_ref[0], 0.0)
    out_ref[0] = jnp.dot(z, fw3_ref[0], preferred_element_type=f32) + fb3_ref[0]


def _stereo_sub_kernel(y_ref, o_ref):
    """Epilogue: output = left_head - right_head."""
    o_ref[...] = y_ref[0] - y_ref[1]


# ----------------------------------------------------------------------------
# BlockSpec helpers
# ----------------------------------------------------------------------------
def _branch_spec(shape):
    """Input stacked on a leading branch axis of size 2: one branch per step."""
    block = (1,) + tuple(int(d) for d in shape[1:])
    zeros = (0,) * (len(shape) - 1)
    return pl.BlockSpec(block, lambda i, _z=zeros: (i,) + _z)


def _shared_spec(shape):
    """Input shared by both branches: full array every step."""
    block = tuple(int(d) for d in shape)
    zeros = (0,) * len(shape)
    return pl.BlockSpec(block, lambda i, _z=zeros: _z)


# ----------------------------------------------------------------------------
# Forward pass
# ----------------------------------------------------------------------------
def small_stereo_cnn_forward(left_nchw, right_nchw, prep, dof):
    B, C, H, W = left_nchw.shape

    def to_mat(x):  # NCHW -> dense 2-D layout (B*H, W*C)
        return jnp.transpose(x, (0, 2, 3, 1)).reshape(B * H, W * C)

    imgs = jnp.stack([to_mat(left_nchw), to_mat(right_nchw)], axis=0)  # (2, B*H, W*C)

    names = ["rs1", "rs2", "rs3", "cs1", "cs2", "cs3",
             "ws1", "ws2", "ws3", "cb1", "cb2", "cb3",
             "fw1", "fb1", "fw2", "fb2", "fw3", "fb3"]
    shared = {"rs1", "rs2", "rs3", "cs1", "cs2", "cs3"}
    tensors = [imgs] + [prep[n] for n in names]
    in_specs = [_branch_spec(imgs.shape)] + [
        _shared_spec(prep[n].shape) if n in shared else _branch_spec(prep[n].shape)
        for n in names
    ]

    branch_out = pl.pallas_call(
        _fused_branch_kernel,
        out_shape=jax.ShapeDtypeStruct((2, B, dof), jnp.float32),
        grid_spec=pltpu.PrefetchScalarGridSpec(
            num_scalar_prefetch=0,
            grid=(2,),
            in_specs=in_specs,
            out_specs=pl.BlockSpec((1, B, dof), lambda i: (i, 0, 0)),
        ),
        compiler_params=pltpu.CompilerParams(dimension_semantics=("parallel",)),
        cost_estimate=pl.CostEstimate(flops=37_000_000, transcendentals=0,
                                      bytes_accessed=2_400_000),
    )(*tensors)

    return pl.pallas_call(
        _stereo_sub_kernel,
        out_shape=jax.ShapeDtypeStruct((B, dof), jnp.float32),
        in_specs=[pl.BlockSpec(memory_space=pltpu.MemorySpace.VMEM)],
        out_specs=pl.BlockSpec(memory_space=pltpu.MemorySpace.VMEM),
    )(branch_out)


# ----------------------------------------------------------------------------
# One-time (offline) parameter folding into the GEMM-friendly kernel form
# ----------------------------------------------------------------------------
def _row_selector(B, H, OH, K, stride, batch_minor):
    """0/1 matrix gathering input row (b, oh*stride+ki) for every (ki, b, oh).
    Rows ordered [ki, b, oh]; [ki, oh, b] when batch_minor (last conv layer,
    so the flatten feeding the MLP is a plain row-block split)."""
    m = np.zeros((K * B * OH, B * H), np.float32)
    for ki in range(K):
        for b in range(B):
            for oh in range(OH):
                r = (ki * OH + oh) * B + b if batch_minor else (ki * B + b) * OH + oh
                m[r, b * H + oh * stride + ki] = 1.0
    return m


def _col_selector(W, C, OW, K, stride):
    """0/1 matrix gathering column (ow*stride+kj, c) into column (ow, kj, c)."""
    m = np.zeros((W * C, OW * K * C), np.float32)
    for ow in range(OW):
        for kj in range(K):
            for c in range(C):
                m[(ow * stride + kj) * C + c, (ow * K + kj) * C + c] = 1.0
    return m


def prepare_kernel_params(raw, B):
    prep = {}
    # Selection matrices (shared by both branches).
    for li, (H, W, C, K, s, OH, OW, OC) in enumerate(_LAYERS, start=1):
        prep[f"rs{li}"] = jnp.asarray(_row_selector(B, H, OH, K, s, batch_minor=(li == 3)))
        prep[f"cs{li}"] = jnp.asarray(_col_selector(W, C, OW, K, s))

    def fold_branch(cp, fp):
        ws, cb = [], []
        for li, (H, W, C, K, s, OH, OW, OC) in enumerate(_LAYERS, start=1):
            w = cp[f"w{li}"]                                        # (K, K, C, OC)
            eye = jnp.eye(OW, dtype=jnp.float32)
            ws.append(jnp.stack(
                [jnp.kron(eye, w[ki].reshape(K * C, OC)) for ki in range(K)], axis=0))
            cb.append(jnp.tile(cp[f"b{li}"], OW)[None, :])          # (1, OW*OC)
        # Fold PyTorch's NCHW flatten (c,h,w order) into fc1: the conv stack
        # emits features in (h, w, c) order with h as the row-block index.
        _, _, _, _, _, OH3, OW3, OC3 = _LAYERS[-1]
        perm = np.zeros(OH3 * OW3 * OC3, np.int32)
        for h in range(OH3):
            for w_ in range(OW3):
                for c in range(OC3):
                    perm[(h * OW3 + w_) * OC3 + c] = (c * OH3 + h) * OW3 + w_
        fw1 = fp["w1"][jnp.asarray(perm), :].reshape(OH3, OW3 * OC3, -1)
        return ws, cb, fw1

    lws, lcb, lfw1 = fold_branch(raw["left_cnn"], raw["left_fc"])
    rws, rcb, rfw1 = fold_branch(raw["right_cnn"], raw["right_fc"])
    for li in range(1, 4):
        prep[f"ws{li}"] = jnp.stack([lws[li - 1], rws[li - 1]], axis=0)
        prep[f"cb{li}"] = jnp.stack([lcb[li - 1], rcb[li - 1]], axis=0)
    prep["fw1"] = jnp.stack([lfw1, rfw1], axis=0)
    for name in ("b1", "w2", "b2", "w3", "b3"):
        lv, rv = raw["left_fc"][name], raw["right_fc"][name]
        if lv.ndim == 1:
            lv, rv = lv[None, :], rv[None, :]
        prep["f" + name] = jnp.stack([lv, rv], axis=0)
    return prep


# ----------------------------------------------------------------------------
# Deterministic parameter construction (PyTorch-equivalent layout/semantics)
# ----------------------------------------------------------------------------
def init_raw_params(key, dof):
    ks = iter(jax.random.split(key, 32))

    def conv_params():
        return {
            "w1": 0.1 * jax.random.normal(next(ks), (5, 5, 3, 8), jnp.float32),
            "b1": 0.1 * jax.random.normal(next(ks), (8,), jnp.float32),
            "w2": 0.1 * jax.random.normal(next(ks), (5, 5, 8, 16), jnp.float32),
            "b2": 0.1 * jax.random.normal(next(ks), (16,), jnp.float32),
            "w3": 0.1 * jax.random.normal(next(ks), (3, 3, 16, 32), jnp.float32),
            "b3": 0.1 * jax.random.normal(next(ks), (32,), jnp.float32),
        }

    def fc_params(n_feat):
        return {
            "w1": 0.1 * jax.random.normal(next(ks), (n_feat, 16), jnp.float32),
            "b1": 0.1 * jax.random.normal(next(ks), (16,), jnp.float32),
            "w2": 0.1 * jax.random.normal(next(ks), (16, 8), jnp.float32),
            "b2": 0.1 * jax.random.normal(next(ks), (8,), jnp.float32),
            "w3": 0.1 * jax.random.normal(next(ks), (8, dof), jnp.float32),
            "b3": 0.1 * jax.random.normal(next(ks), (dof,), jnp.float32),
        }

    n_feat = 32 * 2 * 2  # conv arithmetic: 32 -> 14 -> 5 -> 2  =>  32*2*2
    return {"left_cnn": conv_params(), "left_fc": fc_params(n_feat),
            "right_cnn": conv_params(), "right_fc": fc_params(n_feat)}


# ----------------------------------------------------------------------------
# Pure-JAX reference (mirrors the PyTorch module exactly) for validation
# ----------------------------------------------------------------------------
def reference_forward(left_nchw, right_nchw, raw, dof):
    hp = jax.lax.Precision.HIGHEST

    def branch(x, cp, fp):
        for i in (1, 2, 3):
            x = jax.lax.conv_general_dilated(
                x, cp[f"w{i}"], window_strides=(2, 2), padding="VALID",
                dimension_numbers=("NCHW", "HWIO", "NCHW"), precision=hp)
            x = jnp.maximum(x + cp[f"b{i}"][None, :, None, None], 0.0)
        feat = x.reshape(x.shape[0], -1)                     # NCHW flatten (torch order)
        h = jnp.maximum(jnp.dot(feat, fp["w1"], precision=hp) + fp["b1"], 0.0)
        h = jnp.maximum(jnp.dot(h, fp["w2"], precision=hp) + fp["b2"], 0.0)
        return jnp.dot(h, fp["w3"], precision=hp) + fp["b3"]

    return (branch(left_nchw, raw["left_cnn"], raw["left_fc"])
            - branch(right_nchw, raw["right_cnn"], raw["right_fc"]))


if __name__ == "__main__":
    # Module config: input_shape=(3, 32, 32), dof=6, batch_size=2
    batch, dof = 2, 6
    key = jax.random.PRNGKey(0)
    k_left, k_right, k_params = jax.random.split(key, 3)

    left_in = jax.random.normal(k_left, (batch, 3, 32, 32), jnp.float32)
    right_in = jax.random.normal(k_right, (batch, 3, 32, 32), jnp.float32)

    raw = init_raw_params(k_params, dof)
    prep = prepare_kernel_params(raw, batch)   # one-time offline weight folding

    fwd = jax.jit(lambda l, r, p: small_stereo_cnn_forward(l, r, p, dof))
    out = fwd(left_in, right_in, prep)
    jax.block_until_ready(out)
    assert out.shape == (batch, dof), out.shape

    ref = reference_forward(left_in, right_in, raw, dof)
    assert bool(jnp.allclose(out, ref, atol=5e-3, rtol=5e-2)), (
        "numerical mismatch vs reference:\n%s\nvs\n%s" % (out, ref))
    print("KERNEL_OK")
</pallas_src>

<mosaic_0001>
module attributes {stable_mosaic.version = 11 : i64} {
  func.func @_stereo_sub_kernel(%arg0: memref<2x2x6xf32, #tpu.memory_space<vmem>>, %arg1: memref<2x6xf32, #tpu.memory_space<vmem>>) attributes {dimension_semantics = [], scalar_prefetch = 0 : i64, scratch_operands = 0 : i64, tpu.core_type = #tpu.core_type<tc>} {
    %c0 = arith.constant 0 : index
    %c0_0 = arith.constant 0 : index
    %c0_1 = arith.constant 0 : index
    %0 = vector.load %arg0[%c0, %c0_0, %c0_1] : memref<2x2x6xf32, #tpu.memory_space<vmem>>, vector<1x2x6xf32>
    %1 = vector.shape_cast %0 : vector<1x2x6xf32> to vector<2x6xf32>
    %c1 = arith.constant 1 : index
    %c0_2 = arith.constant 0 : index
    %c0_3 = arith.constant 0 : index
    %2 = vector.load %arg0[%c1, %c0_2, %c0_3] : memref<2x2x6xf32, #tpu.memory_space<vmem>>, vector<1x2x6xf32>
    %3 = vector.shape_cast %2 : vector<1x2x6xf32> to vector<2x6xf32>
    %4 = arith.subf %1, %3 : vector<2x6xf32>
    %c0_4 = arith.constant 0 : index
    %c0_5 = arith.constant 0 : index
    %5 = vector.load %arg1[%c0_4, %c0_5] : memref<2x6xf32, #tpu.memory_space<vmem>>, vector<2x6xf32>
    tpu.vector_store %arg1[%c0_4, %c0_5], %4 {strides = array<i32>} : memref<2x6xf32, #tpu.memory_space<vmem>>, vector<2x6xf32>,
    return
  }
}

module attributes {stable_mosaic.version = 11 : i64} {
  func.func @_fused_branch_kernel(%arg0: i32, %arg1: memref<1x64x96xf32, #tpu.memory_space<vmem>>, %arg2: memref<140x64xf32, #tpu.memory_space<vmem>>, %arg3: memref<50x28xf32, #tpu.memory_space<vmem>>, %arg4: memref<12x10xf32, #tpu.memory_space<vmem>>, %arg5: memref<96x210xf32, #tpu.memory_space<vmem>>, %arg6: memref<112x200xf32, #tpu.memory_space<vmem>>, %arg7: memref<80x96xf32, #tpu.memory_space<vmem>>, %arg8: memref<1x5x210x112xf32, #tpu.memory_space<vmem>>, %arg9: memref<1x5x200x80xf32, #tpu.memory_space<vmem>>, %arg10: memref<1x3x96x64xf32, #tpu.memory_space<vmem>>, %arg11: memref<1x1x112xf32, #tpu.memory_space<vmem>>, %arg12: memref<1x1x80xf32, #tpu.memory_space<vmem>>, %arg13: memref<1x1x64xf32, #tpu.memory_space<vmem>>, %arg14: memref<1x2x64x16xf32, #tpu.memory_space<vmem>>, %arg15: memref<1x1x16xf32, #tpu.memory_space<vmem>>, %arg16: memref<1x16x8xf32, #tpu.memory_space<vmem>>, %arg17: memref<1x1x8xf32, #tpu.memory_space<vmem>>, %arg18: memref<1x8x6xf32, #tpu.memory_space<vmem>>, %arg19: memref<1x1x6xf32, #tpu.memory_space<vmem>>, %arg20: memref<1x2x6xf32, #tpu.memory_space<vmem>>) attributes {dimension_semantics = [#tpu.dimension_semantics<parallel>], iteration_bounds = array<i64: 2>, scalar_prefetch = 0 : i64, scratch_operands = 0 : i64, tpu.core_type = #tpu.core_type<tc>, window_params = [{transform_indices = @transform_0, window_bounds = array<i64: 1, 64, 96>}, {pipeline_mode = #tpu.pipeline_mode<synchronous>, transform_indices = @transform_1, window_bounds = array<i64: 140, 64>}, {pipeline_mode = #tpu.pipeline_mode<synchronous>, transform_indices = @transform_2, window_bounds = array<i64: 50, 28>}, {pipeline_mode = #tpu.pipeline_mode<synchronous>, transform_indices = @transform_3, window_bounds = array<i64: 12, 10>}, {pipeline_mode = #tpu.pipeline_mode<synchronous>, transform_indices = @transform_4, window_bounds = array<i64: 96, 210>}, {pipeline_mode = #tpu.pipeline_mode<synchronous>, transform_indices = @transform_5, window_bounds = array<i64: 112, 200>}, {pipeline_mode = #tpu.pipeline_mode<synchronous>, transform_indices = @transform_6, window_bounds = array<i64: 80, 96>}, {transform_indices = @transform_7, window_bounds = array<i64: 1, 5, 210, 112>}, {transform_indices = @transform_8, window_bounds = array<i64: 1, 5, 200, 80>}, {transform_indices = @transform_9, window_bounds = array<i64: 1, 3, 96, 64>}, {transform_indices = @transform_10, window_bounds = array<i64: 1, 1, 112>}, {transform_indices = @transform_11, window_bounds = array<i64: 1, 1, 80>}, {transform_indices = @transform_12, window_bounds = array<i64: 1, 1, 64>}, {transform_indices = @transform_13, window_bounds = array<i64: 1, 2, 64, 16>}, {transform_indices = @transform_14, window_bounds = array<i64: 1, 1, 16>}, {transform_indices = @transform_15, window_bounds = array<i64: 1, 16, 8>}, {transform_indices = @transform_16, window_bounds = array<i64: 1, 1, 8>}, {transform_indices = @transform_17, window_bounds = array<i64: 1, 8, 6>}, {transform_indices = @transform_18, window_bounds = array<i64: 1, 1, 6>}, {transform_indices = @transform_19, window_bounds = array<i64: 1, 2, 6>}]} {
    %c0 = arith.constant 0 : index
    %c0_0 = arith.constant 0 : index
    %c0_1 = arith.constant 0 : index
    %0 = vector.load %arg1[%c0, %c0_0, %c0_1] : memref<1x64x96xf32, #tpu.memory_space<vmem>>, vector<1x64x96xf32>
    %1 = vector.shape_cast %0 : vector<1x64x96xf32> to vector<64x96xf32>
    %c0_2 = arith.constant 0 : index
    %c0_3 = arith.constant 0 : index
    %2 = vector.load %arg2[%c0_2, %c0_3] : memref<140x64xf32, #tpu.memory_space<vmem>>, vector<140x64xf32>
    %cst = arith.constant dense<0.000000e+00> : vector<140x96xf32>
    %3 = tpu.matmul %2, %1, %cst {dimension_numbers = #tpu.dot_dimension_numbers<[1], [0], [0], [1], [0, 0, 1, 1], [], []>} : vector<140x64xf32>, vector<64x96xf32>, vector<140x96xf32> -> vector<140x96xf32>
    %c0_4 = arith.constant 0 : index
    %c0_5 = arith.constant 0 : index
    %4 = vector.load %arg5[%c0_4, %c0_5] : memref<96x210xf32, #tpu.memory_space<vmem>>, vector<96x210xf32>
    %cst_6 = arith.constant dense<0.000000e+00> : vector<140x210xf32>
    %5 = tpu.matmul %3, %4, %cst_6 {dimension_numbers = #tpu.dot_dimension_numbers<[1], [0], [0], [1], [0, 0, 1, 1], [], []>} : vector<140x96xf32>, vector<96x210xf32>, vector<140x210xf32> -> vector<140x210xf32>
    %6 = vector.extract_strided_slice %5 {offsets = [0, 0], sizes = [28, 210], strides = [1, 1]} : vector<140x210xf32> to vector<28x210xf32>
    %c0_7 = arith.constant 0 : index
    %c0_8 = arith.constant 0 : index
    %c0_9 = arith.constant 0 : index
    %c0_10 = arith.constant 0 : index
    %7 = vector.load %arg8[%c0_7, %c0_8, %c0_9, %c0_10] : memref<1x5x210x112xf32, #tpu.memory_space<vmem>>, vector<1x1x210x112xf32>
    %8 = vector.shape_cast %7 : vector<1x1x210x112xf32> to vector<210x112xf32>
    %cst_11 = arith.constant dense<0.000000e+00> : vector<28x112xf32>
    %9 = tpu.matmul %6, %8, %cst_11 {dimension_numbers = #tpu.dot_dimension_numbers<[1], [0], [0], [1], [0, 0, 1, 1], [], []>} : vector<28x210xf32>, vector<210x112xf32>, vector<28x112xf32> -> vector<28x112xf32>
    %10 = vector.extract_strided_slice %5 {offsets = [28, 0], sizes = [28, 210], strides = [1, 1]} : vector<140x210xf32> to vector<28x210xf32>
    %c0_12 = arith.constant 0 : index
    %c1 = arith.constant 1 : index
    %c0_13 = arith.constant 0 : index
    %c0_14 = arith.constant 0 : index
    %11 = vector.load %arg8[%c0_12, %c1, %c0_13, %c0_14] : memref<1x5x210x112xf32, #tpu.memory_space<vmem>>, vector<1x1x210x112xf32>
    %12 = vector.shape_cast %11 : vector<1x1x210x112xf32> to vector<210x112xf32>
    %cst_15 = arith.constant dense<0.000000e+00> : vector<28x112xf32>
    %13 = tpu.matmul %10, %12, %cst_15 {dimension_numbers = #tpu.dot_dimension_numbers<[1], [0], [0], [1], [0, 0, 1, 1], [], []>} : vector<28x210xf32>, vector<210x112xf32>, vector<28x112xf32> -> vector<28x112xf32>
    %14 = arith.addf %9, %13 : vector<28x112xf32>
    %15 = vector.extract_strided_slice %5 {offsets = [56, 0], sizes = [28, 210], strides = [1, 1]} : vector<140x210xf32> to vector<28x210xf32>
    %c0_16 = arith.constant 0 : index
    %c2 = arith.constant 2 : index
    %c0_17 = arith.constant 0 : index
    %c0_18 = arith.constant 0 : index
    %16 = vector.load %arg8[%c0_16, %c2, %c0_17, %c0_18] : memref<1x5x210x112xf32, #tpu.memory_space<vmem>>, vector<1x1x210x112xf32>
    %17 = vector.shape_cast %16 : vector<1x1x210x112xf32> to vector<210x112xf32>
    %cst_19 = arith.constant dense<0.000000e+00> : vector<28x112xf32>
    %18 = tpu.matmul %15, %17, %cst_19 {dimension_numbers = #tpu.dot_dimension_numbers<[1], [0], [0], [1], [0, 0, 1, 1], [], []>} : vector<28x210xf32>, vector<210x112xf32>, vector<28x112xf32> -> vector<28x112xf32>
    %19 = arith.addf %14, %18 : vector<28x112xf32>
    %20 = vector.extract_strided_slice %5 {offsets = [84, 0], sizes = [28, 210], strides = [1, 1]} : vector<140x210xf32> to vector<28x210xf32>
    %c0_20 = arith.constant 0 : index
    %c3 = arith.constant 3 : index
    %c0_21 = arith.constant 0 : index
    %c0_22 = arith.constant 0 : index
    %21 = vector.load %arg8[%c0_20, %c3, %c0_21, %c0_22] : memref<1x5x210x112xf32, #tpu.memory_space<vmem>>, vector<1x1x210x112xf32>
    %22 = vector.shape_cast %21 : vector<1x1x210x112xf32> to vector<210x112xf32>
    %cst_23 = arith.constant dense<0.000000e+00> : vector<28x112xf32>
    %23 = tpu.matmul %20, %22, %cst_23 {dimension_numbers = #tpu.dot_dimension_numbers<[1], [0], [0], [1], [0, 0, 1, 1], [], []>} : vector<28x210xf32>, vector<210x112xf32>, vector<28x112xf32> -> vector<28x112xf32>
    %24 = arith.addf %19, %23 : vector<28x112xf32>
    %25 = vector.extract_strided_slice %5 {offsets = [112, 0], sizes = [28, 210], strides = [1, 1]} : vector<140x210xf32> to vector<28x210xf32>
    %c0_24 = arith.constant 0 : index
    %c4 = arith.constant 4 : index
    %c0_25 = arith.constant 0 : index
    %c0_26 = arith.constant 0 : index
    %26 = vector.load %arg8[%c0_24, %c4, %c0_25, %c0_26] : memref<1x5x210x112xf32, #tpu.memory_space<vmem>>, vector<1x1x210x112xf32>
    %27 = vector.shape_cast %26 : vector<1x1x210x112xf32> to vector<210x112xf32>
    %cst_27 = arith.constant dense<0.000000e+00> : vector<28x112xf32>
    %28 = tpu.matmul %25, %27, %cst_27 {dimension_numbers = #tpu.dot_dimension_numbers<[1], [0], [0], [1], [0, 0, 1, 1], [], []>} : vector<28x210xf32>, vector<210x112xf32>, vector<28x112xf32> -> vector<28x112xf32>
    %29 = arith.addf %24, %28 : vector<28x112xf32>
    %c0_28 = arith.constant 0 : index
    %c0_29 = arith.constant 0 : index
    %c0_30 = arith.constant 0 : index
    %30 = vector.load %arg11[%c0_28, %c0_29, %c0_30] : memref<1x1x112xf32, #tpu.memory_space<vmem>>, vector<1x1x112xf32>
    %31 = vector.shape_cast %30 : vector<1x1x112xf32> to vector<1x112xf32>
    %32 = vector.broadcast %31 : vector<1x112xf32> to vector<28x112xf32>
    %33 = arith.addf %29, %32 : vector<28x112xf32>
    %cst_31 = arith.constant 0.000000e+00 : f32
    %34 = vector.broadcast %cst_31 : f32 to vector<28x112xf32>
    %35 = arith.maximumf %33, %34 : vector<28x112xf32>
    %c0_32 = arith.constant 0 : index
    %c0_33 = arith.constant 0 : index
    %36 = vector.load %arg3[%c0_32, %c0_33] : memref<50x28xf32, #tpu.memory_space<vmem>>, vector<50x28xf32>
    %cst_34 = arith.constant dense<0.000000e+00> : vector<50x112xf32>
    %37 = tpu.matmul %36, %35, %cst_34 {dimension_numbers = #tpu.dot_dimension_numbers<[1], [0], [0], [1], [0, 0, 1, 1], [], []>} : vector<50x28xf32>, vector<28x112xf32>, vector<50x112xf32> -> vector<50x112xf32>
    %c0_35 = arith.constant 0 : index
    %c0_36 = arith.constant 0 : index
    %38 = vector.load %arg6[%c0_35, %c0_36] : memref<112x200xf32, #tpu.memory_space<vmem>>, vector<112x200xf32>
    %cst_37 = arith.constant dense<0.000000e+00> : vector<50x200xf32>
    %39 = tpu.matmul %37, %38, %cst_37 {dimension_numbers = #tpu.dot_dimension_numbers<[1], [0], [0], [1], [0, 0, 1, 1], [], []>} : vector<50x112xf32>, vector<112x200xf32>, vector<50x200xf32> -> vector<50x200xf32>
    %40 = vector.extract_strided_slice %39 {offsets = [0, 0], sizes = [10, 200], strides = [1, 1]} : vector<50x200xf32> to vector<10x200xf32>
    %c0_38 = arith.constant 0 : index
    %c0_39 = arith.constant 0 : index
    %c0_40 = arith.constant 0 : index
    %c0_41 = arith.constant 0 : index
    %41 = vector.load %arg9[%c0_38, %c0_39, %c0_40, %c0_41] : memref<1x5x200x80xf32, #tpu.memory_space<vmem>>, vector<1x1x200x80xf32>
    %42 = vector.shape_cast %41 : vector<1x1x200x80xf32> to vector<200x80xf32>
    %cst_42 = arith.constant dense<0.000000e+00> : vector<10x80xf32>
    %43 = tpu.matmul %40, %42, %cst_42 {dimension_numbers = #tpu.dot_dimension_numbers<[1], [0], [0], [1], [0, 0, 1, 1], [], []>} : vector<10x200xf32>, vector<200x80xf32>, vector<10x80xf32> -> vector<10x80xf32>
    %44 = vector.extract_strided_slice %39 {offsets = [10, 0], sizes = [10, 200], strides = [1, 1]} : vector<50x200xf32> to vector<10x200xf32>
    %c0_43 = arith.constant 0 : index
    %c1_44 = arith.constant 1 : index
    %c0_45 = arith.constant 0 : index
    %c0_46 = arith.constant 0 : index
    %45 = vector.load %arg9[%c0_43, %c1_44, %c0_45, %c0_46] : memref<1x5x200x80xf32, #tpu.memory_space<vmem>>, vector<1x1x200x80xf32>
    %46 = vector.shape_cast %45 : vector<1x1x200x80xf32> to vector<200x80xf32>
    %cst_47 = arith.constant dense<0.000000e+00> : vector<10x80xf32>
    %47 = tpu.matmul %44, %46, %cst_47 {dimension_numbers = #tpu.dot_dimension_numbers<[1], [0], [0], [1], [0, 0, 1, 1], [], []>} : vector<10x200xf32>, vector<200x80xf32>, vector<10x80xf32> -> vector<10x80xf32>
    %48 = arith.addf %43, %47 : vector<10x80xf32>
    %49 = vector.extract_strided_slice %39 {offsets = [20, 0], sizes = [10, 200], strides = [1, 1]} : vector<50x200xf32> to vector<10x200xf32>
    %c0_48 = arith.constant 0 : index
    %c2_49 = arith.constant 2 : index
    %c0_50 = arith.constant 0 : index
    %c0_51 = arith.constant 0 : index
    %50 = vector.load %arg9[%c0_48, %c2_49, %c0_50, %c0_51] : memref<1x5x200x80xf32, #tpu.memory_space<vmem>>, vector<1x1x200x80xf32>
    %51 = vector.shape_cast %50 : vector<1x1x200x80xf32> to vector<200x80xf32>
    %cst_52 = arith.constant dense<0.000000e+00> : vector<10x80xf32>
    %52 = tpu.matmul %49, %51, %cst_52 {dimension_numbers = #tpu.dot_dimension_numbers<[1], [0], [0], [1], [0, 0, 1, 1], [], []>} : vector<10x200xf32>, vector<200x80xf32>, vector<10x80xf32> -> vector<10x80xf32>
    %53 = arith.addf %48, %52 : vector<10x80xf32>
    %54 = vector.extract_strided_slice %39 {offsets = [30, 0], sizes = [10, 200], strides = [1, 1]} : vector<50x200xf32> to vector<10x200xf32>
    %c0_53 = arith.constant 0 : index
    %c3_54 = arith.constant 3 : index
    %c0_55 = arith.constant 0 : index
    %c0_56 = arith.constant 0 : index
    %55 = vector.load %arg9[%c0_53, %c3_54, %c0_55, %c0_56] : memref<1x5x200x80xf32, #tpu.memory_space<vmem>>, vector<1x1x200x80xf32>
    %56 = vector.shape_cast %55 : vector<1x1x200x80xf32> to vector<200x80xf32>
    %cst_57 = arith.constant dense<0.000000e+00> : vector<10x80xf32>
    %57 = tpu.matmul %54, %56, %cst_57 {dimension_numbers = #tpu.dot_dimension_numbers<[1], [0], [0], [1], [0, 0, 1, 1], [], []>} : vector<10x200xf32>, vector<200x80xf32>, vector<10x80xf32> -> vector<10x80xf32>
    %58 = arith.addf %53, %57 : vector<10x80xf32>
    %59 = vector.extract_strided_slice %39 {offsets = [40, 0], sizes = [10, 200], strides = [1, 1]} : vector<50x200xf32> to vector<10x200xf32>
    %c0_58 = arith.constant 0 : index
    %c4_59 = arith.constant 4 : index
    %c0_60 = arith.constant 0 : index
    %c0_61 = arith.constant 0 : index
    %60 = vector.load %arg9[%c0_58, %c4_59, %c0_60, %c0_61] : memref<1x5x200x80xf32, #tpu.memory_space<vmem>>, vector<1x1x200x80xf32>
    %61 = vector.shape_cast %60 : vector<1x1x200x80xf32> to vector<200x80xf32>
    %cst_62 = arith.constant dense<0.000000e+00> : vector<10x80xf32>
    %62 = tpu.matmul %59, %61, %cst_62 {dimension_numbers = #tpu.dot_dimension_numbers<[1], [0], [0], [1], [0, 0, 1, 1], [], []>} : vector<10x200xf32>, vector<200x80xf32>, vector<10x80xf32> -> vector<10x80xf32>
    %63 = arith.addf %58, %62 : vector<10x80xf32>
    %c0_63 = arith.constant 0 : index
    %c0_64 = arith.constant 0 : index
    %c0_65 = arith.constant 0 : index
    %64 = vector.load %arg12[%c0_63, %c0_64, %c0_65] : memref<1x1x80xf32, #tpu.memory_space<vmem>>, vector<1x1x80xf32>
    %65 = vector.shape_cast %64 : vector<1x1x80xf32> to vector<1x80xf32>
    %66 = vector.broadcast %65 : vector<1x80xf32> to vector<10x80xf32>
    %67 = arith.addf %63, %66 : vector<10x80xf32>
    %cst_66 = arith.constant 0.000000e+00 : f32
    %68 = vector.broadcast %cst_66 : f32 to vector<10x80xf32>
    %69 = arith.maximumf %67, %68 : vector<10x80xf32>
    %c0_67 = arith.constant 0 : index
    %c0_68 = arith.constant 0 : index
    %70 = vector.load %arg4[%c0_67, %c0_68] : memref<12x10xf32, #tpu.memory_space<vmem>>, vector<12x10xf32>
    %cst_69 = arith.constant dense<0.000000e+00> : vector<12x80xf32>
    %71 = tpu.matmul %70, %69, %cst_69 {dimension_numbers = #tpu.dot_dimension_numbers<[1], [0], [0], [1], [0, 0, 1, 1], [], []>} : vector<12x10xf32>, vector<10x80xf32>, vector<12x80xf32> -> vector<12x80xf32>
    %c0_70 = arith.constant 0 : index
    %c0_71 = arith.constant 0 : index
    %72 = vector.load %arg7[%c0_70, %c0_71] : memref<80x96xf32, #tpu.memory_space<vmem>>, vector<80x96xf32>
    %cst_72 = arith.constant dense<0.000000e+00> : vector<12x96xf32>
    %73 = tpu.matmul %71, %72, %cst_72 {dimension_numbers = #tpu.dot_dimension_numbers<[1], [0], [0], [1], [0, 0, 1, 1], [], []>} : vector<12x80xf32>, vector<80x96xf32>, vector<12x96xf32> -> vector<12x96xf32>
    %74 = vector.extract_strided_slice %73 {offsets = [0, 0], sizes = [4, 96], strides = [1, 1]} : vector<12x96xf32> to vector<4x96xf32>
    %c0_73 = arith.constant 0 : index
    %c0_74 = arith.constant 0 : index
    %c0_75 = arith.constant 0 : index
    %c0_76 = arith.constant 0 : index
    %75 = vector.load %arg10[%c0_73, %c0_74, %c0_75, %c0_76] : memref<1x3x96x64xf32, #tpu.memory_space<vmem>>, vector<1x1x96x64xf32>
    %76 = vector.shape_cast %75 : vector<1x1x96x64xf32> to vector<96x64xf32>
    %cst_77 = arith.constant dense<0.000000e+00> : vector<4x64xf32>
    %77 = tpu.matmul %74, %76, %cst_77 {dimension_numbers = #tpu.dot_dimension_numbers<[1], [0], [0], [1], [0, 0, 1, 1], [], []>} : vector<4x96xf32>, vector<96x64xf32>, vector<4x64xf32> -> vector<4x64xf32>
    %78 = vector.extract_strided_slice %73 {offsets = [4, 0], sizes = [4, 96], strides = [1, 1]} : vector<12x96xf32> to vector<4x96xf32>
    %c0_78 = arith.constant 0 : index
    %c1_79 = arith.constant 1 : index
    %c0_80 = arith.constant 0 : index
    %c0_81 = arith.constant 0 : index
    %79 = vector.load %arg10[%c0_78, %c1_79, %c0_80, %c0_81] : memref<1x3x96x64xf32, #tpu.memory_space<vmem>>, vector<1x1x96x64xf32>
    %80 = vector.shape_cast %79 : vector<1x1x96x64xf32> to vector<96x64xf32>
    %cst_82 = arith.constant dense<0.000000e+00> : vector<4x64xf32>
    %81 = tpu.matmul %78, %80, %cst_82 {dimension_numbers = #tpu.dot_dimension_numbers<[1], [0], [0], [1], [0, 0, 1, 1], [], []>} : vector<4x96xf32>, vector<96x64xf32>, vector<4x64xf32> -> vector<4x64xf32>
    %82 = arith.addf %77, %81 : vector<4x64xf32>
    %83 = vector.extract_strided_slice %73 {offsets = [8, 0], sizes = [4, 96], strides = [1, 1]} : vector<12x96xf32> to vector<4x96xf32>
    %c0_83 = arith.constant 0 : index
    %c2_84 = arith.constant 2 : index
    %c0_85 = arith.constant 0 : index
    %c0_86 = arith.constant 0 : index
    %84 = vector.load %arg10[%c0_83, %c2_84, %c0_85, %c0_86] : memref<1x3x96x64xf32, #tpu.memory_space<vmem>>, vector<1x1x96x64xf32>
    %85 = vector.shape_cast %84 : vector<1x1x96x64xf32> to vector<96x64xf32>
    %cst_87 = arith.constant dense<0.000000e+00> : vector<4x64xf32>
    %86 = tpu.matmul %83, %85, %cst_87 {dimension_numbers = #tpu.dot_dimension_numbers<[1], [0], [0], [1], [0, 0, 1, 1], [], []>} : vector<4x96xf32>, vector<96x64xf32>, vector<4x64xf32> -> vector<4x64xf32>
    %87 = arith.addf %82, %86 : vector<4x64xf32>
    %c0_88 = arith.constant 0 : index
    %c0_89 = arith.constant 0 : index
    %c0_90 = arith.constant 0 : index
    %88 = vector.load %arg13[%c0_88, %c0_89, %c0_90] : memref<1x1x64xf32, #tpu.memory_space<vmem>>, vector<1x1x64xf32>
    %89 = vector.shape_cast %88 : vector<1x1x64xf32> to vector<1x64xf32>
    %90 = vector.broadcast %89 : vector<1x64xf32> to vector<4x64xf32>
    %91 = arith.addf %87, %90 : vector<4x64xf32>
    %cst_91 = arith.constant 0.000000e+00 : f32
    %92 = vector.broadcast %cst_91 : f32 to vector<4x64xf32>
    %93 = arith.maximumf %91, %92 : vector<4x64xf32>
    %94 = vector.extract_strided_slice %93 {offsets = [0, 0], sizes = [2, 64], strides = [1, 1]} : vector<4x64xf32> to vector<2x64xf32>
    %c0_92 = arith.constant 0 : index
    %c0_93 = arith.constant 0 : index
    %c0_94 = arith.constant 0 : index
    %c0_95 = arith.constant 0 : index
    %95 = vector.load %arg14[%c0_92, %c0_93, %c0_94, %c0_95] : memref<1x2x64x16xf32, #tpu.memory_space<vmem>>, vector<1x1x64x16xf32>
    %96 = vector.shape_cast %95 : vector<1x1x64x16xf32> to vector<64x16xf32>
    %cst_96 = arith.constant dense<0.000000e+00> : vector<2x16xf32>
    %97 = tpu.matmul %94, %96, %cst_96 {dimension_numbers = #tpu.dot_dimension_numbers<[1], [0], [0], [1], [0, 0, 1, 1], [], []>} : vector<2x64xf32>, vector<64x16xf32>, vector<2x16xf32> -> vector<2x16xf32>
    %98 = vector.extract_strided_slice %93 {offsets = [2, 0], sizes = [2, 64], strides = [1, 1]} : vector<4x64xf32> to vector<2x64xf32>
    %c0_97 = arith.constant 0 : index
    %c1_98 = arith.constant 1 : index
    %c0_99 = arith.constant 0 : index
    %c0_100 = arith.constant 0 : index
    %99 = vector.load %arg14[%c0_97, %c1_98, %c0_99, %c0_100] : memref<1x2x64x16xf32, #tpu.memory_space<vmem>>, vector<1x1x64x16xf32>
    %100 = vector.shape_cast %99 : vector<1x1x64x16xf32> to vector<64x16xf32>
    %cst_101 = arith.constant dense<0.000000e+00> : vector<2x16xf32>
    %101 = tpu.matmul %98, %100, %cst_101 {dimension_numbers = #tpu.dot_dimension_numbers<[1], [0], [0], [1], [0, 0, 1, 1], [], []>} : vector<2x64xf32>, vector<64x16xf32>, vector<2x16xf32> -> vector<2x16xf32>
    %102 = arith.addf %97, %101 : vector<2x16xf32>
    %c0_102 = arith.constant 0 : index
    %c0_103 = arith.constant 0 : index
    %c0_104 = arith.constant 0 : index
    %103 = vector.load %arg15[%c0_102, %c0_103, %c0_104] : memref<1x1x16xf32, #tpu.memory_space<vmem>>, vector<1x1x16xf32>
    %104 = vector.shape_cast %103 : vector<1x1x16xf32> to vector<1x16xf32>
    %105 = vector.broadcast %104 : vector<1x16xf32> to vector<2x16xf32>
    %106 = arith.addf %102, %105 : vector<2x16xf32>
    %cst_105 = arith.constant 0.000000e+00 : f32
    %107 = vector.broadcast %cst_105 : f32 to vector<2x16xf32>
    %108 = arith.maximumf %106, %107 : vector<2x16xf32>
    %c0_106 = arith.constant 0 : index
    %c0_107 = arith.constant 0 : index
    %c0_108 = arith.constant 0 : index
    %109 = vector.load %arg16[%c0_106, %c0_107, %c0_108] : memref<1x16x8xf32, #tpu.memory_space<vmem>>, vector<1x16x8xf32>
    %110 = vector.shape_cast %109 : vector<1x16x8xf32> to vector<16x8xf32>
    %cst_109 = arith.constant dense<0.000000e+00> : vector<2x8xf32>
    %111 = tpu.matmul %108, %110, %cst_109 {dimension_numbers = #tpu.dot_dimension_numbers<[1], [0], [0], [1], [0, 0, 1, 1], [], []>} : vector<2x16xf32>, vector<16x8xf32>, vector<2x8xf32> -> vector<2x8xf32>
    %c0_110 = arith.constant 0 : index
    %c0_111 = arith.constant 0 : index
    %c0_112 = arith.constant 0 : index
    %112 = vector.load %arg17[%c0_110, %c0_111, %c0_112] : memref<1x1x8xf32, #tpu.memory_space<vmem>>, vector<1x1x8xf32>
    %113 = vector.shape_cast %112 : vector<1x1x8xf32> to vector<1x8xf32>
    %114 = vector.broadcast %113 : vector<1x8xf32> to vector<2x8xf32>
    %115 = arith.addf %111, %114 : vector<2x8xf32>
    %cst_113 = arith.constant 0.000000e+00 : f32
    %116 = vector.broadcast %cst_113 : f32 to vector<2x8xf32>
    %117 = arith.maximumf %115, %116 : vector<2x8xf32>
    %c0_114 = arith.constant 0 : index
    %c0_115 = arith.constant 0 : index
    %c0_116 = arith.constant 0 : index
    %118 = vector.load %arg18[%c0_114, %c0_115, %c0_116] : memref<1x8x6xf32, #tpu.memory_space<vmem>>, vector<1x8x6xf32>
    %119 = vector.shape_cast %118 : vector<1x8x6xf32> to vector<8x6xf32>
    %cst_117 = arith.constant dense<0.000000e+00> : vector<2x6xf32>
    %120 = tpu.matmul %117, %119, %cst_117 {dimension_numbers = #tpu.dot_dimension_numbers<[1], [0], [0], [1], [0, 0, 1, 1], [], []>} : vector<2x8xf32>, vector<8x6xf32>, vector<2x6xf32> -> vector<2x6xf32>
    %c0_118 = arith.constant 0 : index
    %c0_119 = arith.constant 0 : index
    %c0_120 = arith.constant 0 : index
    %121 = vector.load %arg19[%c0_118, %c0_119, %c0_120] : memref<1x1x6xf32, #tpu.memory_space<vmem>>, vector<1x1x6xf32>
    %122 = vector.shape_cast %121 : vector<1x1x6xf32> to vector<1x6xf32>
    %123 = vector.broadcast %122 : vector<1x6xf32> to vector<2x6xf32>
    %124 = arith.addf %120, %123 : vector<2x6xf32>
    %c0_121 = arith.constant 0 : index
    %c0_122 = arith.constant 0 : index
    %c0_123 = arith.constant 0 : index
    %125 = vector.load %arg20[%c0_121, %c0_122, %c0_123] : memref<1x2x6xf32, #tpu.memory_space<vmem>>, vector<1x2x6xf32>
    %126 = vector.shape_cast %125 : vector<1x2x6xf32> to vector<2x6xf32>
    %127 = vector.shape_cast %124 : vector<2x6xf32> to vector<1x2x6xf32>
    tpu.vector_store %arg20[%c0_121, %c0_122, %c0_123], %127 {strides = array<i32>} : memref<1x2x6xf32, #tpu.memory_space<vmem>>, vector<1x2x6xf32>,
    return
  }
  func.func @transform_0(%arg0: i32) -> (i32, i32, i32) {
    %c0_i32 = arith.constant 0 : i32
    %c0_i32_0 = arith.constant 0 : i32
    %c0_i32_1 = arith.constant 0 : i32
    return %arg0, %c0_i32, %c0_i32_0 : i32, i32, i32
  }
  func.func @transform_1(%arg0: i32) -> (i32, i32) {
    %c0_i32 = arith.constant 0 : i32
    %c0_i32_0 = arith.constant 0 : i32
    %c0_i32_1 = arith.constant 0 : i32
    return %c0_i32, %c0_i32_0 : i32, i32
  }
  func.func @transform_2(%arg0: i32) -> (i32, i32) {
    %c0_i32 = arith.constant 0 : i32
    %c0_i32_0 = arith.constant 0 : i32
    %c0_i32_1 = arith.constant 0 : i32
    return %c0_i32, %c0_i32_0 : i32, i32
  }
  func.func @transform_3(%arg0: i32) -> (i32, i32) {
    %c0_i32 = arith.constant 0 : i32
    %c0_i32_0 = arith.constant 0 : i32
    %c0_i32_1 = arith.constant 0 : i32
    return %c0_i32, %c0_i32_0 : i32, i32
  }
  func.func @transform_4(%arg0: i32) -> (i32, i32) {
    %c0_i32 = arith.constant 0 : i32
    %c0_i32_0 = arith.constant 0 : i32
    %c0_i32_1 = arith.constant 0 : i32
    return %c0_i32, %c0_i32_0 : i32, i32
  }
  func.func @transform_5(%arg0: i32) -> (i32, i32) {
    %c0_i32 = arith.constant 0 : i32
    %c0_i32_0 = arith.constant 0 : i32
    %c0_i32_1 = arith.constant 0 : i32
    return %c0_i32, %c0_i32_0 : i32, i32
  }
  func.func @transform_6(%arg0: i32) -> (i32, i32) {
    %c0_i32 = arith.constant 0 : i32
    %c0_i32_0 = arith.constant 0 : i32
    %c0_i32_1 = arith.constant 0 : i32
    return %c0_i32, %c0_i32_0 : i32, i32
  }
  func.func @transform_7(%arg0: i32) -> (i32, i32, i32, i32) {
    %c0_i32 = arith.constant 0 : i32
    %c0_i32_0 = arith.constant 0 : i32
    %c0_i32_1 = arith.constant 0 : i32
    %c0_i32_2 = arith.constant 0 : i32
    return %arg0, %c0_i32, %c0_i32_0, %c0_i32_1 : i32, i32, i32, i32
  }
  func.func @transform_8(%arg0: i32) -> (i32, i32, i32, i32) {
    %c0_i32 = arith.constant 0 : i32
    %c0_i32_0 = arith.constant 0 : i32
    %c0_i32_1 = arith.constant 0 : i32
    %c0_i32_2 = arith.constant 0 : i32
    return %arg0, %c0_i32, %c0_i32_0, %c0_i32_1 : i32, i32, i32, i32
  }
  func.func @transform_9(%arg0: i32) -> (i32, i32, i32, i32) {
    %c0_i32 = arith.constant 0 : i32
    %c0_i32_0 = arith.constant 0 : i32
    %c0_i32_1 = arith.constant 0 : i32
    %c0_i32_2 = arith.constant 0 : i32
    return %arg0, %c0_i32, %c0_i32_0, %c0_i32_1 : i32, i32, i32, i32
  }
  func.func @transform_10(%arg0: i32) -> (i32, i32, i32) {
    %c0_i32 = arith.constant 0 : i32
    %c0_i32_0 = arith.constant 0 : i32
    %c0_i32_1 = arith.constant 0 : i32
    return %arg0, %c0_i32, %c0_i32_0 : i32, i32, i32
  }
  func.func @transform_11(%arg0: i32) -> (i32, i32, i32) {
    %c0_i32 = arith.constant 0 : i32
    %c0_i32_0 = arith.constant 0 : i32
    %c0_i32_1 = arith.constant 0 : i32
    return %arg0, %c0_i32, %c0_i32_0 : i32, i32, i32
  }
  func.func @transform_12(%arg0: i32) -> (i32, i32, i32) {
    %c0_i32 = arith.constant 0 : i32
    %c0_i32_0 = arith.constant 0 : i32
    %c0_i32_1 = arith.constant 0 : i32
    return %arg0, %c0_i32, %c0_i32_0 : i32, i32, i32
  }
  func.func @transform_13(%arg0: i32) -> (i32, i32, i32, i32) {
    %c0_i32 = arith.constant 0 : i32
    %c0_i32_0 = arith.constant 0 : i32
    %c0_i32_1 = arith.constant 0 : i32
    %c0_i32_2 = arith.constant 0 : i32
    return %arg0, %c0_i32, %c0_i32_0, %c0_i32_1 : i32, i32, i32, i32
  }
  func.func @transform_14(%arg0: i32) -> (i32, i32, i32) {
    %c0_i32 = arith.constant 0 : i32
    %c0_i32_0 = arith.constant 0 : i32
    %c0_i32_1 = arith.constant 0 : i32
    return %arg0, %c0_i32, %c0_i32_0 : i32, i32, i32
  }
  func.func @transform_15(%arg0: i32) -> (i32, i32, i32) {
    %c0_i32 = arith.constant 0 : i32
    %c0_i32_0 = arith.constant 0 : i32
    %c0_i32_1 = arith.constant 0 : i32
    return %arg0, %c0_i32, %c0_i32_0 : i32, i32, i32
  }
  func.func @transform_16(%arg0: i32) -> (i32, i32, i32) {
    %c0_i32 = arith.constant 0 : i32
    %c0_i32_0 = arith.constant 0 : i32
    %c0_i32_1 = arith.constant 0 : i32
    return %arg0, %c0_i32, %c0_i32_0 : i32, i32, i32
  }
  func.func @transform_17(%arg0: i32) -> (i32, i32, i32) {
    %c0_i32 = arith.constant 0 : i32
    %c0_i32_0 = arith.constant 0 : i32
    %c0_i32_1 = arith.constant 0 : i32
    return %arg0, %c0_i32, %c0_i32_0 : i32, i32, i32
  }
  func.func @transform_18(%arg0: i32) -> (i32, i32, i32) {
    %c0_i32 = arith.constant 0 : i32
    %c0_i32_0 = arith.constant 0 : i32
    %c0_i32_1 = arith.constant 0 : i32
    return %arg0, %c0_i32, %c0_i32_0 : i32, i32, i32
  }
  func.func @transform_19(%arg0: i32) -> (i32, i32, i32) {
    %c0_i32 = arith.constant 0 : i32
    %c0_i32_0 = arith.constant 0 : i32
    %c0_i32_1 = arith.constant 0 : i32
    return %arg0, %c0_i32, %c0_i32_0 : i32, i32, i32
  }
}

</mosaic_0001>

<llo_original>
// kernel: _lambda_.3
$region0: #{_lambda_.3}
  #allocation0 [shape = 'u32[]', space=smem, size = 0x4, offset = 0x4, fixed_abs, tag = 'smem constant byte address 0x4 - core index']
  #allocation1 [shape = 'u32[72,128]{1,0:T(1,128)}', space=vmem, size = 0x9000, scoped, tag = 'internal scratch']
  %s0 = inlined_call_operand.vmem [shape: f32[2,2,6], index: 0, kind: input, shape index: {}]
  %s1 = inlined_call_operand.hbm [shape: f32[2,6], index: 1, kind: output, shape index: {}]
  %s2 = sld [smem:[#allocation0]]
  $region14: #{_lambda_.3} parent=0
    _
  %s4 = ssub.s32 1, %s2
  %s5 = scalar_select 0, %s4, %s2
  $region1: #{_lambda_.3} parent=0
    #allocation2 [shape = 'u8[1024]{0}', space=vmem, size = 0x400, scoped, tag = 'output window, operand 0, single buffered']
    #allocation3 [shape = 's32[1]{0}', space=sflag, size = 0x4, scoped, tag = 'scoped memory for _lambda_.3']
    %6 = vsyncpa [#allocation3], 0
    // Predicated region
    $region2: #{_lambda_.3} parent=1 // pred_check
      _
    $region3: #{_lambda_.3} parent=1 // pred_check_branch
      %8 = sbr.rel (0) target = $region5
    $region4: #{_lambda_.3} parent=1 // pred_region
      _
    $region5: #{_lambda_.3} parent=1 // pred_fallthru
      _
    %v9 = vld [vmem:[%s0] sm:$0x3]
    %s10 = scalar_lea.vmem %s0, 2
    %v11 = vld [vmem:[%s10] sm:$0x3]
    %v12 = vsub.f32 %v9, %v11
    %vm13 = vcmask 41984
    %14 = vst.msk [vmem:[#allocation2] sm:$0x3] %vm13, %v12
    // Predicated region
    $region6: #{_lambda_.3} parent=1 // pred_check
      _
    $region7: #{_lambda_.3} parent=1 // pred_check_branch
      %16 = sbr.rel (0) target = $region9
    $region8: #{_lambda_.3} parent=1 // pred_region
      %18 = vsyncadd [#allocation3], 0
      %s20 = sshll.u32 [#allocation2], 4
      %s21 = int_to_ptr.vmem [resolvable:$true] %s20
      %s22 = sshll.u32 %s1, 4
      %s23 = int_to_ptr.hbm [resolvable:$true] %s22
      %25 = dma.vmem_to_hbm [thread:$0]  %s21, 32, %s23, [#allocation3]
    $region9: #{_lambda_.3} parent=1 // pred_fallthru
      _
    // Predicated region
    $region10: #{_lambda_.3} parent=1 // pred_check
      _
    $region11: #{_lambda_.3} parent=1 // pred_check_branch
      %27 = sbr.rel (0) target = $region13
    $region12: #{_lambda_.3} parent=1 // pred_region
      %29 = dma.done [#allocation3], 32
    $region13: #{_lambda_.3} parent=1 // pred_fallthru
      _
    %30 = vsyncpa [#allocation3], 1

// kernel: _lambda_.2
$region0: #{_lambda_.2}
  #allocation0 [shape = 'u32[]', space=smem, size = 0x4, offset = 0x4, fixed_abs, tag = 'smem constant byte address 0x4 - core index']
  #allocation1 [shape = 'u32[72,128]{1,0:T(1,128)}', space=vmem, size = 0x9000, scoped, tag = 'internal scratch']
  %s0 = inlined_call_operand.vmem [shape: f32[2,64,96], index: 0, kind: input, shape index: {}]
  %s1 = inlined_call_operand.vmem [shape: f32[140,64], index: 1, kind: input, shape index: {}]
  %s2 = inlined_call_operand.vmem [shape: f32[50,28], index: 2, kind: input, shape index: {}]
  %s3 = inlined_call_operand.vmem [shape: f32[12,10], index: 3, kind: input, shape index: {}]
  %s4 = inlined_call_operand.vmem [shape: f32[96,210], index: 4, kind: input, shape index: {}]
  %s5 = inlined_call_operand.vmem [shape: f32[112,200], index: 5, kind: input, shape index: {}]
  %s6 = inlined_call_operand.vmem [shape: f32[80,96], index: 6, kind: input, shape index: {}]
  %s7 = inlined_call_operand.vmem [shape: f32[2,5,210,112], index: 7, kind: input, shape index: {}]
  %s8 = inlined_call_operand.vmem [shape: f32[2,5,200,80], index: 8, kind: input, shape index: {}]
  %s9 = inlined_call_operand.vmem [shape: f32[2,3,96,64], index: 9, kind: input, shape index: {}]
  %s10 = inlined_call_operand.vmem [shape: f32[2,1,112], index: 10, kind: input, shape index: {}]
  %s11 = inlined_call_operand.vmem [shape: f32[2,1,80], index: 11, kind: input, shape index: {}]
  %s12 = inlined_call_operand.vmem [shape: f32[2,1,64], index: 12, kind: input, shape index: {}]
  %s13 = inlined_call_operand.vmem [shape: f32[2,2,64,16], index: 13, kind: input, shape index: {}]
  %s14 = inlined_call_operand.vmem [shape: f32[2,1,16], index: 14, kind: input, shape index: {}]
  %s15 = inlined_call_operand.vmem [shape: f32[2,16,8], index: 15, kind: input, shape index: {}]
  %s16 = inlined_call_operand.vmem [shape: f32[2,1,8], index: 16, kind: input, shape index: {}]
  %s17 = inlined_call_operand.vmem [shape: f32[2,8,6], index: 17, kind: input, shape index: {}]
  %s18 = inlined_call_operand.vmem [shape: f32[2,1,6], index: 18, kind: input, shape index: {}]
  %s19 = inlined_call_operand.vmem [shape: f32[2,2,6], index: 19, kind: output, shape index: {}]
  %s20 = sld [smem:[#allocation0]]
  $region109: #{_lambda_.2} parent=0
    _
  %s22 = ssub.s32 1, %s20
  %s23 = scalar_select 0, %s22, %s20
  loop: start=0, step=1, limit=4
  $region2: #{_lambda_.2} parent=0 // loop_pre_header
    _
  $region3: #{_lambda_.2} parent=0 // loop_header
    %s25 = sphi 0, %s29
    %p26 = scmp.ge.s32.totalorder %s25, 4
    %s35 = sphi 0, %s37
    %s38 = sphi 0, %s35
    %s39 = sphi 0, %s38
    %s55 = sphi 0, %s39
    %s59 = sphi 0, %s59
    %s61 = sphi 0, %s59
    %s62 = sphi 0, %s61
    %s76 = sphi 0, %s62
    %s80 = sphi 0, %s80
    %s82 = sphi 0, %s80
    %s83 = sphi 0, %s82
    %s97 = sphi 0, %s83
    %s101 = sphi 0, %s101
    %s103 = sphi 0, %s101
    %s104 = sphi 0, %s103
    %s118 = sphi 0, %s104
    %s122 = sphi 0, %s122
    %s124 = sphi 0, %s122
    %s125 = sphi 0, %s124
    %s139 = sphi 0, %s125
    %s143 = sphi 0, %s143
    %s145 = sphi 0, %s143
    %s146 = sphi 0, %s145
    %s160 = sphi 0, %s146
    %s164 = sphi 0, %s164
    %s166 = sphi 0, %s164
    %s167 = sphi 0, %s166
    %s181 = sphi 0, %s167
    %s187 = sphi 0, %s189
    %s190 = sphi 0, %s187
    %s191 = sphi 0, %s190
    %s207 = sphi 0, %s191
    %s213 = sphi 0, %s215
    %s216 = sphi 0, %s213
    %s217 = sphi 0, %s216
    %s233 = sphi 0, %s217
    %s239 = sphi 0, %s241
    %s242 = sphi 0, %s239
    %s243 = sphi 0, %s242
    %s259 = sphi 0, %s243
    %s265 = sphi 0, %s267
    %s268 = sphi 0, %s265
    %s269 = sphi 0, %s268
    %s285 = sphi 0, %s269
    %s291 = sphi 0, %s293
    %s294 = sphi 0, %s291
    %s295 = sphi 0, %s294
    %s311 = sphi 0, %s295
    %s317 = sphi 0, %s319
    %s320 = sphi 0, %s317
    %s321 = sphi 0, %s320
    %s337 = sphi 0, %s321
    %s343 = sphi 0, %s345
    %s346 = sphi 0, %s343
    %s347 = sphi 0, %s346
    %s363 = sphi 0, %s347
    %s369 = sphi 0, %s371
    %s372 = sphi 0, %s369
    %s373 = sphi 0, %s372
    %s389 = sphi 0, %s373
    %s395 = sphi 0, %s397
    %s398 = sphi 0, %s395
    %s399 = sphi 0, %s398
    %s415 = sphi 0, %s399
    %s421 = sphi 0, %s423
    %s424 = sphi 0, %s421
    %s425 = sphi 0, %s424
    %s441 = sphi 0, %s425
    %s447 = sphi 0, %s449
    %s450 = sphi 0, %s447
    %s451 = sphi 0, %s450
    %s467 = sphi 0, %s451
    %s473 = sphi 0, %s475
    %s476 = sphi 0, %s473
    %s477 = sphi 0, %s476
    %s493 = sphi 0, %s477
    %s499 = sphi 0, %s501
    %s502 = sphi 0, %s499
    %s503 = sphi 0, %s502
    %s519 = sphi 0, %s503
  $region4: #{_lambda_.2} parent=0 // loop_header_branch
    %28 = sbr.rel (%p26) target = $region8
  $region5: #{_lambda_.2} parent=0 // loop_body
    %s30 = ssub.s32 %s25, 1
    %s31 = ssub.s32 %s25, 2
    %s32 = sadd.s32 %s25, 1
    %s33 = ssub.s32 %s25, %s32
    %p34 = scmp.eq.s32.totalorder %s33, 0
    %s36 = sadd.s32 %s35, 1
    %s37 = scalar_select %p34, %s35, %s36
    %p40 = pneg %p34
    %p41 = scmp.eq.s32.totalorder %s25, 1
    %p42 = por %p40, %p41
    %p43 = scmp.ne.s32.totalorder %s35, %s38
    %p44 = scmp.eq.s32.totalorder %s25, 0
    %p45 = por %p43, %p44
    %p46 = scmp.ne.s32.totalorder %s35, %s38
    %p47 = scmp.eq.s32.totalorder %s30, 1
    %p48 = por %p46, %p47
    %p49 = scmp.ne.s32.totalorder %s38, %s39
    %p50 = scmp.eq.s32.totalorder %s30, 0
    %p51 = por %p49, %p50
    %p52 = scmp.ne.s32.totalorder %s38, %s39
    %p53 = scmp.eq.s32.totalorder %s31, 1
    %p54 = por %p52, %p53
    %p56 = scmp.ne.s32.totalorder %s39, %s55
    %p57 = scmp.eq.s32.totalorder %s31, 0
    %p58 = por %p56, %p57
    %s60 = sadd.s32 %s59, 1
    %p63 = scmp.eq.s32.totalorder %s25, 1
    %p64 = scmp.ne.s32.totalorder %s59, %s61
    %p65 = scmp.eq.s32.totalorder %s25, 0
    %p66 = por %p64, %p65
    %p67 = scmp.ne.s32.totalorder %s59, %s61
    %p68 = scmp.eq.s32.totalorder %s30, 1
    %p69 = por %p67, %p68
    %p70 = scmp.ne.s32.totalorder %s61, %s62
    %p71 = scmp.eq.s32.totalorder %s30, 0
    %p72 = por %p70, %p71
    %p73 = scmp.ne.s32.totalorder %s61, %s62
    %p74 = scmp.eq.s32.totalorder %s31, 1
    %p75 = por %p73, %p74
    %p77 = scmp.ne.s32.totalorder %s62, %s76
    %p78 = scmp.eq.s32.totalorder %s31, 0
    %p79 = por %p77, %p78
    %s81 = sadd.s32 %s80, 1
    %p84 = scmp.eq.s32.totalorder %s25, 1
    %p85 = scmp.ne.s32.totalorder %s80, %s82
    %p86 = scmp.eq.s32.totalorder %s25, 0
    %p87 = por %p85, %p86
    %p88 = scmp.ne.s32.totalorder %s80, %s82
    %p89 = scmp.eq.s32.totalorder %s30, 1
    %p90 = por %p88, %p89
    %p91 = scmp.ne.s32.totalorder %s82, %s83
    %p92 = scmp.eq.s32.totalorder %s30, 0
    %p93 = por %p91, %p92
    %p94 = scmp.ne.s32.totalorder %s82, %s83
    %p95 = scmp.eq.s32.totalorder %s31, 1
    %p96 = por %p94, %p95
    %p98 = scmp.ne.s32.totalorder %s83, %s97
    %p99 = scmp.eq.s32.totalorder %s31, 0
    %p100 = por %p98, %p99
    %s102 = sadd.s32 %s101, 1
    %p105 = scmp.eq.s32.totalorder %s25, 1
    %p106 = scmp.ne.s32.totalorder %s101, %s103
    %p107 = scmp.eq.s32.totalorder %s25, 0
    %p108 = por %p106, %p107
    %p109 = scmp.ne.s32.totalorder %s101, %s103
    %p110 = scmp.eq.s32.totalorder %s30, 1
    %p111 = por %p109, %p110
    %p112 = scmp.ne.s32.totalorder %s103, %s104
    %p113 = scmp.eq.s32.totalorder %s30, 0
    %p114 = por %p112, %p113
    %p115 = scmp.ne.s32.totalorder %s103, %s104
    %p116 = scmp.eq.s32.totalorder %s31, 1
    %p117 = por %p115, %p116
    %p119 = scmp.ne.s32.totalorder %s104, %s118
    %p120 = scmp.eq.s32.totalorder %s31, 0
    %p121 = por %p119, %p120
    %s123 = sadd.s32 %s122, 1
    %p126 = scmp.eq.s32.totalorder %s25, 1
    %p127 = scmp.ne.s32.totalorder %s122, %s124
    %p128 = scmp.eq.s32.totalorder %s25, 0
    %p129 = por %p127, %p128
    %p130 = scmp.ne.s32.totalorder %s122, %s124
    %p131 = scmp.eq.s32.totalorder %s30, 1
    %p132 = por %p130, %p131
    %p133 = scmp.ne.s32.totalorder %s124, %s125
    %p134 = scmp.eq.s32.totalorder %s30, 0
    %p135 = por %p133, %p134
    %p136 = scmp.ne.s32.totalorder %s124, %s125
    %p137 = scmp.eq.s32.totalorder %s31, 1
    %p138 = por %p136, %p137
    %p140 = scmp.ne.s32.totalorder %s125, %s139
    %p141 = scmp.eq.s32.totalorder %s31, 0
    %p142 = por %p140, %p141
    %s144 = sadd.s32 %s143, 1
    %p147 = scmp.eq.s32.totalorder %s25, 1
    %p148 = scmp.ne.s32.totalorder %s143, %s145
    %p149 = scmp.eq.s32.totalorder %s25, 0
    %p150 = por %p148, %p149
    %p151 = scmp.ne.s32.totalorder %s143, %s145
    %p152 = scmp.eq.s32.totalorder %s30, 1
    %p153 = por %p151, %p152
    %p154 = scmp.ne.s32.totalorder %s145, %s146
    %p155 = scmp.eq.s32.totalorder %s30, 0
    %p156 = por %p154, %p155
    %p157 = scmp.ne.s32.totalorder %s145, %s146
    %p158 = scmp.eq.s32.totalorder %s31, 1
    %p159 = por %p157, %p158
    %p161 = scmp.ne.s32.totalorder %s146, %s160
    %p162 = scmp.eq.s32.totalorder %s31, 0
    %p163 = por %p161, %p162
    %s165 = sadd.s32 %s164, 1
    %p168 = scmp.eq.s32.totalorder %s25, 1
    %p169 = scmp.ne.s32.totalorder %s164, %s166
    %p170 = scmp.eq.s32.totalorder %s25, 0
    %p171 = por %p169, %p170
    %p172 = scmp.ne.s32.totalorder %s164, %s166
    %p173 = scmp.eq.s32.totalorder %s30, 1
    %p174 = por %p172, %p173
    %p175 = scmp.ne.s32.totalorder %s166, %s167
    %p176 = scmp.eq.s32.totalorder %s30, 0
    %p177 = por %p175, %p176
    %p178 = scmp.ne.s32.totalorder %s166, %s167
    %p179 = scmp.eq.s32.totalorder %s31, 1
    %p180 = por %p178, %p179
    %p182 = scmp.ne.s32.totalorder %s167, %s181
    %p183 = scmp.eq.s32.totalorder %s31, 0
    %p184 = por %p182, %p183
    %s185 = ssub.s32 %s25, %s32
    %p186 = scmp.eq.s32.totalorder %s185, 0
    %s188 = sadd.s32 %s187, 1
    %s189 = scalar_select %p186, %s187, %s188
    %p192 = pneg %p186
    %p193 = scmp.eq.s32.totalorder %s25, 1
    %p194 = por %p192, %p193
    %p195 = scmp.ne.s32.totalorder %s187, %s190
    %p196 = scmp.eq.s32.totalorder %s25, 0
    %p197 = por %p195, %p196
    %p198 = scmp.ne.s32.totalorder %s187, %s190
    %p199 = scmp.eq.s32.totalorder %s30, 1
    %p200 = por %p198, %p199
    %p201 = scmp.ne.s32.totalorder %s190, %s191
    %p202 = scmp.eq.s32.totalorder %s30, 0
    %p203 = por %p201, %p202
    %p204 = scmp.ne.s32.totalorder %s190, %s191
    %p205 = scmp.eq.s32.totalorder %s31, 1
    %p206 = por %p204, %p205
    %p208 = scmp.ne.s32.totalorder %s191, %s207
    %p209 = scmp.eq.s32.totalorder %s31, 0
    %p210 = por %p208, %p209
    %s211 = ssub.s32 %s25, %s32
    %p212 = scmp.eq.s32.totalorder %s211, 0
    %s214 = sadd.s32 %s213, 1
    %s215 = scalar_select %p212, %s213, %s214
    %p218 = pneg %p212
    %p219 = scmp.eq.s32.totalorder %s25, 1
    %p220 = por %p218, %p219
    %p221 = scmp.ne.s32.totalorder %s213, %s216
    %p222 = scmp.eq.s32.totalorder %s25, 0
    %p223 = por %p221, %p222
    %p224 = scmp.ne.s32.totalorder %s213, %s216
    %p225 = scmp.eq.s32.totalorder %s30, 1
    %p226 = por %p224, %p225
    %p227 = scmp.ne.s32.totalorder %s216, %s217
    %p228 = scmp.eq.s32.totalorder %s30, 0
    %p229 = por %p227, %p228
    %p230 = scmp.ne.s32.totalorder %s216, %s217
    %p231 = scmp.eq.s32.totalorder %s31, 1
    %p232 = por %p230, %p231
    %p234 = scmp.ne.s32.totalorder %s217, %s233
    %p235 = scmp.eq.s32.totalorder %s31, 0
    %p236 = por %p234, %p235
    %s237 = ssub.s32 %s25, %s32
    %p238 = scmp.eq.s32.totalorder %s237, 0
    %s240 = sadd.s32 %s239, 1
    %s241 = scalar_select %p238, %s239, %s240
    %p244 = pneg %p238
    %p245 = scmp.eq.s32.totalorder %s25, 1
    %p246 = por %p244, %p245
    %p247 = scmp.ne.s32.totalorder %s239, %s242
    %p248 = scmp.eq.s32.totalorder %s25, 0
    %p249 = por %p247, %p248
    %p250 = scmp.ne.s32.totalorder %s239, %s242
    %p251 = scmp.eq.s32.totalorder %s30, 1
    %p252 = por %p250, %p251
    %p253 = scmp.ne.s32.totalorder %s242, %s243
    %p254 = scmp.eq.s32.totalorder %s30, 0
    %p255 = por %p253, %p254
    %p256 = scmp.ne.s32.totalorder %s242, %s243
    %p257 = scmp.eq.s32.totalorder %s31, 1
    %p258 = por %p256, %p257
    %p260 = scmp.ne.s32.totalorder %s243, %s259
    %p261 = scmp.eq.s32.totalorder %s31, 0
    %p262 = por %p260, %p261
    %s263 = ssub.s32 %s25, %s32
    %p264 = scmp.eq.s32.totalorder %s263, 0
    %s266 = sadd.s32 %s265, 1
    %s267 = scalar_select %p264, %s265, %s266
    %p270 = pneg %p264
    %p271 = scmp.eq.s32.totalorder %s25, 1
    %p272 = por %p270, %p271
    %p273 = scmp.ne.s32.totalorder %s265, %s268
    %p274 = scmp.eq.s32.totalorder %s25, 0
    %p275 = por %p273, %p274
    %p276 = scmp.ne.s32.totalorder %s265, %s268
    %p277 = scmp.eq.s32.totalorder %s30, 1
    %p278 = por %p276, %p277
    %p279 = scmp.ne.s32.totalorder %s268, %s269
    %p280 = scmp.eq.s32.totalorder %s30, 0
    %p281 = por %p279, %p280
    %p282 = scmp.ne.s32.totalorder %s268, %s269
    %p283 = scmp.eq.s32.totalorder %s31, 1
    %p284 = por %p282, %p283
    %p286 = scmp.ne.s32.totalorder %s269, %s285
    %p287 = scmp.eq.s32.totalorder %s31, 0
    %p288 = por %p286, %p287
    %s289 = ssub.s32 %s25, %s32
    %p290 = scmp.eq.s32.totalorder %s289, 0
    %s292 = sadd.s32 %s291, 1
    %s293 = scalar_select %p290, %s291, %s292
    %p296 = pneg %p290
    %p297 = scmp.eq.s32.totalorder %s25, 1
    %p298 = por %p296, %p297
    %p299 = scmp.ne.s32.totalorder %s291, %s294
    %p300 = scmp.eq.s32.totalorder %s25, 0
    %p301 = por %p299, %p300
    %p302 = scmp.ne.s32.totalorder %s291, %s294
    %p303 = scmp.eq.s32.totalorder %s30, 1
    %p304 = por %p302, %p303
    %p305 = scmp.ne.s32.totalorder %s294, %s295
    %p306 = scmp.eq.s32.totalorder %s30, 0
    %p307 = por %p305, %p306
    %p308 = scmp.ne.s32.totalorder %s294, %s295
    %p309 = scmp.eq.s32.totalorder %s31, 1
    %p310 = por %p308, %p309
    %p312 = scmp.ne.s32.totalorder %s295, %s311
    %p313 = scmp.eq.s32.totalorder %s31, 0
    %p314 = por %p312, %p313
    %s315 = ssub.s32 %s25, %s32
    %p316 = scmp.eq.s32.totalorder %s315, 0
    %s318 = sadd.s32 %s317, 1
    %s319 = scalar_select %p316, %s317, %s318
    %p322 = pneg %p316
    %p323 = scmp.eq.s32.totalorder %s25, 1
    %p324 = por %p322, %p323
    %p325 = scmp.ne.s32.totalorder %s317, %s320
    %p326 = scmp.eq.s32.totalorder %s25, 0
    %p327 = por %p325, %p326
    %p328 = scmp.ne.s32.totalorder %s317, %s320
    %p329 = scmp.eq.s32.totalorder %s30, 1
    %p330 = por %p328, %p329
    %p331 = scmp.ne.s32.totalorder %s320, %s321
    %p332 = scmp.eq.s32.totalorder %s30, 0
    %p333 = por %p331, %p332
    %p334 = scmp.ne.s32.totalorder %s320, %s321
    %p335 = scmp.eq.s32.totalorder %s31, 1
    %p336 = por %p334, %p335
    %p338 = scmp.ne.s32.totalorder %s321, %s337
    %p339 = scmp.eq.s32.totalorder %s31, 0
    %p340 = por %p338, %p339
    %s341 = ssub.s32 %s25, %s32
    %p342 = scmp.eq.s32.totalorder %s341, 0
    %s344 = sadd.s32 %s343, 1
    %s345 = scalar_select %p342, %s343, %s344
    %p348 = pneg %p342
    %p349 = scmp.eq.s32.totalorder %s25, 1
    %p350 = por %p348, %p349
    %p351 = scmp.ne.s32.totalorder %s343, %s346
    %p352 = scmp.eq.s32.totalorder %s25, 0
    %p353 = por %p351, %p352
    %p354 = scmp.ne.s32.totalorder %s343, %s346
    %p355 = scmp.eq.s32.totalorder %s30, 1
    %p356 = por %p354, %p355
    %p357 = scmp.ne.s32.totalorder %s346, %s347
    %p358 = scmp.eq.s32.totalorder %s30, 0
    %p359 = por %p357, %p358
    %p360 = scmp.ne.s32.totalorder %s346, %s347
    %p361 = scmp.eq.s32.totalorder %s31, 1
    %p362 = por %p360, %p361
    %p364 = scmp.ne.s32.totalorder %s347, %s363
    %p365 = scmp.eq.s32.totalorder %s31, 0
    %p366 = por %p364, %p365
    %s367 = ssub.s32 %s25, %s32
    %p368 = scmp.eq.s32.totalorder %s367, 0
    %s370 = sadd.s32 %s369, 1
    %s371 = scalar_select %p368, %s369, %s370
    %p374 = pneg %p368
    %p375 = scmp.eq.s32.totalorder %s25, 1
    %p376 = por %p374, %p375
    %p377 = scmp.ne.s32.totalorder %s369, %s372
    %p378 = scmp.eq.s32.totalorder %s25, 0
    %p379 = por %p377, %p378
    %p380 = scmp.ne.s32.totalorder %s369, %s372
    %p381 = scmp.eq.s32.totalorder %s30, 1
    %p382 = por %p380, %p381
    %p383 = scmp.ne.s32.totalorder %s372, %s373
    %p384 = scmp.eq.s32.totalorder %s30, 0
    %p385 = por %p383, %p384
    %p386 = scmp.ne.s32.totalorder %s372, %s373
    %p387 = scmp.eq.s32.totalorder %s31, 1
    %p388 = por %p386, %p387
    %p390 = scmp.ne.s32.totalorder %s373, %s389
    %p391 = scmp.eq.s32.totalorder %s31, 0
    %p392 = por %p390, %p391
    %s393 = ssub.s32 %s25, %s32
    %p394 = scmp.eq.s32.totalorder %s393, 0
    %s396 = sadd.s32 %s395, 1
    %s397 = scalar_select %p394, %s395, %s396
    %p400 = pneg %p394
    %p401 = scmp.eq.s32.totalorder %s25, 1
    %p402 = por %p400, %p401
    %p403 = scmp.ne.s32.totalorder %s395, %s398
    %p404 = scmp.eq.s32.totalorder %s25, 0
    %p405 = por %p403, %p404
    %p406 = scmp.ne.s32.totalorder %s395, %s398
    %p407 = scmp.eq.s32.totalorder %s30, 1
    %p408 = por %p406, %p407
    %p409 = scmp.ne.s32.totalorder %s398, %s399
    %p410 = scmp.eq.s32.totalorder %s30, 0
    %p411 = por %p409, %p410
    %p412 = scmp.ne.s32.totalorder %s398, %s399
    %p413 = scmp.eq.s32.totalorder %s31, 1
    %p414 = por %p412, %p413
    %p416 = scmp.ne.s32.totalorder %s399, %s415
    %p417 = scmp.eq.s32.totalorder %s31, 0
    %p418 = por %p416, %p417
    %s419 = ssub.s32 %s25, %s32
    %p420 = scmp.eq.s32.totalorder %s419, 0
    %s422 = sadd.s32 %s421, 1
    %s423 = scalar_select %p420, %s421, %s422
    %p426 = pneg %p420
    %p427 = scmp.eq.s32.totalorder %s25, 1
    %p428 = por %p426, %p427
    %p429 = scmp.ne.s32.totalorder %s421, %s424
    %p430 = scmp.eq.s32.totalorder %s25, 0
    %p431 = por %p429, %p430
    %p432 = scmp.ne.s32.totalorder %s421, %s424
    %p433 = scmp.eq.s32.totalorder %s30, 1
    %p434 = por %p432, %p433
    %p435 = scmp.ne.s32.totalorder %s424, %s425
    %p436 = scmp.eq.s32.totalorder %s30, 0
    %p437 = por %p435, %p436
    %p438 = scmp.ne.s32.totalorder %s424, %s425
    %p439 = scmp.eq.s32.totalorder %s31, 1
    %p440 = por %p438, %p439
    %p442 = scmp.ne.s32.totalorder %s425, %s441
    %p443 = scmp.eq.s32.totalorder %s31, 0
    %p444 = por %p442, %p443
    %s445 = ssub.s32 %s25, %s32
    %p446 = scmp.eq.s32.totalorder %s445, 0
    %s448 = sadd.s32 %s447, 1
    %s449 = scalar_select %p446, %s447, %s448
    %p452 = pneg %p446
    %p453 = scmp.eq.s32.totalorder %s25, 1
    %p454 = por %p452, %p453
    %p455 = scmp.ne.s32.totalorder %s447, %s450
    %p456 = scmp.eq.s32.totalorder %s25, 0
    %p457 = por %p455, %p456
    %p458 = scmp.ne.s32.totalorder %s447, %s450
    %p459 = scmp.eq.s32.totalorder %s30, 1
    %p460 = por %p458, %p459
    %p461 = scmp.ne.s32.totalorder %s450, %s451
    %p462 = scmp.eq.s32.totalorder %s30, 0
    %p463 = por %p461, %p462
    %p464 = scmp.ne.s32.totalorder %s450, %s451
    %p465 = scmp.eq.s32.totalorder %s31, 1
    %p466 = por %p464, %p465
    %p468 = scmp.ne.s32.totalorder %s451, %s467
    %p469 = scmp.eq.s32.totalorder %s31, 0
    %p470 = por %p468, %p469
    %s471 = ssub.s32 %s25, %s32
    %p472 = scmp.eq.s32.totalorder %s471, 0
    %s474 = sadd.s32 %s473, 1
    %s475 = scalar_select %p472, %s473, %s474
    %p478 = pneg %p472
    %p479 = scmp.eq.s32.totalorder %s25, 1
    %p480 = por %p478, %p479
    %p481 = scmp.ne.s32.totalorder %s473, %s476
    %p482 = scmp.eq.s32.totalorder %s25, 0
    %p483 = por %p481, %p482
    %p484 = scmp.ne.s32.totalorder %s473, %s476
    %p485 = scmp.eq.s32.totalorder %s30, 1
    %p486 = por %p484, %p485
    %p487 = scmp.ne.s32.totalorder %s476, %s477
    %p488 = scmp.eq.s32.totalorder %s30, 0
    %p489 = por %p487, %p488
    %p490 = scmp.ne.s32.totalorder %s476, %s477
    %p491 = scmp.eq.s32.totalorder %s31, 1
    %p492 = por %p490, %p491
    %p494 = scmp.ne.s32.totalorder %s477, %s493
    %p495 = scmp.eq.s32.totalorder %s31, 0
    %p496 = por %p494, %p495
    %s497 = ssub.s32 %s25, %s32
    %p498 = scmp.eq.s32.totalorder %s497, 0
    %s500 = sadd.s32 %s499, 1
    %s501 = scalar_select %p498, %s499, %s500
    %p504 = pneg %p498
    %p505 = scmp.eq.s32.totalorder %s25, 1
    %p506 = por %p504, %p505
    %p507 = scmp.ne.s32.totalorder %s499, %s502
    %p508 = scmp.eq.s32.totalorder %s25, 0
    %p509 = por %p507, %p508
    %p510 = scmp.ne.s32.totalorder %s499, %s502
    %p511 = scmp.eq.s32.totalorder %s30, 1
    %p512 = por %p510, %p511
    %p513 = scmp.ne.s32.totalorder %s502, %s503
    %p514 = scmp.eq.s32.totalorder %s30, 0
    %p515 = por %p513, %p514
    %p516 = scmp.ne.s32.totalorder %s502, %s503
    %p517 = scmp.eq.s32.totalorder %s31, 1
    %p518 = por %p516, %p517
    %p520 = scmp.ne.s32.totalorder %s503, %s519
    %p521 = scmp.eq.s32.totalorder %s31, 0
    %p522 = por %p520, %p521
    %p523 = scmp.le.s32.totalorder 1, %s25
    %p524 = scmp.lt.s32.totalorder %s25, 3
    %p525 = pnand %p523, %p524
    %p526 = pneg %p525
    // Predicated region
    $region9: #{_lambda_.2} parent=5 // pred_check
      _
    $region10: #{_lambda_.2} parent=5 // pred_check_branch
      %528 = sbr.rel (%p525) target = $region12
    $region11: #{_lambda_.2} parent=5 // pred_region
      %s529 = ssub.s32 %s25, 1
      // Predicated region
      $region13: #{_lambda_.2} parent=11 // pred_check
        %p530 = pneg %p72
      $region14: #{_lambda_.2} parent=11 // pred_check_branch
        %532 = sbr.rel (%p530) target = $region16
      $region15: #{_lambda_.2} parent=11 // pred_region
        _
      $region16: #{_lambda_.2} parent=11 // pred_fallthru
        _
      // Predicated region
      $region17: #{_lambda_.2} parent=11 // pred_check
        %p533 = pneg %p93
      $region18: #{_lambda_.2} parent=11 // pred_check_branch
        %535 = sbr.rel (%p533) target = $region20
      $region19: #{_lambda_.2} parent=11 // pred_region
        _
      $region20: #{_lambda_.2} parent=11 // pred_fallthru
        _
      // Predicated region
      $region21: #{_lambda_.2} parent=11 // pred_check
        %p536 = pneg %p114
      $region22: #{_lambda_.2} parent=11 // pred_check_branch
        %538 = sbr.rel (%p536) target = $region24
      $region23: #{_lambda_.2} parent=11 // pred_region
        _
      $region24: #{_lambda_.2} parent=11 // pred_fallthru
        _
      // Predicated region
      $region25: #{_lambda_.2} parent=11 // pred_check
        %p539 = pneg %p135
      $region26: #{_lambda_.2} parent=11 // pred_check_branch
        %541 = sbr.rel (%p539) target = $region28
      $region27: #{_lambda_.2} parent=11 // pred_region
        _
      $region28: #{_lambda_.2} parent=11 // pred_fallthru
        _
      // Predicated region
      $region29: #{_lambda_.2} parent=11 // pred_check
        %p542 = pneg %p156
      $region30: #{_lambda_.2} parent=11 // pred_check_branch
        %544 = sbr.rel (%p542) target = $region32
      $region31: #{_lambda_.2} parent=11 // pred_region
        _
      $region32: #{_lambda_.2} parent=11 // pred_fallthru
        _
      // Predicated region
      $region33: #{_lambda_.2} parent=11 // pred_check
        %p545 = pneg %p177
      $region34: #{_lambda_.2} parent=11 // pred_check_branch
        %547 = sbr.rel (%p545) target = $region36
      $region35: #{_lambda_.2} parent=11 // pred_region
        _
      $region36: #{_lambda_.2} parent=11 // pred_fallthru
        _
    $region12: #{_lambda_.2} parent=5 // pred_fallthru
      _
    %p548 = scmp.lt.s32.totalorder %s25, 2
    // Predicated region
    $region37: #{_lambda_.2} parent=5 // pred_check
      %p549 = pneg %p548
    $region38: #{_lambda_.2} parent=5 // pred_check_branch
      %551 = sbr.rel (%p549) target = $region40
    $region39: #{_lambda_.2} parent=5 // pred_region
      // Predicated region
      $region41: #{_lambda_.2} parent=39 // pred_check
        %p552 = pneg %p45
      $region42: #{_lambda_.2} parent=39 // pred_check_branch
        %554 = sbr.rel (%p552) target = $region44
      $region43: #{_lambda_.2} parent=39 // pred_region
        %p555 = scmp.lt.s32.totalorder %s25, 1
        %s556 = scalar_select %p555, %s25, 1
        %s557 = smul.addr %s556, 8
        %s558 = smul.addr %s557, 8
        %s559 = scalar_lea.vmem %s0, %s558
      $region44: #{_lambda_.2} parent=39 // pred_fallthru
        _
      // Predicated region
      $region45: #{_lambda_.2} parent=39 // pred_check
        %p560 = pneg %p197
      $region46: #{_lambda_.2} parent=39 // pred_check_branch
        %562 = sbr.rel (%p560) target = $region48
      $region47: #{_lambda_.2} parent=39 // pred_region
        %p563 = scmp.lt.s32.totalorder %s25, 1
        %s564 = scalar_select %p563, %s25, 1
        %s565 = smul.addr %s564, 135
        %s566 = smul.addr %s565, 8
        %s567 = scalar_lea.vmem %s7, %s566
      $region48: #{_lambda_.2} parent=39 // pred_fallthru
        _
      // Predicated region
      $region49: #{_lambda_.2} parent=39 // pred_check
        %p568 = pneg %p223
      $region50: #{_lambda_.2} parent=39 // pred_check_branch
        %570 = sbr.rel (%p568) target = $region52
      $region51: #{_lambda_.2} parent=39 // pred_region
        %p571 = scmp.lt.s32.totalorder %s25, 1
        %s572 = scalar_select %p571, %s25, 1
        %s573 = smul.addr %s572, 125
        %s574 = smul.addr %s573, 8
        %s575 = scalar_lea.vmem %s8, %s574
      $region52: #{_lambda_.2} parent=39 // pred_fallthru
        _
      // Predicated region
      $region53: #{_lambda_.2} parent=39 // pred_check
        %p576 = pneg %p249
      $region54: #{_lambda_.2} parent=39 // pred_check_branch
        %578 = sbr.rel (%p576) target = $region56
      $region55: #{_lambda_.2} parent=39 // pred_region
        %p579 = scmp.lt.s32.totalorder %s25, 1
        %s580 = scalar_select %p579, %s25, 1
        %s581 = smul.addr %s580, 36
        %s582 = smul.addr %s581, 8
        %s583 = scalar_lea.vmem %s9, %s582
      $region56: #{_lambda_.2} parent=39 // pred_fallthru
        _
      // Predicated region
      $region57: #{_lambda_.2} parent=39 // pred_check
        %p584 = pneg %p275
      $region58: #{_lambda_.2} parent=39 // pred_check_branch
        %586 = sbr.rel (%p584) target = $region60
      $region59: #{_lambda_.2} parent=39 // pred_region
        %p587 = scmp.lt.s32.totalorder %s25, 1
        %s588 = scalar_select %p587, %s25, 1
        %s589 = scalar_lea.vmem %s10, %s588
      $region60: #{_lambda_.2} parent=39 // pred_fallthru
        _
      // Predicated region
      $region61: #{_lambda_.2} parent=39 // pred_check
        %p590 = pneg %p301
      $region62: #{_lambda_.2} parent=39 // pred_check_branch
        %592 = sbr.rel (%p590) target = $region64
      $region63: #{_lambda_.2} parent=39 // pred_region
        %p593 = scmp.lt.s32.totalorder %s25, 1
        %s594 = scalar_select %p593, %s25, 1
        %s595 = scalar_lea.vmem %s11, %s594
      $region64: #{_lambda_.2} parent=39 // pred_fallthru
        _
      // Predicated region
      $region65: #{_lambda_.2} parent=39 // pred_check
        %p596 = pneg %p327
      $region66: #{_lambda_.2} parent=39 // pred_check_branch
        %598 = sbr.rel (%p596) target = $region68
      $region67: #{_lambda_.2} parent=39 // pred_region
        %p599 = scmp.lt.s32.totalorder %s25, 1
        %s600 = scalar_select %p599, %s25, 1
        %s601 = scalar_lea.vmem %s12, %s600
      $region68: #{_lambda_.2} parent=39 // pred_fallthru
        _
      // Predicated region
      $region69: #{_lambda_.2} parent=39 // pred_check
        %p602 = pneg %p353
      $region70: #{_lambda_.2} parent=39 // pred_check_branch
        %604 = sbr.rel (%p602) target = $region72
      $region71: #{_lambda_.2} parent=39 // pred_region
        %p605 = scmp.lt.s32.totalorder %s25, 1
        %s606 = scalar_select %p605, %s25, 1
        %s607 = smul.addr %s606, 16
        %s608 = smul.addr %s607, 8
        %s609 = scalar_lea.vmem %s13, %s608
      $region72: #{_lambda_.2} parent=39 // pred_fallthru
        _
      // Predicated region
      $region73: #{_lambda_.2} parent=39 // pred_check
        %p610 = pneg %p379
      $region74: #{_lambda_.2} parent=39 // pred_check_branch
        %612 = sbr.rel (%p610) target = $region76
      $region75: #{_lambda_.2} parent=39 // pred_region
        %p613 = scmp.lt.s32.totalorder %s25, 1
        %s614 = scalar_select %p613, %s25, 1
        %s615 = scalar_lea.vmem %s14, %s614
      $region76: #{_lambda_.2} parent=39 // pred_fallthru
        _
      // Predicated region
      $region77: #{_lambda_.2} parent=39 // pred_check
        %p616 = pneg %p405
      $region78: #{_lambda_.2} parent=39 // pred_check_branch
        %618 = sbr.rel (%p616) target = $region80
      $region79: #{_lambda_.2} parent=39 // pred_region
        %p619 = scmp.lt.s32.totalorder %s25, 1
        %s620 = scalar_select %p619, %s25, 1
        %s621 = smul.addr %s620, 2
        %s622 = smul.addr %s621, 8
        %s623 = scalar_lea.vmem %s15, %s622
      $region80: #{_lambda_.2} parent=39 // pred_fallthru
        _
      // Predicated region
      $region81: #{_lambda_.2} parent=39 // pred_check
        %p624 = pneg %p431
      $region82: #{_lambda_.2} parent=39 // pred_check_branch
        %626 = sbr.rel (%p624) target = $region84
      $region83: #{_lambda_.2} parent=39 // pred_region
        %p627 = scmp.lt.s32.totalorder %s25, 1
        %s628 = scalar_select %p627, %s25, 1
        %s629 = scalar_lea.vmem %s16, %s628
      $region84: #{_lambda_.2} parent=39 // pred_fallthru
        _
      // Predicated region
      $region85: #{_lambda_.2} parent=39 // pred_check
        %p630 = pneg %p457
      $region86: #{_lambda_.2} parent=39 // pred_check_branch
        %632 = sbr.rel (%p630) target = $region88
      $region87: #{_lambda_.2} parent=39 // pred_region
        %p633 = scmp.lt.s32.totalorder %s25, 1
        %s634 = scalar_select %p633, %s25, 1
        %s635 = smul.addr %s634, 8
        %s636 = scalar_lea.vmem %s17, %s635
      $region88: #{_lambda_.2} parent=39 // pred_fallthru
        _
      // Predicated region
      $region89: #{_lambda_.2} parent=39 // pred_check
        %p637 = pneg %p483
      $region90: #{_lambda_.2} parent=39 // pred_check_branch
        %639 = sbr.rel (%p637) target = $region92
      $region91: #{_lambda_.2} parent=39 // pred_region
        %p640 = scmp.lt.s32.totalorder %s25, 1
        %s641 = scalar_select %p640, %s25, 1
        %s642 = scalar_lea.vmem %s18, %s641
      $region92: #{_lambda_.2} parent=39 // pred_fallthru
        _
    $region40: #{_lambda_.2} parent=5 // pred_fallthru
      _
    %p643 = scmp.le.s32.totalorder 1, %s25
    %p644 = scmp.lt.s32.totalorder %s25, 3
    %p645 = pnand %p643, %p644
    %p646 = pneg %p645
    // Predicated region
    $region93: #{_lambda_.2} parent=5 // pred_check
      _
    $region94: #{_lambda_.2} parent=5 // pred_check_branch
      %648 = sbr.rel (%p645) target = $region96
    $region95: #{_lambda_.2} parent=5 // pred_region
      %s649 = ssub.s32 %s25, 1
      %p650 = scmp.lt.s32.totalorder %s30, 1
      %s651 = scalar_select %p650, %s30, 1
      %s652 = smul.addr %s651, 8
      %s653 = smul.addr %s652, 8
      %s654 = scalar_lea.vmem %s0, %s653
      %p655 = pneg %p51
      %p656 = pneg %p48
      %p657 = pneg %p72
      %p658 = pneg %p69
      %p659 = pneg %p93
      %p660 = pneg %p90
      %p661 = pneg %p114
      %p662 = pneg %p111
      %p663 = pneg %p135
      %p664 = pneg %p132
      %p665 = pneg %p156
      %p666 = pneg %p153
      %p667 = pneg %p177
      %p668 = pneg %p174
      %p669 = scmp.lt.s32.totalorder %s30, 1
      %s670 = scalar_select %p669, %s30, 1
      %s671 = smul.addr %s670, 135
      %s672 = smul.addr %s671, 8
      %s673 = scalar_lea.vmem %s7, %s672
      %p674 = pneg %p203
      %p675 = pneg %p200
      %p676 = scmp.lt.s32.totalorder %s30, 1
      %s677 = scalar_select %p676, %s30, 1
      %s678 = smul.addr %s677, 125
      %s679 = smul.addr %s678, 8
      %s680 = scalar_lea.vmem %s8, %s679
      %p681 = pneg %p229
      %p682 = pneg %p226
      %p683 = scmp.lt.s32.totalorder %s30, 1
      %s684 = scalar_select %p683, %s30, 1
      %s685 = smul.addr %s684, 36
      %s686 = smul.addr %s685, 8
      %s687 = scalar_lea.vmem %s9, %s686
      %p688 = pneg %p255
      %p689 = pneg %p252
      %p690 = scmp.lt.s32.totalorder %s30, 1
      %s691 = scalar_select %p690, %s30, 1
      %s692 = scalar_lea.vmem %s10, %s691
      %p693 = pneg %p281
      %p694 = pneg %p278
      %p695 = scmp.lt.s32.totalorder %s30, 1
      %s696 = scalar_select %p695, %s30, 1
      %s697 = scalar_lea.vmem %s11, %s696
      %p698 = pneg %p307
      %p699 = pneg %p304
      %p700 = scmp.lt.s32.totalorder %s30, 1
      %s701 = scalar_select %p700, %s30, 1
      %s702 = scalar_lea.vmem %s12, %s701
      %p703 = pneg %p333
      %p704 = pneg %p330
      %p705 = scmp.lt.s32.totalorder %s30, 1
      %s706 = scalar_select %p705, %s30, 1
      %s707 = smul.addr %s706, 16
      %s708 = smul.addr %s707, 8
      %s709 = scalar_lea.vmem %s13, %s708
      %p710 = pneg %p359
      %p711 = pneg %p356
      %p712 = scmp.lt.s32.totalorder %s30, 1
      %s713 = scalar_select %p712, %s30, 1
      %s714 = scalar_lea.vmem %s14, %s713
      %p715 = pneg %p385
      %p716 = pneg %p382
      %p717 = scmp.lt.s32.totalorder %s30, 1
      %s718 = scalar_select %p717, %s30, 1
      %s719 = smul.addr %s718, 2
      %s720 = smul.addr %s719, 8
      %s721 = scalar_lea.vmem %s15, %s720
      %p722 = pneg %p411
      %p723 = pneg %p408
      %p724 = scmp.lt.s32.totalorder %s30, 1
      %s725 = scalar_select %p724, %s30, 1
      %s726 = scalar_lea.vmem %s16, %s725
      %p727 = pneg %p437
      %p728 = pneg %p434
      %p729 = scmp.lt.s32.totalorder %s30, 1
      %s730 = scalar_select %p729, %s30, 1
      %s731 = smul.addr %s730, 8
      %s732 = scalar_lea.vmem %s17, %s731
      %p733 = pneg %p463
      %p734 = pneg %p460
      %p735 = scmp.lt.s32.totalorder %s30, 1
      %s736 = scalar_select %p735, %s30, 1
      %s737 = scalar_lea.vmem %s18, %s736
      %p738 = pneg %p489
      %p739 = pneg %p486
      %p740 = pneg %p515
      %p741 = pneg %p512
      %p742 = scmp.lt.s32.totalorder %s30, 1
      %s743 = scalar_select %p742, %s30, 1
      %s744 = smul.addr %s743, 2
      %s745 = scalar_lea.vmem %s19, %s744
      %p746 = scmp.lt.s32.totalorder %s30, 1
      %s747 = scalar_select %p746, %s30, 1
      %s748 = smul.addr %s747, 8
      %s749 = smul.addr %s748, 8
      %s750 = scalar_lea.vmem %s0, %s749
      %p751 = scmp.lt.s32.totalorder %s30, 1
      %s752 = scalar_select %p751, %s30, 1
      %s753 = smul.addr %s752, 135
      %s754 = smul.addr %s753, 8
      %s755 = scalar_lea.vmem %s7, %s754
      %p756 = scmp.lt.s32.totalorder %s30, 1
      %s757 = scalar_select %p756, %s30, 1
      %s758 = smul.addr %s757, 125
      %s759 = smul.addr %s758, 8
      %s760 = scalar_lea.vmem %s8, %s759
      %p761 = scmp.lt.s32.totalorder %s30, 1
      %s762 = scalar_select %p761, %s30, 1
      %s763 = smul.addr %s762, 36
      %s764 = smul.addr %s763, 8
      %s765 = scalar_lea.vmem %s9, %s764
      %p766 = scmp.lt.s32.totalorder %s30, 1
      %s767 = scalar_select %p766, %s30, 1
      %s768 = scalar_lea.vmem %s10, %s767
      %p769 = scmp.lt.s32.totalorder %s30, 1
      %s770 = scalar_select %p769, %s30, 1
      %s771 = scalar_lea.vmem %s11, %s770
      %p772 = scmp.lt.s32.totalorder %s30, 1
      %s773 = scalar_select %p772, %s30, 1
      %s774 = scalar_lea.vmem %s12, %s773
      %p775 = scmp.lt.s32.totalorder %s30, 1
      %s776 = scalar_select %p775, %s30, 1
      %s777 = smul.addr %s776, 16
      %s778 = smul.addr %s777, 8
      %s779 = scalar_lea.vmem %s13, %s778
      %p780 = scmp.lt.s32.totalorder %s30, 1
      %s781 = scalar_select %p780, %s30, 1
      %s782 = scalar_lea.vmem %s14, %s781
      %p783 = scmp.lt.s32.totalorder %s30, 1
      %s784 = scalar_select %p783, %s30, 1
      %s785 = smul.addr %s784, 2
      %s786 = smul.addr %s785, 8
      %s787 = scalar_lea.vmem %s15, %s786
      %p788 = scmp.lt.s32.totalorder %s30, 1
      %s789 = scalar_select %p788, %s30, 1
      %s790 = scalar_lea.vmem %s16, %s789
      %p791 = scmp.lt.s32.totalorder %s30, 1
      %s792 = scalar_select %p791, %s30, 1
      %s793 = smul.addr %s792, 8
      %s794 = scalar_lea.vmem %s17, %s793
      %p795 = scmp.lt.s32.totalorder %s30, 1
      %s796 = scalar_select %p795, %s30, 1
      %s797 = scalar_lea.vmem %s18, %s796
      %p798 = scmp.lt.s32.totalorder %s30, 1
      %s799 = scalar_select %p798, %s30, 1
      %s800 = smul.addr %s799, 2
      %s801 = scalar_lea.vmem %s19, %s800
      %v802 = vld [vmem:[%s750] sm:$0xff]
      %v803 = vld [vmem:[%s750 + $0x8] sm:$0xff]
      %v804 = vld [vmem:[%s750 + $0x10] sm:$0xff]
      %v805 = vld [vmem:[%s750 + $0x18] sm:$0xff]
      %v806 = vld [vmem:[%s750 + $0x20] sm:$0xff]
      %v807 = vld [vmem:[%s750 + $0x28] sm:$0xff]
      %v808 = vld [vmem:[%s750 + $0x30] sm:$0xff]
      %v809 = vld [vmem:[%s750 + $0x38] sm:$0xff]
      %v810 = vld [vmem:[%s1] sm:$0xff]
      %v811 = vld [vmem:[%s1 + $0x8] sm:$0xff]
      %v812 = vld [vmem:[%s1 + $0x10] sm:$0xff]
      %v813 = vld [vmem:[%s1 + $0x18] sm:$0xff]
      %v814 = vld [vmem:[%s1 + $0x20] sm:$0xff]
      %v815 = vld [vmem:[%s1 + $0x28] sm:$0xff]
      %v816 = vld [vmem:[%s1 + $0x30] sm:$0xff]
      %v817 = vld [vmem:[%s1 + $0x38] sm:$0xff]
      %v818 = vld [vmem:[%s1 + $0x40] sm:$0xff]
      %v819 = vld [vmem:[%s1 + $0x48] sm:$0xff]
      %v820 = vld [vmem:[%s1 + $0x50] sm:$0xff]
      %v821 = vld [vmem:[%s1 + $0x58] sm:$0xff]
      %v822 = vld [vmem:[%s1 + $0x60] sm:$0xff]
      %v823 = vld [vmem:[%s1 + $0x68] sm:$0xff]
      %v824 = vld [vmem:[%s1 + $0x70] sm:$0xff]
      %v825 = vld [vmem:[%s1 + $0x78] sm:$0xff]
      %v826 = vld [vmem:[%s1 + $0x80] sm:$0xff]
      %v827 = vld [vmem:[%s1 + $0x88] sm:$0xf]
      %vm828 = vcmask 523264
      %v830 = vsel %vm828, %v810, 0
      %v833 = vsel %vm828, %v811, 0
      %v836 = vsel %vm828, %v812, 0
      %v839 = vsel %vm828, %v813, 0
      %v842 = vsel %vm828, %v814, 0
      %v845 = vsel %vm828, %v815, 0
      %v848 = vsel %vm828, %v816, 0
      %v851 = vsel %vm828, %v817, 0
      %v854 = vsel %vm828, %v818, 0
      %v857 = vsel %vm828, %v819, 0
      %v860 = vsel %vm828, %v820, 0
      %v863 = vsel %vm828, %v821, 0
      %v866 = vsel %vm828, %v822, 0
      %v869 = vsel %vm828, %v823, 0
      %v872 = vsel %vm828, %v824, 0
      %v875 = vsel %vm828, %v825, 0
      %v878 = vsel %vm828, %v826, 0
      %v881 = vsel %vm828, %v827, 0
      %883 = vmatpush.msra.mxu0 0.0
      %884 = vmatpush.msra.mxu0 0.0
      %885 = vmatpush.msra.mxu0 0.0
      %886 = vmatpush.msra.mxu0 0.0
      %887 = vmatpush.msra.mxu0 0.0
      %888 = vmatpush.msra.mxu0 0.0
      %889 = vmatpush.msra.mxu0 0.0
      %890 = vmatpush.msra.mxu0 0.0
      %891 = vmatpush.msra.mxu0 %v809
      %892 = vmatpush.msra.mxu0 %v808
      %893 = vmatpush.msra.mxu0 %v807
      %894 = vmatpush.msra.mxu0 %v806
      %895 = vmatpush.msra.mxu0 %v805
      %896 = vmatpush.msra.mxu0 %v804
      %897 = vmatpush.msra.mxu0 %v803
      %898 = vmatpush.msra.mxu0 %v802
      %899 = vmatmul.f32.gmra.mxu0 %v830
      %v900 = vpop.f32.mrf.mxu0
      %v901 = vadd.f32 0.0, %v900
      %902 = vmatmul.f32.gmra.mxu0 %v833
      %v903 = vpop.f32.mrf.mxu0
      %v904 = vadd.f32 0.0, %v903
      %905 = vmatmul.f32.gmra.mxu0 %v836
      %v906 = vpop.f32.mrf.mxu0
      %v907 = vadd.f32 0.0, %v906
      %908 = vmatmul.f32.gmra.mxu0 %v839
      %v909 = vpop.f32.mrf.mxu0
      %v910 = vadd.f32 0.0, %v909
      %911 = vmatmul.f32.gmra.mxu0 %v842
      %v912 = vpop.f32.mrf.mxu0
      %v913 = vadd.f32 0.0, %v912
      %914 = vmatmul.f32.gmra.mxu0 %v845
      %v915 = vpop.f32.mrf.mxu0
      %v916 = vadd.f32 0.0, %v915
      %917 = vmatmul.f32.gmra.mxu0 %v848
      %v918 = vpop.f32.mrf.mxu0
      %v919 = vadd.f32 0.0, %v918
      %920 = vmatmul.f32.gmra.mxu0 %v851
      %v921 = vpop.f32.mrf.mxu0
      %v922 = vadd.f32 0.0, %v921
      %923 = vmatmul.f32.gmra.mxu0 %v854
      %v924 = vpop.f32.mrf.mxu0
      %v925 = vadd.f32 0.0, %v924
      %926 = vmatmul.f32.gmra.mxu0 %v857
      %v927 = vpop.f32.mrf.mxu0
      %v928 = vadd.f32 0.0, %v927
      %929 = vmatmul.f32.gmra.mxu0 %v860
      %v930 = vpop.f32.mrf.mxu0
      %v931 = vadd.f32 0.0, %v930
      %932 = vmatmul.f32.gmra.mxu0 %v863
      %v933 = vpop.f32.mrf.mxu0
      %v934 = vadd.f32 0.0, %v933
      %935 = vmatmul.f32.gmra.mxu0 %v866
      %v936 = vpop.f32.mrf.mxu0
      %v937 = vadd.f32 0.0, %v936
      %938 = vmatmul.f32.gmra.mxu0 %v869
      %v939 = vpop.f32.mrf.mxu0
      %v940 = vadd.f32 0.0, %v939
      %941 = vmatmul.f32.gmra.mxu0 %v872
      %v942 = vpop.f32.mrf.mxu0
      %v943 = vadd.f32 0.0, %v942
      %944 = vmatmul.f32.gmra.mxu0 %v875
      %v945 = vpop.f32.mrf.mxu0
      %v946 = vadd.f32 0.0, %v945
      %947 = vmatmul.f32.gmra.mxu0 %v878
      %v948 = vpop.f32.mrf.mxu0
      %v949 = vadd.f32 0.0, %v948
      %950 = vmatmul.f32.gmra.mxu0 %v881
      %v951 = vpop.f32.mrf.mxu0
      %v952 = vadd.f32 0.0, %v951
      %953 = vdwg.mxu0
      %v954 = vld [vmem:[%s4] sm:$0xff]
      %v955 = vld [vmem:[%s4 + $0x8] sm:$0xff]
      %v956 = vld [vmem:[%s4 + $0x10] sm:$0xff]
      %v957 = vld [vmem:[%s4 + $0x18] sm:$0xff]
      %v958 = vld [vmem:[%s4 + $0x20] sm:$0xff]
      %v959 = vld [vmem:[%s4 + $0x28] sm:$0xff]
      %v960 = vld [vmem:[%s4 + $0x30] sm:$0xff]
      %v961 = vld [vmem:[%s4 + $0x38] sm:$0xff]
      %v962 = vld [vmem:[%s4 + $0x40] sm:$0xff]
      %v963 = vld [vmem:[%s4 + $0x48] sm:$0xff]
      %v964 = vld [vmem:[%s4 + $0x50] sm:$0xff]
      %v965 = vld [vmem:[%s4 + $0x58] sm:$0xff]
      %v966 = vld [vmem:[%s4 + $0x60] sm:$0xff]
      %v967 = vld [vmem:[%s4 + $0x68] sm:$0xff]
      %v968 = vld [vmem:[%s4 + $0x70] sm:$0xff]
      %v969 = vld [vmem:[%s4 + $0x78] sm:$0xff]
      %v970 = vld [vmem:[%s4 + $0x80] sm:$0xff]
      %v971 = vld [vmem:[%s4 + $0x88] sm:$0xff]
      %v972 = vld [vmem:[%s4 + $0x90] sm:$0xff]
      %v973 = vld [vmem:[%s4 + $0x98] sm:$0xff]
      %v974 = vld [vmem:[%s4 + $0xa0] sm:$0xff]
      %v975 = vld [vmem:[%s4 + $0xa8] sm:$0xff]
      %v976 = vld [vmem:[%s4 + $0xb0] sm:$0xff]
      %v977 = vld [vmem:[%s4 + $0xb8] sm:$0xff]
      %vm978 = vcmask 785408
      %v980 = vsel %vm978, %v901, 0
      %v983 = vsel %vm978, %v904, 0
      %v986 = vsel %vm978, %v907, 0
      %v989 = vsel %vm978, %v910, 0
      %v992 = vsel %vm978, %v913, 0
      %v995 = vsel %vm978, %v916, 0
      %v998 = vsel %vm978, %v919, 0
      %v1001 = vsel %vm978, %v922, 0
      %v1004 = vsel %vm978, %v925, 0
      %v1007 = vsel %vm978, %v928, 0
      %v1010 = vsel %vm978, %v931, 0
      %v1013 = vsel %vm978, %v934, 0
      %v1016 = vsel %vm978, %v937, 0
      %v1019 = vsel %vm978, %v940, 0
      %v1022 = vsel %vm978, %v943, 0
      %v1025 = vsel %vm978, %v946, 0
      %v1028 = vsel %vm978, %v949, 0
      %v1031 = vsel %vm978, %v952, 0
      %1033 = vmatpush.msra.mxu0 0.0
      %1034 = vmatpush.msra.mxu0 0.0
      %1035 = vmatpush.msra.mxu0 0.0
      %1036 = vmatpush.msra.mxu0 0.0
      %1037 = vmatpush.msra.mxu0 %v976
      %1038 = vmatpush.msra.mxu0 %v974
      %1039 = vmatpush.msra.mxu0 %v972
      %1040 = vmatpush.msra.mxu0 %v970
      %1041 = vmatpush.msra.mxu0 %v968
      %1042 = vmatpush.msra.mxu0 %v966
      %1043 = vmatpush.msra.mxu0 %v964
      %1044 = vmatpush.msra.mxu0 %v962
      %1045 = vmatpush.msra.mxu0 %v960
      %1046 = vmatpush.msra.mxu0 %v958
      %1047 = vmatpush.msra.mxu0 %v956
      %1048 = vmatpush.msra.mxu0 %v954
      %1049 = vmatmul.f32.gmra.mxu0 %v980
      %v1050 = vpop.f32.mrf.mxu0
      %v1051 = vadd.f32 0.0, %v1050
      %1052 = vmatmul.f32.gmra.mxu0 %v983
      %v1053 = vpop.f32.mrf.mxu0
      %v1054 = vadd.f32 0.0, %v1053
      %1055 = vmatmul.f32.gmra.mxu0 %v986
      %v1056 = vpop.f32.mrf.mxu0
      %v1057 = vadd.f32 0.0, %v1056
      %1058 = vmatmul.f32.gmra.mxu0 %v989
      %v1059 = vpop.f32.mrf.mxu0
      %v1060 = vadd.f32 0.0, %v1059
      %1061 = vmatmul.f32.gmra.mxu0 %v992
      %v1062 = vpop.f32.mrf.mxu0
      %v1063 = vadd.f32 0.0, %v1062
      %1064 = vmatmul.f32.gmra.mxu0 %v995
      %v1065 = vpop.f32.mrf.mxu0
      %v1066 = vadd.f32 0.0, %v1065
      %1067 = vmatmul.f32.gmra.mxu0 %v998
      %v1068 = vpop.f32.mrf.mxu0
      %v1069 = vadd.f32 0.0, %v1068
      %1070 = vmatmul.f32.gmra.mxu0 %v1001
      %v1071 = vpop.f32.mrf.mxu0
      %v1072 = vadd.f32 0.0, %v1071
      %1073 = vmatmul.f32.gmra.mxu0 %v1004
      %v1074 = vpop.f32.mrf.mxu0
      %v1075 = vadd.f32 0.0, %v1074
      %1076 = vmatmul.f32.gmra.mxu0 %v1007
      %v1077 = vpop.f32.mrf.mxu0
      %v1078 = vadd.f32 0.0, %v1077
      %1079 = vmatmul.f32.gmra.mxu0 %v1010
      %v1080 = vpop.f32.mrf.mxu0
      %v1081 = vadd.f32 0.0, %v1080
      %1082 = vmatmul.f32.gmra.mxu0 %v1013
      %v1083 = vpop.f32.mrf.mxu0
      %v1084 = vadd.f32 0.0, %v1083
      %1085 = vmatmul.f32.gmra.mxu0 %v1016
      %v1086 = vpop.f32.mrf.mxu0
      %v1087 = vadd.f32 0.0, %v1086
      %1088 = vmatmul.f32.gmra.mxu0 %v1019
      %v1089 = vpop.f32.mrf.mxu0
      %v1090 = vadd.f32 0.0, %v1089
      %1091 = vmatmul.f32.gmra.mxu0 %v1022
      %v1092 = vpop.f32.mrf.mxu0
      %v1093 = vadd.f32 0.0, %v1092
      %1094 = vmatmul.f32.gmra.mxu0 %v1025
      %v1095 = vpop.f32.mrf.mxu0
      %v1096 = vadd.f32 0.0, %v1095
      %1097 = vmatmul.f32.gmra.mxu0 %v1028
      %v1098 = vpop.f32.mrf.mxu0
      %v1099 = vadd.f32 0.0, %v1098
      %1100 = vmatmul.f32.gmra.mxu0 %v1031
      %v1101 = vpop.f32.mrf.mxu0
      %v1102 = vadd.f32 0.0, %v1101
      %1103 = vdwg.mxu0
      %1104 = vmatpush.msra.mxu0 0.0
      %1105 = vmatpush.msra.mxu0 0.0
      %1106 = vmatpush.msra.mxu0 0.0
      %1107 = vmatpush.msra.mxu0 0.0
      %1108 = vmatpush.msra.mxu0 %v977
      %1109 = vmatpush.msra.mxu0 %v975
      %1110 = vmatpush.msra.mxu0 %v973
      %1111 = vmatpush.msra.mxu0 %v971
      %1112 = vmatpush.msra.mxu0 %v969
      %1113 = vmatpush.msra.mxu0 %v967
      %1114 = vmatpush.msra.mxu0 %v965
      %1115 = vmatpush.msra.mxu0 %v963
      %1116 = vmatpush.msra.mxu0 %v961
      %1117 = vmatpush.msra.mxu0 %v959
      %1118 = vmatpush.msra.mxu0 %v957
      %1119 = vmatpush.msra.mxu0 %v955
      %1120 = vmatmul.f32.gmra.mxu0 %v980
      %v1121 = vpop.f32.mrf.mxu0
      %v1122 = vadd.f32 0.0, %v1121
      %1123 = vmatmul.f32.gmra.mxu0 %v983
      %v1124 = vpop.f32.mrf.mxu0
      %v1125 = vadd.f32 0.0, %v1124
      %1126 = vmatmul.f32.gmra.mxu0 %v986
      %v1127 = vpop.f32.mrf.mxu0
      %v1128 = vadd.f32 0.0, %v1127
      %1129 = vmatmul.f32.gmra.mxu0 %v989
      %v1130 = vpop.f32.mrf.mxu0
      %v1131 = vadd.f32 0.0, %v1130
      %1132 = vmatmul.f32.gmra.mxu0 %v992
      %v1133 = vpop.f32.mrf.mxu0
      %v1134 = vadd.f32 0.0, %v1133
      %1135 = vmatmul.f32.gmra.mxu0 %v995
      %v1136 = vpop.f32.mrf.mxu0
      %v1137 = vadd.f32 0.0, %v1136
      %1138 = vmatmul.f32.gmra.mxu0 %v998
      %v1139 = vpop.f32.mrf.mxu0
      %v1140 = vadd.f32 0.0, %v1139
      %1141 = vmatmul.f32.gmra.mxu0 %v1001
      %v1142 = vpop.f32.mrf.mxu0
      %v1143 = vadd.f32 0.0, %v1142
      %1144 = vmatmul.f32.gmra.mxu0 %v1004
      %v1145 = vpop.f32.mrf.mxu0
      %v1146 = vadd.f32 0.0, %v1145
      %1147 = vmatmul.f32.gmra.mxu0 %v1007
      %v1148 = vpop.f32.mrf.mxu0
      %v1149 = vadd.f32 0.0, %v1148
      %1150 = vmatmul.f32.gmra.mxu0 %v1010
      %v1151 = vpop.f32.mrf.mxu0
      %v1152 = vadd.f32 0.0, %v1151
      %1153 = vmatmul.f32.gmra.mxu0 %v1013
      %v1154 = vpop.f32.mrf.mxu0
      %v1155 = vadd.f32 0.0, %v1154
      %1156 = vmatmul.f32.gmra.mxu0 %v1016
      %v1157 = vpop.f32.mrf.mxu0
      %v1158 = vadd.f32 0.0, %v1157
      %1159 = vmatmul.f32.gmra.mxu0 %v1019
      %v1160 = vpop.f32.mrf.mxu0
      %v1161 = vadd.f32 0.0, %v1160
      %1162 = vmatmul.f32.gmra.mxu0 %v1022
      %v1163 = vpop.f32.mrf.mxu0
      %v1164 = vadd.f32 0.0, %v1163
      %1165 = vmatmul.f32.gmra.mxu0 %v1025
      %v1166 = vpop.f32.mrf.mxu0
      %v1167 = vadd.f32 0.0, %v1166
      %1168 = vmatmul.f32.gmra.mxu0 %v1028
      %v1169 = vpop.f32.mrf.mxu0
      %v1170 = vadd.f32 0.0, %v1169
      %1171 = vmatmul.f32.gmra.mxu0 %v1031
      %v1172 = vpop.f32.mrf.mxu0
      %v1173 = vadd.f32 0.0, %v1172
      %1174 = vdwg.mxu0
      %v1175 = vld [vmem:[%s755] sm:$0xff]
      %v1176 = vld [vmem:[%s755 + $0x8] sm:$0xff]
      %v1177 = vld [vmem:[%s755 + $0x10] sm:$0xff]
      %v1178 = vld [vmem:[%s755 + $0x18] sm:$0xff]
      %v1179 = vld [vmem:[%s755 + $0x20] sm:$0xff]
      %v1180 = vld [vmem:[%s755 + $0x28] sm:$0xff]
      %v1181 = vld [vmem:[%s755 + $0x30] sm:$0xff]
      %v1182 = vld [vmem:[%s755 + $0x38] sm:$0xff]
      %v1183 = vld [vmem:[%s755 + $0x40] sm:$0xff]
      %v1184 = vld [vmem:[%s755 + $0x48] sm:$0xff]
      %v1185 = vld [vmem:[%s755 + $0x50] sm:$0xff]
      %v1186 = vld [vmem:[%s755 + $0x58] sm:$0xff]
      %v1187 = vld [vmem:[%s755 + $0x60] sm:$0xff]
      %v1188 = vld [vmem:[%s755 + $0x68] sm:$0xff]
      %v1189 = vld [vmem:[%s755 + $0x70] sm:$0xff]
      %v1190 = vld [vmem:[%s755 + $0x78] sm:$0xff]
      %v1191 = vld [vmem:[%s755 + $0x80] sm:$0xff]
      %v1192 = vld [vmem:[%s755 + $0x88] sm:$0xff]
      %v1193 = vld [vmem:[%s755 + $0x90] sm:$0xff]
      %v1194 = vld [vmem:[%s755 + $0x98] sm:$0xff]
      %v1195 = vld [vmem:[%s755 + $0xa0] sm:$0xff]
      %v1196 = vld [vmem:[%s755 + $0xa8] sm:$0xff]
      %v1197 = vld [vmem:[%s755 + $0xb0] sm:$0xff]
      %v1198 = vld [vmem:[%s755 + $0xb8] sm:$0xff]
      %v1199 = vld [vmem:[%s755 + $0xc0] sm:$0xff]
      %v1200 = vld [vmem:[%s755 + $0xc8] sm:$0xff]
      %v1201 = vld [vmem:[%s755 + $0xd0] sm:$0x3]
      %s1202 = scalar_lea.vmem %s755, 216
      %v1203 = vld [vmem:[%s1202] sm:$0xff]
      %v1204 = vld [vmem:[%s1202 + $0x8] sm:$0xff]
      %v1205 = vld [vmem:[%s1202 + $0x10] sm:$0xff]
      %v1206 = vld [vmem:[%s1202 + $0x18] sm:$0xff]
      %v1207 = vld [vmem:[%s1202 + $0x20] sm:$0xff]
      %v1208 = vld [vmem:[%s1202 + $0x28] sm:$0xff]
      %v1209 = vld [vmem:[%s1202 + $0x30] sm:$0xff]
      %v1210 = vld [vmem:[%s1202 + $0x38] sm:$0xff]
      %v1211 = vld [vmem:[%s1202 + $0x40] sm:$0xff]
      %v1212 = vld [vmem:[%s1202 + $0x48] sm:$0xff]
      %v1213 = vld [vmem:[%s1202 + $0x50] sm:$0xff]
      %v1214 = vld [vmem:[%s1202 + $0x58] sm:$0xff]
      %v1215 = vld [vmem:[%s1202 + $0x60] sm:$0xff]
      %v1216 = vld [vmem:[%s1202 + $0x68] sm:$0xff]
      %v1217 = vld [vmem:[%s1202 + $0x70] sm:$0xff]
      %v1218 = vld [vmem:[%s1202 + $0x78] sm:$0xff]
      %v1219 = vld [vmem:[%s1202 + $0x80] sm:$0xff]
      %v1220 = vld [vmem:[%s1202 + $0x88] sm:$0xff]
      %v1221 = vld [vmem:[%s1202 + $0x90] sm:$0xff]
      %v1222 = vld [vmem:[%s1202 + $0x98] sm:$0xff]
      %v1223 = vld [vmem:[%s1202 + $0xa0] sm:$0xff]
      %v1224 = vld [vmem:[%s1202 + $0xa8] sm:$0xff]
      %v1225 = vld [vmem:[%s1202 + $0xb0] sm:$0xff]
      %v1226 = vld [vmem:[%s1202 + $0xb8] sm:$0xff]
      %v1227 = vld [vmem:[%s1202 + $0xc0] sm:$0xff]
      %v1228 = vld [vmem:[%s1202 + $0xc8] sm:$0xff]
      %v1229 = vld [vmem:[%s1202 + $0xd0] sm:$0x3]
      %vm1238 = vcmask 1043456
      %v1239 = vrot.slane %v1060, 4
      %v1240 = vrot.slane %v1063, 4
      %v1241 = vsel %vm1238, %v1239, %v1240
      %v1242 = vrot.slane %v1131, 4
      %v1243 = vrot.slane %v1134, 4
      %v1244 = vsel %vm1238, %v1242, %v1243
      %v1245 = vrot.slane %v1066, 4
      %v1246 = vsel %vm1238, %v1240, %v1245
      %v1247 = vrot.slane %v1137, 4
      %v1248 = vsel %vm1238, %v1243, %v1247
      %v1249 = vrot.slane %v1069, 4
      %v1250 = vsel %vm1238, %v1245, %v1249
      %v1251 = vrot.slane %v1140, 4
      %v1252 = vsel %vm1238, %v1247, %v1251
      %vm1257 = vcmask 670720
      %v1258 = vsel %vm1257, %v1244, 0
      %v1260 = vsel %vm1257, %v1248, 0
      %v1262 = vsel %vm1257, %v1252, 0
      %v1264 = vsel %vm1257, %v1251, 0
      %vm1266 = vcmask 1041408
      %v1268 = vsel %vm1266, %v1229, 0
      %1270 = vmatpush.msra.mxu0 %v1218
      %1271 = vmatpush.msra.mxu0 %v1217
      %1272 = vmatpush.msra.mxu0 %v1216
      %1273 = vmatpush.msra.mxu0 %v1215
      %1274 = vmatpush.msra.mxu0 %v1214
      %1275 = vmatpush.msra.mxu0 %v1213
      %1276 = vmatpush.msra.mxu0 %v1212
      %1277 = vmatpush.msra.mxu0 %v1211
      %1278 = vmatpush.msra.mxu0 %v1210
      %1279 = vmatpush.msra.mxu0 %v1209
      %1280 = vmatpush.msra.mxu0 %v1208
      %1281 = vmatpush.msra.mxu0 %v1207
      %1282 = vmatpush.msra.mxu0 %v1206
      %1283 = vmatpush.msra.mxu0 %v1205
      %1284 = vmatpush.msra.mxu0 %v1204
      %1285 = vmatpush.msra.mxu0 %v1203
      %1286 = vmatmul.f32.gmra.mxu0 %v1241
      %v1287 = vpop.f32.mrf.mxu0
      %v1288 = vadd.f32 0.0, %v1287
      %1289 = vmatmul.f32.gmra.mxu0 %v1246
      %v1290 = vpop.f32.mrf.mxu0
      %v1291 = vadd.f32 0.0, %v1290
      %1292 = vmatmul.f32.gmra.mxu0 %v1250
      %v1293 = vpop.f32.mrf.mxu0
      %v1294 = vadd.f32 0.0, %v1293
      %1295 = vmatmul.f32.gmra.mxu0 %v1249
      %v1296 = vpop.f32.mrf.mxu0
      %v1297 = vadd.f32 0.0, %v1296
      %1298 = vdwg.mxu0
      %1299 = vmatpush.msra.mxu0 0.0
      %1300 = vmatpush.msra.mxu0 0.0
      %1301 = vmatpush.msra.mxu0 0.0
      %1302 = vmatpush.msra.mxu0 0.0
      %1303 = vmatpush.msra.mxu0 0.0
      %1304 = vmatpush.msra.mxu0 %v1268
      %1305 = vmatpush.msra.mxu0 %v1228
      %1306 = vmatpush.msra.mxu0 %v1227
      %1307 = vmatpush.msra.mxu0 %v1226
      %1308 = vmatpush.msra.mxu0 %v1225
      %1309 = vmatpush.msra.mxu0 %v1224
      %1310 = vmatpush.msra.mxu0 %v1223
      %1311 = vmatpush.msra.mxu0 %v1222
      %1312 = vmatpush.msra.mxu0 %v1221
      %1313 = vmatpush.msra.mxu0 %v1220
      %1314 = vmatpush.msra.mxu0 %v1219
      %1315 = vmatmul.f32.gmra.mxu0 %v1258
      %v1316 = vpop.f32.mrf.mxu0
      %v1317 = vadd.f32 %v1288, %v1316
      %1318 = vmatmul.f32.gmra.mxu0 %v1260
      %v1319 = vpop.f32.mrf.mxu0
      %v1320 = vadd.f32 %v1291, %v1319
      %1321 = vmatmul.f32.gmra.mxu0 %v1262
      %v1322 = vpop.f32.mrf.mxu0
      %v1323 = vadd.f32 %v1294, %v1322
      %1324 = vmatmul.f32.gmra.mxu0 %v1264
      %v1325 = vpop.f32.mrf.mxu0
      %v1326 = vadd.f32 %v1297, %v1325
      %1327 = vdwg.mxu0
      %v1329 = vsel %vm1257, %v1122, 0
      %v1332 = vsel %vm1257, %v1125, 0
      %v1335 = vsel %vm1257, %v1128, 0
      %v1337 = vsel %vm1257, %v1131, 0
      %v1340 = vsel %vm1266, %v1201, 0
      %1342 = vmatpush.msra.mxu0 %v1190
      %1343 = vmatpush.msra.mxu0 %v1189
      %1344 = vmatpush.msra.mxu0 %v1188
      %1345 = vmatpush.msra.mxu0 %v1187
      %1346 = vmatpush.msra.mxu0 %v1186
      %1347 = vmatpush.msra.mxu0 %v1185
      %1348 = vmatpush.msra.mxu0 %v1184
      %1349 = vmatpush.msra.mxu0 %v1183
      %1350 = vmatpush.msra.mxu0 %v1182
      %1351 = vmatpush.msra.mxu0 %v1181
      %1352 = vmatpush.msra.mxu0 %v1180
      %1353 = vmatpush.msra.mxu0 %v1179
      %1354 = vmatpush.msra.mxu0 %v1178
      %1355 = vmatpush.msra.mxu0 %v1177
      %1356 = vmatpush.msra.mxu0 %v1176
      %1357 = vmatpush.msra.mxu0 %v1175
      %1358 = vmatmul.f32.gmra.mxu0 %v1051
      %v1359 = vpop.f32.mrf.mxu0
      %v1360 = vadd.f32 %v1317, %v1359
      %1361 = vmatmul.f32.gmra.mxu0 %v1054
      %v1362 = vpop.f32.mrf.mxu0
      %v1363 = vadd.f32 %v1320, %v1362
      %1364 = vmatmul.f32.gmra.mxu0 %v1057
      %v1365 = vpop.f32.mrf.mxu0
      %v1366 = vadd.f32 %v1323, %v1365
      %1367 = vmatmul.f32.gmra.mxu0 %v1060
      %v1368 = vpop.f32.mrf.mxu0
      %v1369 = vadd.f32 %v1326, %v1368
      %1370 = vdwg.mxu0
      %1371 = vmatpush.msra.mxu0 0.0
      %1372 = vmatpush.msra.mxu0 0.0
      %1373 = vmatpush.msra.mxu0 0.0
      %1374 = vmatpush.msra.mxu0 0.0
      %1375 = vmatpush.msra.mxu0 0.0
      %1376 = vmatpush.msra.mxu0 %v1340
      %1377 = vmatpush.msra.mxu0 %v1200
      %1378 = vmatpush.msra.mxu0 %v1199
      %1379 = vmatpush.msra.mxu0 %v1198
      %1380 = vmatpush.msra.mxu0 %v1197
      %1381 = vmatpush.msra.mxu0 %v1196
      %1382 = vmatpush.msra.mxu0 %v1195
      %1383 = vmatpush.msra.mxu0 %v1194
      %1384 = vmatpush.msra.mxu0 %v1193
      %1385 = vmatpush.msra.mxu0 %v1192
      %1386 = vmatpush.msra.mxu0 %v1191
      %1387 = vmatmul.f32.gmra.mxu0 %v1329
      %v1388 = vpop.f32.mrf.mxu0
      %v1389 = vadd.f32 %v1360, %v1388
      %1390 = vmatmul.f32.gmra.mxu0 %v1332
      %v1391 = vpop.f32.mrf.mxu0
      %v1392 = vadd.f32 %v1363, %v1391
      %1393 = vmatmul.f32.gmra.mxu0 %v1335
      %v1394 = vpop.f32.mrf.mxu0
      %v1395 = vadd.f32 %v1366, %v1394
      %1396 = vmatmul.f32.gmra.mxu0 %v1337
      %v1397 = vpop.f32.mrf.mxu0
      %v1398 = vadd.f32 %v1369, %v1397
      %1399 = vdwg.mxu0
      %s1400 = scalar_lea.vmem %s755, 432
      %v1401 = vld [vmem:[%s1400] sm:$0xff]
      %v1402 = vld [vmem:[%s1400 + $0x8] sm:$0xff]
      %v1403 = vld [vmem:[%s1400 + $0x10] sm:$0xff]
      %v1404 = vld [vmem:[%s1400 + $0x18] sm:$0xff]
      %v1405 = vld [vmem:[%s1400 + $0x20] sm:$0xff]
      %v1406 = vld [vmem:[%s1400 + $0x28] sm:$0xff]
      %v1407 = vld [vmem:[%s1400 + $0x30] sm:$0xff]
      %v1408 = vld [vmem:[%s1400 + $0x38] sm:$0xff]
      %v1409 = vld [vmem:[%s1400 + $0x40] sm:$0xff]
      %v1410 = vld [vmem:[%s1400 + $0x48] sm:$0xff]
      %v1411 = vld [vmem:[%s1400 + $0x50] sm:$0xff]
      %v1412 = vld [vmem:[%s1400 + $0x58] sm:$0xff]
      %v1413 = vld [vmem:[%s1400 + $0x60] sm:$0xff]
      %v1414 = vld [vmem:[%s1400 + $0x68] sm:$0xff]
      %v1415 = vld [vmem:[%s1400 + $0x70] sm:$0xff]
      %v1416 = vld [vmem:[%s1400 + $0x78] sm:$0xff]
      %v1417 = vld [vmem:[%s1400 + $0x80] sm:$0xff]
      %v1418 = vld [vmem:[%s1400 + $0x88] sm:$0xff]
      %v1419 = vld [vmem:[%s1400 + $0x90] sm:$0xff]
      %v1420 = vld [vmem:[%s1400 + $0x98] sm:$0xff]
      %v1421 = vld [vmem:[%s1400 + $0xa0] sm:$0xff]
      %v1422 = vld [vmem:[%s1400 + $0xa8] sm:$0xff]
      %v1423 = vld [vmem:[%s1400 + $0xb0] sm:$0xff]
      %v1424 = vld [vmem:[%s1400 + $0xb8] sm:$0xff]
      %v1425 = vld [vmem:[%s1400 + $0xc0] sm:$0xff]
      %v1426 = vld [vmem:[%s1400 + $0xc8] sm:$0xff]
      %v1427 = vld [vmem:[%s1400 + $0xd0] sm:$0x3]
      %v1429 = vsel %vm1257, %v1143, 0
      %v1432 = vsel %vm1257, %v1146, 0
      %v1435 = vsel %vm1257, %v1149, 0
      %v1438 = vsel %vm1257, %v1152, 0
      %v1441 = vsel %vm1266, %v1427, 0
      %1443 = vmatpush.msra.mxu0 %v1416
      %1444 = vmatpush.msra.mxu0 %v1415
      %1445 = vmatpush.msra.mxu0 %v1414
      %1446 = vmatpush.msra.mxu0 %v1413
      %1447 = vmatpush.msra.mxu0 %v1412
      %1448 = vmatpush.msra.mxu0 %v1411
      %1449 = vmatpush.msra.mxu0 %v1410
      %1450 = vmatpush.msra.mxu0 %v1409
      %1451 = vmatpush.msra.mxu0 %v1408
      %1452 = vmatpush.msra.mxu0 %v1407
      %1453 = vmatpush.msra.mxu0 %v1406
      %1454 = vmatpush.msra.mxu0 %v1405
      %1455 = vmatpush.msra.mxu0 %v1404
      %1456 = vmatpush.msra.mxu0 %v1403
      %1457 = vmatpush.msra.mxu0 %v1402
      %1458 = vmatpush.msra.mxu0 %v1401
      %1459 = vmatmul.f32.gmra.mxu0 %v1072
      %v1460 = vpop.f32.mrf.mxu0
      %v1461 = vadd.f32 0.0, %v1460
      %1462 = vmatmul.f32.gmra.mxu0 %v1075
      %v1463 = vpop.f32.mrf.mxu0
      %v1464 = vadd.f32 0.0, %v1463
      %1465 = vmatmul.f32.gmra.mxu0 %v1078
      %v1466 = vpop.f32.mrf.mxu0
      %v1467 = vadd.f32 0.0, %v1466
      %1468 = vmatmul.f32.gmra.mxu0 %v1081
      %v1469 = vpop.f32.mrf.mxu0
      %v1470 = vadd.f32 0.0, %v1469
      %1471 = vdwg.mxu0
      %1472 = vmatpush.msra.mxu0 0.0
      %1473 = vmatpush.msra.mxu0 0.0
      %1474 = vmatpush.msra.mxu0 0.0
      %1475 = vmatpush.msra.mxu0 0.0
      %1476 = vmatpush.msra.mxu0 0.0
      %1477 = vmatpush.msra.mxu0 %v1441
      %1478 = vmatpush.msra.mxu0 %v1426
      %1479 = vmatpush.msra.mxu0 %v1425
      %1480 = vmatpush.msra.mxu0 %v1424
      %1481 = vmatpush.msra.mxu0 %v1423
      %1482 = vmatpush.msra.mxu0 %v1422
      %1483 = vmatpush.msra.mxu0 %v1421
      %1484 = vmatpush.msra.mxu0 %v1420
      %1485 = vmatpush.msra.mxu0 %v1419
      %1486 = vmatpush.msra.mxu0 %v1418
      %1487 = vmatpush.msra.mxu0 %v1417
      %1488 = vmatmul.f32.gmra.mxu0 %v1429
      %v1489 = vpop.f32.mrf.mxu0
      %v1490 = vadd.f32 %v1461, %v1489
      %1491 = vmatmul.f32.gmra.mxu0 %v1432
      %v1492 = vpop.f32.mrf.mxu0
      %v1493 = vadd.f32 %v1464, %v1492
      %1494 = vmatmul.f32.gmra.mxu0 %v1435
      %v1495 = vpop.f32.mrf.mxu0
      %v1496 = vadd.f32 %v1467, %v1495
      %1497 = vmatmul.f32.gmra.mxu0 %v1438
      %v1498 = vpop.f32.mrf.mxu0
      %v1499 = vadd.f32 %v1470, %v1498
      %1500 = vdwg.mxu0
      %v1501 = vadd.f32 %v1389, %v1490
      %v1502 = vadd.f32 %v1392, %v1493
      %v1503 = vadd.f32 %v1395, %v1496
      %v1504 = vadd.f32 %v1398, %v1499
      %s1505 = scalar_lea.vmem %s755, 648
      %v1506 = vld [vmem:[%s1505] sm:$0xff]
      %v1507 = vld [vmem:[%s1505 + $0x8] sm:$0xff]
      %v1508 = vld [vmem:[%s1505 + $0x10] sm:$0xff]
      %v1509 = vld [vmem:[%s1505 + $0x18] sm:$0xff]
      %v1510 = vld [vmem:[%s1505 + $0x20] sm:$0xff]
      %v1511 = vld [vmem:[%s1505 + $0x28] sm:$0xff]
      %v1512 = vld [vmem:[%s1505 + $0x30] sm:$0xff]
      %v1513 = vld [vmem:[%s1505 + $0x38] sm:$0xff]
      %v1514 = vld [vmem:[%s1505 + $0x40] sm:$0xff]
      %v1515 = vld [vmem:[%s1505 + $0x48] sm:$0xff]
      %v1516 = vld [vmem:[%s1505 + $0x50] sm:$0xff]
      %v1517 = vld [vmem:[%s1505 + $0x58] sm:$0xff]
      %v1518 = vld [vmem:[%s1505 + $0x60] sm:$0xff]
      %v1519 = vld [vmem:[%s1505 + $0x68] sm:$0xff]
      %v1520 = vld [vmem:[%s1505 + $0x70] sm:$0xff]
      %v1521 = vld [vmem:[%s1505 + $0x78] sm:$0xff]
      %v1522 = vld [vmem:[%s1505 + $0x80] sm:$0xff]
      %v1523 = vld [vmem:[%s1505 + $0x88] sm:$0xff]
      %v1524 = vld [vmem:[%s1505 + $0x90] sm:$0xff]
      %v1525 = vld [vmem:[%s1505 + $0x98] sm:$0xff]
      %v1526 = vld [vmem:[%s1505 + $0xa0] sm:$0xff]
      %v1527 = vld [vmem:[%s1505 + $0xa8] sm:$0xff]
      %v1528 = vld [vmem:[%s1505 + $0xb0] sm:$0xff]
      %v1529 = vld [vmem:[%s1505 + $0xb8] sm:$0xff]
      %v1530 = vld [vmem:[%s1505 + $0xc0] sm:$0xff]
      %v1531 = vld [vmem:[%s1505 + $0xc8] sm:$0xff]
      %v1532 = vld [vmem:[%s1505 + $0xd0] sm:$0x3]
      %v1540 = vrot.slane %v1081, 4
      %v1541 = vrot.slane %v1084, 4
      %v1542 = vsel %vm1238, %v1540, %v1541
      %v1543 = vrot.slane %v1152, 4
      %v1544 = vrot.slane %v1155, 4
      %v1545 = vsel %vm1238, %v1543, %v1544
      %v1546 = vrot.slane %v1087, 4
      %v1547 = vsel %vm1238, %v1541, %v1546
      %v1548 = vrot.slane %v1158, 4
      %v1549 = vsel %vm1238, %v1544, %v1548
      %v1550 = vrot.slane %v1090, 4
      %v1551 = vsel %vm1238, %v1546, %v1550
      %v1552 = vrot.slane %v1161, 4
      %v1553 = vsel %vm1238, %v1548, %v1552
      %v1558 = vsel %vm1257, %v1545, 0
      %v1560 = vsel %vm1257, %v1549, 0
      %v1562 = vsel %vm1257, %v1553, 0
      %v1564 = vsel %vm1257, %v1552, 0
      %v1567 = vsel %vm1266, %v1532, 0
      %1569 = vmatpush.msra.mxu0 %v1521
      %1570 = vmatpush.msra.mxu0 %v1520
      %1571 = vmatpush.msra.mxu0 %v1519
      %1572 = vmatpush.msra.mxu0 %v1518
      %1573 = vmatpush.msra.mxu0 %v1517
      %1574 = vmatpush.msra.mxu0 %v1516
      %1575 = vmatpush.msra.mxu0 %v1515
      %1576 = vmatpush.msra.mxu0 %v1514
      %1577 = vmatpush.msra.mxu0 %v1513
      %1578 = vmatpush.msra.mxu0 %v1512
      %1579 = vmatpush.msra.mxu0 %v1511
      %1580 = vmatpush.msra.mxu0 %v1510
      %1581 = vmatpush.msra.mxu0 %v1509
      %1582 = vmatpush.msra.mxu0 %v1508
      %1583 = vmatpush.msra.mxu0 %v1507
      %1584 = vmatpush.msra.mxu0 %v1506
      %1585 = vmatmul.f32.gmra.mxu0 %v1542
      %v1586 = vpop.f32.mrf.mxu0
      %v1587 = vadd.f32 0.0, %v1586
      %1588 = vmatmul.f32.gmra.mxu0 %v1547
      %v1589 = vpop.f32.mrf.mxu0
      %v1590 = vadd.f32 0.0, %v1589
      %1591 = vmatmul.f32.gmra.mxu0 %v1551
      %v1592 = vpop.f32.mrf.mxu0
      %v1593 = vadd.f32 0.0, %v1592
      %1594 = vmatmul.f32.gmra.mxu0 %v1550
      %v1595 = vpop.f32.mrf.mxu0
      %v1596 = vadd.f32 0.0, %v1595
      %1597 = vdwg.mxu0
      %1598 = vmatpush.msra.mxu0 0.0
      %1599 = vmatpush.msra.mxu0 0.0
      %1600 = vmatpush.msra.mxu0 0.0
      %1601 = vmatpush.msra.mxu0 0.0
      %1602 = vmatpush.msra.mxu0 0.0
      %1603 = vmatpush.msra.mxu0 %v1567
      %1604 = vmatpush.msra.mxu0 %v1531
      %1605 = vmatpush.msra.mxu0 %v1530
      %1606 = vmatpush.msra.mxu0 %v1529
      %1607 = vmatpush.msra.mxu0 %v1528
      %1608 = vmatpush.msra.mxu0 %v1527
      %1609 = vmatpush.msra.mxu0 %v1526
      %1610 = vmatpush.msra.mxu0 %v1525
      %1611 = vmatpush.msra.mxu0 %v1524
      %1612 = vmatpush.msra.mxu0 %v1523
      %1613 = vmatpush.msra.mxu0 %v1522
      %1614 = vmatmul.f32.gmra.mxu0 %v1558
      %v1615 = vpop.f32.mrf.mxu0
      %v1616 = vadd.f32 %v1587, %v1615
      %1617 = vmatmul.f32.gmra.mxu0 %v1560
      %v1618 = vpop.f32.mrf.mxu0
      %v1619 = vadd.f32 %v1590, %v1618
      %1620 = vmatmul.f32.gmra.mxu0 %v1562
      %v1621 = vpop.f32.mrf.mxu0
      %v1622 = vadd.f32 %v1593, %v1621
      %1623 = vmatmul.f32.gmra.mxu0 %v1564
      %v1624 = vpop.f32.mrf.mxu0
      %v1625 = vadd.f32 %v1596, %v1624
      %1626 = vdwg.mxu0
      %v1627 = vadd.f32 %v1501, %v1616
      %v1628 = vadd.f32 %v1502, %v1619
      %v1629 = vadd.f32 %v1503, %v1622
      %v1630 = vadd.f32 %v1504, %v1625
      %s1631 = scalar_lea.vmem %s755, 864
      %v1632 = vld [vmem:[%s1631] sm:$0xff]
      %v1633 = vld [vmem:[%s1631 + $0x8] sm:$0xff]
      %v1634 = vld [vmem:[%s1631 + $0x10] sm:$0xff]
      %v1635 = vld [vmem:[%s1631 + $0x18] sm:$0xff]
      %v1636 = vld [vmem:[%s1631 + $0x20] sm:$0xff]
      %v1637 = vld [vmem:[%s1631 + $0x28] sm:$0xff]
      %v1638 = vld [vmem:[%s1631 + $0x30] sm:$0xff]
      %v1639 = vld [vmem:[%s1631 + $0x38] sm:$0xff]
      %v1640 = vld [vmem:[%s1631 + $0x40] sm:$0xff]
      %v1641 = vld [vmem:[%s1631 + $0x48] sm:$0xff]
      %v1642 = vld [vmem:[%s1631 + $0x50] sm:$0xff]
      %v1643 = vld [vmem:[%s1631 + $0x58] sm:$0xff]
      %v1644 = vld [vmem:[%s1631 + $0x60] sm:$0xff]
      %v1645 = vld [vmem:[%s1631 + $0x68] sm:$0xff]
      %v1646 = vld [vmem:[%s1631 + $0x70] sm:$0xff]
      %v1647 = vld [vmem:[%s1631 + $0x78] sm:$0xff]
      %v1648 = vld [vmem:[%s1631 + $0x80] sm:$0xff]
      %v1649 = vld [vmem:[%s1631 + $0x88] sm:$0xff]
      %v1650 = vld [vmem:[%s1631 + $0x90] sm:$0xff]
      %v1651 = vld [vmem:[%s1631 + $0x98] sm:$0xff]
      %v1652 = vld [vmem:[%s1631 + $0xa0] sm:$0xff]
      %v1653 = vld [vmem:[%s1631 + $0xa8] sm:$0xff]
      %v1654 = vld [vmem:[%s1631 + $0xb0] sm:$0xff]
      %v1655 = vld [vmem:[%s1631 + $0xb8] sm:$0xff]
      %v1656 = vld [vmem:[%s1631 + $0xc0] sm:$0xff]
      %v1657 = vld [vmem:[%s1631 + $0xc8] sm:$0xff]
      %v1658 = vld [vmem:[%s1631 + $0xd0] sm:$0x3]
      %v1660 = vsel %vm1257, %v1164, 0
      %v1663 = vsel %vm1257, %v1167, 0
      %v1666 = vsel %vm1257, %v1170, 0
      %v1669 = vsel %vm1257, %v1173, 0
      %v1672 = vsel %vm1266, %v1658, 0
      %1674 = vmatpush.msra.mxu0 %v1647
      %1675 = vmatpush.msra.mxu0 %v1646
      %1676 = vmatpush.msra.mxu0 %v1645
      %1677 = vmatpush.msra.mxu0 %v1644
      %1678 = vmatpush.msra.mxu0 %v1643
      %1679 = vmatpush.msra.mxu0 %v1642
      %1680 = vmatpush.msra.mxu0 %v1641
      %1681 = vmatpush.msra.mxu0 %v1640
      %1682 = vmatpush.msra.mxu0 %v1639
      %1683 = vmatpush.msra.mxu0 %v1638
      %1684 = vmatpush.msra.mxu0 %v1637
      %1685 = vmatpush.msra.mxu0 %v1636
      %1686 = vmatpush.msra.mxu0 %v1635
      %1687 = vmatpush.msra.mxu0 %v1634
      %1688 = vmatpush.msra.mxu0 %v1633
      %1689 = vmatpush.msra.mxu0 %v1632
      %1690 = vmatmul.f32.gmra.mxu0 %v1093
      %v1691 = vpop.f32.mrf.mxu0
      %v1692 = vadd.f32 0.0, %v1691
      %1693 = vmatmul.f32.gmra.mxu0 %v1096
      %v1694 = vpop.f32.mrf.mxu0
      %v1695 = vadd.f32 0.0, %v1694
      %1696 = vmatmul.f32.gmra.mxu0 %v1099
      %v1697 = vpop.f32.mrf.mxu0
      %v1698 = vadd.f32 0.0, %v1697
      %1699 = vmatmul.f32.gmra.mxu0 %v1102
      %v1700 = vpop.f32.mrf.mxu0
      %v1701 = vadd.f32 0.0, %v1700
      %1702 = vdwg.mxu0
      %1703 = vmatpush.msra.mxu0 0.0
      %1704 = vmatpush.msra.mxu0 0.0
      %1705 = vmatpush.msra.mxu0 0.0
      %1706 = vmatpush.msra.mxu0 0.0
      %1707 = vmatpush.msra.mxu0 0.0
      %1708 = vmatpush.msra.mxu0 %v1672
      %1709 = vmatpush.msra.mxu0 %v1657
      %1710 = vmatpush.msra.mxu0 %v1656
      %1711 = vmatpush.msra.mxu0 %v1655
      %1712 = vmatpush.msra.mxu0 %v1654
      %1713 = vmatpush.msra.mxu0 %v1653
      %1714 = vmatpush.msra.mxu0 %v1652
      %1715 = vmatpush.msra.mxu0 %v1651
      %1716 = vmatpush.msra.mxu0 %v1650
      %1717 = vmatpush.msra.mxu0 %v1649
      %1718 = vmatpush.msra.mxu0 %v1648
      %1719 = vmatmul.f32.gmra.mxu0 %v1660
      %v1720 = vpop.f32.mrf.mxu0
      %v1721 = vadd.f32 %v1692, %v1720
      %1722 = vmatmul.f32.gmra.mxu0 %v1663
      %v1723 = vpop.f32.mrf.mxu0
      %v1724 = vadd.f32 %v1695, %v1723
      %1725 = vmatmul.f32.gmra.mxu0 %v1666
      %v1726 = vpop.f32.mrf.mxu0
      %v1727 = vadd.f32 %v1698, %v1726
      %1728 = vmatmul.f32.gmra.mxu0 %v1669
      %v1729 = vpop.f32.mrf.mxu0
      %v1730 = vadd.f32 %v1701, %v1729
      %1731 = vdwg.mxu0
      %v1732 = vadd.f32 %v1627, %v1721
      %v1733 = vadd.f32 %v1628, %v1724
      %v1734 = vadd.f32 %v1629, %v1727
      %v1735 = vadd.f32 %v1630, %v1730
      %v1736 = vld [vmem:[%s768] sm:$0x1]
      %v1738 = vperm.slane %v1736, 0
      %v1740 = vadd.f32 %v1732, %v1738
      %v1741 = vadd.f32 %v1733, %v1738
      %v1742 = vadd.f32 %v1734, %v1738
      %v1743 = vadd.f32 %v1735, %v1738
      %v1744 = vmax.f32 %v1740, 0.0
      %v1745 = vmax.f32 %v1741, 0.0
      %v1746 = vmax.f32 %v1742, 0.0
      %v1747 = vmax.f32 %v1743, 0.0
      %v1748 = vld [vmem:[%s2] sm:$0xff]
      %v1749 = vld [vmem:[%s2 + $0x8] sm:$0xff]
      %v1750 = vld [vmem:[%s2 + $0x10] sm:$0xff]
      %v1751 = vld [vmem:[%s2 + $0x18] sm:$0xff]
      %v1752 = vld [vmem:[%s2 + $0x20] sm:$0xff]
      %v1753 = vld [vmem:[%s2 + $0x28] sm:$0xff]
      %v1754 = vld [vmem:[%s2 + $0x30] sm:$0x3]
      %vm1755 = vcmask 228352
      %v1757 = vsel %vm1755, %v1748, 0
      %v1760 = vsel %vm1755, %v1749, 0
      %v1763 = vsel %vm1755, %v1750, 0
      %v1766 = vsel %vm1755, %v1751, 0
      %v1769 = vsel %vm1755, %v1752, 0
      %v1772 = vsel %vm1755, %v1753, 0
      %v1775 = vsel %vm1755, %v1754, 0
      %v1778 = vsel %vm1238, %v1747, 0
      %1780 = vmatpush.msra.mxu0 0.0
      %1781 = vmatpush.msra.mxu0 0.0
      %1782 = vmatpush.msra.mxu0 0.0
      %1783 = vmatpush.msra.mxu0 0.0
      %1784 = vmatpush.msra.mxu0 0.0
      %1785 = vmatpush.msra.mxu0 0.0
      %1786 = vmatpush.msra.mxu0 0.0
      %1787 = vmatpush.msra.mxu0 0.0
      %1788 = vmatpush.msra.mxu0 0.0
      %1789 = vmatpush.msra.mxu0 0.0
      %1790 = vmatpush.msra.mxu0 0.0
      %1791 = vmatpush.msra.mxu0 0.0
      %1792 = vmatpush.msra.mxu0 %v1778
      %1793 = vmatpush.msra.mxu0 %v1746
      %1794 = vmatpush.msra.mxu0 %v1745
      %1795 = vmatpush.msra.mxu0 %v1744
      %1796 = vmatmul.f32.gmra.mxu0 %v1757
      %v1797 = vpop.f32.mrf.mxu0
      %v1798 = vadd.f32 0.0, %v1797
      %1799 = vmatmul.f32.gmra.mxu0 %v1760
      %v1800 = vpop.f32.mrf.mxu0
      %v1801 = vadd.f32 0.0, %v1800
      %1802 = vmatmul.f32.gmra.mxu0 %v1763
      %v1803 = vpop.f32.mrf.mxu0
      %v1804 = vadd.f32 0.0, %v1803
      %1805 = vmatmul.f32.gmra.mxu0 %v1766
      %v1806 = vpop.f32.mrf.mxu0
      %v1807 = vadd.f32 0.0, %v1806
      %1808 = vmatmul.f32.gmra.mxu0 %v1769
      %v1809 = vpop.f32.mrf.mxu0
      %v1810 = vadd.f32 0.0, %v1809
      %1811 = vmatmul.f32.gmra.mxu0 %v1772
      %v1812 = vpop.f32.mrf.mxu0
      %v1813 = vadd.f32 0.0, %v1812
      %1814 = vmatmul.f32.gmra.mxu0 %v1775
      %v1815 = vpop.f32.mrf.mxu0
      %v1816 = vadd.f32 0.0, %v1815
      %1817 = vdwg.mxu0
      %v1818 = vld [vmem:[%s5] sm:$0xff]
      %v1819 = vld [vmem:[%s5 + $0x8] sm:$0xff]
      %v1820 = vld [vmem:[%s5 + $0x10] sm:$0xff]
      %v1821 = vld [vmem:[%s5 + $0x18] sm:$0xff]
      %v1822 = vld [vmem:[%s5 + $0x20] sm:$0xff]
      %v1823 = vld [vmem:[%s5 + $0x28] sm:$0xff]
      %v1824 = vld [vmem:[%s5 + $0x30] sm:$0xff]
      %v1825 = vld [vmem:[%s5 + $0x38] sm:$0xff]
      %v1826 = vld [vmem:[%s5 + $0x40] sm:$0xff]
      %v1827 = vld [vmem:[%s5 + $0x48] sm:$0xff]
      %v1828 = vld [vmem:[%s5 + $0x50] sm:$0xff]
      %v1829 = vld [vmem:[%s5 + $0x58] sm:$0xff]
      %v1830 = vld [vmem:[%s5 + $0x60] sm:$0xff]
      %v1831 = vld [vmem:[%s5 + $0x68] sm:$0xff]
      %v1832 = vld [vmem:[%s5 + $0x70] sm:$0xff]
      %v1833 = vld [vmem:[%s5 + $0x78] sm:$0xff]
      %v1834 = vld [vmem:[%s5 + $0x80] sm:$0xff]
      %v1835 = vld [vmem:[%s5 + $0x88] sm:$0xff]
      %v1836 = vld [vmem:[%s5 + $0x90] sm:$0xff]
      %v1837 = vld [vmem:[%s5 + $0x98] sm:$0xff]
      %v1838 = vld [vmem:[%s5 + $0xa0] sm:$0xff]
      %v1839 = vld [vmem:[%s5 + $0xa8] sm:$0xff]
      %v1840 = vld [vmem:[%s5 + $0xb0] sm:$0xff]
      %v1841 = vld [vmem:[%s5 + $0xb8] sm:$0xff]
      %v1842 = vld [vmem:[%s5 + $0xc0] sm:$0xff]
      %v1843 = vld [vmem:[%s5 + $0xc8] sm:$0xff]
      %v1844 = vld [vmem:[%s5 + $0xd0] sm:$0xff]
      %v1845 = vld [vmem:[%s5 + $0xd8] sm:$0xff]
      %vm1846 = vcmask 916480
      %v1848 = vsel %vm1846, %v1798, 0
      %v1851 = vsel %vm1846, %v1801, 0
      %v1854 = vsel %vm1846, %v1804, 0
      %v1857 = vsel %vm1846, %v1807, 0
      %v1860 = vsel %vm1846, %v1810, 0
      %v1863 = vsel %vm1846, %v1813, 0
      %v1866 = vsel %vm1846, %v1816, 0
      %1868 = vmatpush.msra.mxu0 0.0
      %1869 = vmatpush.msra.mxu0 0.0
      %1870 = vmatpush.msra.mxu0 %v1844
      %1871 = vmatpush.msra.mxu0 %v1842
      %1872 = vmatpush.msra.mxu0 %v1840
      %1873 = vmatpush.msra.mxu0 %v1838
      %1874 = vmatpush.msra.mxu0 %v1836
      %1875 = vmatpush.msra.mxu0 %v1834
      %1876 = vmatpush.msra.mxu0 %v1832
      %1877 = vmatpush.msra.mxu0 %v1830
      %1878 = vmatpush.msra.mxu0 %v1828
      %1879 = vmatpush.msra.mxu0 %v1826
      %1880 = vmatpush.msra.mxu0 %v1824
      %1881 = vmatpush.msra.mxu0 %v1822
      %1882 = vmatpush.msra.mxu0 %v1820
      %1883 = vmatpush.msra.mxu0 %v1818
      %1884 = vmatmul.f32.gmra.mxu0 %v1848
      %v1885 = vpop.f32.mrf.mxu0
      %v1886 = vadd.f32 0.0, %v1885
      %1887 = vmatmul.f32.gmra.mxu0 %v1851
      %v1888 = vpop.f32.mrf.mxu0
      %v1889 = vadd.f32 0.0, %v1888
      %1890 = vmatmul.f32.gmra.mxu0 %v1854
      %v1891 = vpop.f32.mrf.mxu0
      %v1892 = vadd.f32 0.0, %v1891
      %1893 = vmatmul.f32.gmra.mxu0 %v1857
      %v1894 = vpop.f32.mrf.mxu0
      %v1895 = vadd.f32 0.0, %v1894
      %1896 = vmatmul.f32.gmra.mxu0 %v1860
      %v1897 = vpop.f32.mrf.mxu0
      %v1898 = vadd.f32 0.0, %v1897
      %1899 = vmatmul.f32.gmra.mxu0 %v1863
      %v1900 = vpop.f32.mrf.mxu0
      %v1901 = vadd.f32 0.0, %v1900
      %1902 = vmatmul.f32.gmra.mxu0 %v1866
      %v1903 = vpop.f32.mrf.mxu0
      %v1904 = vadd.f32 0.0, %v1903
      %1905 = vdwg.mxu0
      %1906 = vmatpush.msra.mxu0 0.0
      %1907 = vmatpush.msra.mxu0 0.0
      %1908 = vmatpush.msra.mxu0 %v1845
      %1909 = vmatpush.msra.mxu0 %v1843
      %1910 = vmatpush.msra.mxu0 %v1841
      %1911 = vmatpush.msra.mxu0 %v1839
      %1912 = vmatpush.msra.mxu0 %v1837
      %1913 = vmatpush.msra.mxu0 %v1835
      %1914 = vmatpush.msra.mxu0 %v1833
      %1915 = vmatpush.msra.mxu0 %v1831
      %1916 = vmatpush.msra.mxu0 %v1829
      %1917 = vmatpush.msra.mxu0 %v1827
      %1918 = vmatpush.msra.mxu0 %v1825
      %1919 = vmatpush.msra.mxu0 %v1823
      %1920 = vmatpush.msra.mxu0 %v1821
      %1921 = vmatpush.msra.mxu0 %v1819
      %1922 = vmatmul.f32.gmra.mxu0 %v1848
      %v1923 = vpop.f32.mrf.mxu0
      %v1924 = vadd.f32 0.0, %v1923
      %1925 = vmatmul.f32.gmra.mxu0 %v1851
      %v1926 = vpop.f32.mrf.mxu0
      %v1927 = vadd.f32 0.0, %v1926
      %1928 = vmatmul.f32.gmra.mxu0 %v1854
      %v1929 = vpop.f32.mrf.mxu0
      %v1930 = vadd.f32 0.0, %v1929
      %1931 = vmatmul.f32.gmra.mxu0 %v1857
      %v1932 = vpop.f32.mrf.mxu0
      %v1933 = vadd.f32 0.0, %v1932
      %1934 = vmatmul.f32.gmra.mxu0 %v1860
      %v1935 = vpop.f32.mrf.mxu0
      %v1936 = vadd.f32 0.0, %v1935
      %1937 = vmatmul.f32.gmra.mxu0 %v1863
      %v1938 = vpop.f32.mrf.mxu0
      %v1939 = vadd.f32 0.0, %v1938
      %1940 = vmatmul.f32.gmra.mxu0 %v1866
      %v1941 = vpop.f32.mrf.mxu0
      %v1942 = vadd.f32 0.0, %v1941
      %1943 = vdwg.mxu0
      %v1944 = vld [vmem:[%s760] sm:$0xff]
      %v1945 = vld [vmem:[%s760 + $0x8] sm:$0xff]
      %v1946 = vld [vmem:[%s760 + $0x10] sm:$0xff]
      %v1947 = vld [vmem:[%s760 + $0x18] sm:$0xff]
      %v1948 = vld [vmem:[%s760 + $0x20] sm:$0xff]
      %v1949 = vld [vmem:[%s760 + $0x28] sm:$0xff]
      %v1950 = vld [vmem:[%s760 + $0x30] sm:$0xff]
      %v1951 = vld [vmem:[%s760 + $0x38] sm:$0xff]
      %v1952 = vld [vmem:[%s760 + $0x40] sm:$0xff]
      %v1953 = vld [vmem:[%s760 + $0x48] sm:$0xff]
      %v1954 = vld [vmem:[%s760 + $0x50] sm:$0xff]
      %v1955 = vld [vmem:[%s760 + $0x58] sm:$0xff]
      %v1956 = vld [vmem:[%s760 + $0x60] sm:$0xff]
      %v1957 = vld [vmem:[%s760 + $0x68] sm:$0xff]
      %v1958 = vld [vmem:[%s760 + $0x70] sm:$0xff]
      %v1959 = vld [vmem:[%s760 + $0x78] sm:$0xff]
      %v1960 = vld [vmem:[%s760 + $0x80] sm:$0xff]
      %v1961 = vld [vmem:[%s760 + $0x88] sm:$0xff]
      %v1962 = vld [vmem:[%s760 + $0x90] sm:$0xff]
      %v1963 = vld [vmem:[%s760 + $0x98] sm:$0xff]
      %v1964 = vld [vmem:[%s760 + $0xa0] sm:$0xff]
      %v1965 = vld [vmem:[%s760 + $0xa8] sm:$0xff]
      %v1966 = vld [vmem:[%s760 + $0xb0] sm:$0xff]
      %v1967 = vld [vmem:[%s760 + $0xb8] sm:$0xff]
      %v1968 = vld [vmem:[%s760 + $0xc0] sm:$0xff]
      %s1969 = scalar_lea.vmem %s760, 200
      %v1970 = vld [vmem:[%s1969] sm:$0xff]
      %v1971 = vld [vmem:[%s1969 + $0x8] sm:$0xff]
      %v1972 = vld [vmem:[%s1969 + $0x10] sm:$0xff]
      %v1973 = vld [vmem:[%s1969 + $0x18] sm:$0xff]
      %v1974 = vld [vmem:[%s1969 + $0x20] sm:$0xff]
      %v1975 = vld [vmem:[%s1969 + $0x28] sm:$0xff]
      %v1976 = vld [vmem:[%s1969 + $0x30] sm:$0xff]
      %v1977 = vld [vmem:[%s1969 + $0x38] sm:$0xff]
      %v1978 = vld [vmem:[%s1969 + $0x40] sm:$0xff]
      %v1979 = vld [vmem:[%s1969 + $0x48] sm:$0xff]
      %v1980 = vld [vmem:[%s1969 + $0x50] sm:$0xff]
      %v1981 = vld [vmem:[%s1969 + $0x58] sm:$0xff]
      %v1982 = vld [vmem:[%s1969 + $0x60] sm:$0xff]
      %v1983 = vld [vmem:[%s1969 + $0x68] sm:$0xff]
      %v1984 = vld [vmem:[%s1969 + $0x70] sm:$0xff]
      %v1985 = vld [vmem:[%s1969 + $0x78] sm:$0xff]
      %v1986 = vld [vmem:[%s1969 + $0x80] sm:$0xff]
      %v1987 = vld [vmem:[%s1969 + $0x88] sm:$0xff]
      %v1988 = vld [vmem:[%s1969 + $0x90] sm:$0xff]
      %v1989 = vld [vmem:[%s1969 + $0x98] sm:$0xff]
      %v1990 = vld [vmem:[%s1969 + $0xa0] sm:$0xff]
      %v1991 = vld [vmem:[%s1969 + $0xa8] sm:$0xff]
      %v1992 = vld [vmem:[%s1969 + $0xb0] sm:$0xff]
      %v1993 = vld [vmem:[%s1969 + $0xb8] sm:$0xff]
      %v1994 = vld [vmem:[%s1969 + $0xc0] sm:$0xff]
      %vm1999 = vcmask 1045504
      %v2000 = vrot.slane %v1889, 2
      %v2001 = vrot.slane %v1892, 2
      %v2002 = vsel %vm1999, %v2000, %v2001
      %v2003 = vrot.slane %v1927, 2
      %v2004 = vrot.slane %v1930, 2
      %v2005 = vsel %vm1999, %v2003, %v2004
      %vm2008 = vcmask 588800
      %v2009 = vsel %vm2008, %v2005, 0
      %v2011 = vsel %vm2008, %v2004, 0
      %2013 = vmatpush.msra.mxu0 %v1985
      %2014 = vmatpush.msra.mxu0 %v1984
      %2015 = vmatpush.msra.mxu0 %v1983
      %2016 = vmatpush.msra.mxu0 %v1982
      %2017 = vmatpush.msra.mxu0 %v1981
      %2018 = vmatpush.msra.mxu0 %v1980
      %2019 = vmatpush.msra.mxu0 %v1979
      %2020 = vmatpush.msra.mxu0 %v1978
      %2021 = vmatpush.msra.mxu0 %v1977
      %2022 = vmatpush.msra.mxu0 %v1976
      %2023 = vmatpush.msra.mxu0 %v1975
      %2024 = vmatpush.msra.mxu0 %v1974
      %2025 = vmatpush.msra.mxu0 %v1973
      %2026 = vmatpush.msra.mxu0 %v1972
      %2027 = vmatpush.msra.mxu0 %v1971
      %2028 = vmatpush.msra.mxu0 %v1970
      %2029 = vmatmul.f32.gmra.mxu0 %v2002
      %v2030 = vpop.f32.mrf.mxu0
      %v2031 = vadd.f32 0.0, %v2030
      %2032 = vmatmul.f32.gmra.mxu0 %v2001
      %v2033 = vpop.f32.mrf.mxu0
      %v2034 = vadd.f32 0.0, %v2033
      %2035 = vdwg.mxu0
      %2036 = vmatpush.msra.mxu0 0.0
      %2037 = vmatpush.msra.mxu0 0.0
      %2038 = vmatpush.msra.mxu0 0.0
      %2039 = vmatpush.msra.mxu0 0.0
      %2040 = vmatpush.msra.mxu0 0.0
      %2041 = vmatpush.msra.mxu0 0.0
      %2042 = vmatpush.msra.mxu0 0.0
      %2043 = vmatpush.msra.mxu0 %v1994
      %2044 = vmatpush.msra.mxu0 %v1993
      %2045 = vmatpush.msra.mxu0 %v1992
      %2046 = vmatpush.msra.mxu0 %v1991
      %2047 = vmatpush.msra.mxu0 %v1990
      %2048 = vmatpush.msra.mxu0 %v1989
      %2049 = vmatpush.msra.mxu0 %v1988
      %2050 = vmatpush.msra.mxu0 %v1987
      %2051 = vmatpush.msra.mxu0 %v1986
      %2052 = vmatmul.f32.gmra.mxu0 %v2009
      %v2053 = vpop.f32.mrf.mxu0
      %v2054 = vadd.f32 %v2031, %v2053
      %2055 = vmatmul.f32.gmra.mxu0 %v2011
      %v2056 = vpop.f32.mrf.mxu0
      %v2057 = vadd.f32 %v2034, %v2056
      %2058 = vdwg.mxu0
      %v2060 = vsel %vm2008, %v1924, 0
      %v2062 = vsel %vm2008, %v1927, 0
      %2064 = vmatpush.msra.mxu0 %v1959
      %2065 = vmatpush.msra.mxu0 %v1958
      %2066 = vmatpush.msra.mxu0 %v1957
      %2067 = vmatpush.msra.mxu0 %v1956
      %2068 = vmatpush.msra.mxu0 %v1955
      %2069 = vmatpush.msra.mxu0 %v1954
      %2070 = vmatpush.msra.mxu0 %v1953
      %2071 = vmatpush.msra.mxu0 %v1952
      %2072 = vmatpush.msra.mxu0 %v1951
      %2073 = vmatpush.msra.mxu0 %v1950
      %2074 = vmatpush.msra.mxu0 %v1949
      %2075 = vmatpush.msra.mxu0 %v1948
      %2076 = vmatpush.msra.mxu0 %v1947
      %2077 = vmatpush.msra.mxu0 %v1946
      %2078 = vmatpush.msra.mxu0 %v1945
      %2079 = vmatpush.msra.mxu0 %v1944
      %2080 = vmatmul.f32.gmra.mxu0 %v1886
      %v2081 = vpop.f32.mrf.mxu0
      %v2082 = vadd.f32 %v2054, %v2081
      %2083 = vmatmul.f32.gmra.mxu0 %v1889
      %v2084 = vpop.f32.mrf.mxu0
      %v2085 = vadd.f32 %v2057, %v2084
      %2086 = vdwg.mxu0
      %2087 = vmatpush.msra.mxu0 0.0
      %2088 = vmatpush.msra.mxu0 0.0
      %2089 = vmatpush.msra.mxu0 0.0
      %2090 = vmatpush.msra.mxu0 0.0
      %2091 = vmatpush.msra.mxu0 0.0
      %2092 = vmatpush.msra.mxu0 0.0
      %2093 = vmatpush.msra.mxu0 0.0
      %2094 = vmatpush.msra.mxu0 %v1968
      %2095 = vmatpush.msra.mxu0 %v1967
      %2096 = vmatpush.msra.mxu0 %v1966
      %2097 = vmatpush.msra.mxu0 %v1965
      %2098 = vmatpush.msra.mxu0 %v1964
      %2099 = vmatpush.msra.mxu0 %v1963
      %2100 = vmatpush.msra.mxu0 %v1962
      %2101 = vmatpush.msra.mxu0 %v1961
      %2102 = vmatpush.msra.mxu0 %v1960
      %2103 = vmatmul.f32.gmra.mxu0 %v2060
      %v2104 = vpop.f32.mrf.mxu0
      %v2105 = vadd.f32 %v2082, %v2104
      %2106 = vmatmul.f32.gmra.mxu0 %v2062
      %v2107 = vpop.f32.mrf.mxu0
      %v2108 = vadd.f32 %v2085, %v2107
      %2109 = vdwg.mxu0
      %s2110 = scalar_lea.vmem %s760, 400
      %v2111 = vld [vmem:[%s2110] sm:$0xff]
      %v2112 = vld [vmem:[%s2110 + $0x8] sm:$0xff]
      %v2113 = vld [vmem:[%s2110 + $0x10] sm:$0xff]
      %v2114 = vld [vmem:[%s2110 + $0x18] sm:$0xff]
      %v2115 = vld [vmem:[%s2110 + $0x20] sm:$0xff]
      %v2116 = vld [vmem:[%s2110 + $0x28] sm:$0xff]
      %v2117 = vld [vmem:[%s2110 + $0x30] sm:$0xff]
      %v2118 = vld [vmem:[%s2110 + $0x38] sm:$0xff]
      %v2119 = vld [vmem:[%s2110 + $0x40] sm:$0xff]
      %v2120 = vld [vmem:[%s2110 + $0x48] sm:$0xff]
      %v2121 = vld [vmem:[%s2110 + $0x50] sm:$0xff]
      %v2122 = vld [vmem:[%s2110 + $0x58] sm:$0xff]
      %v2123 = vld [vmem:[%s2110 + $0x60] sm:$0xff]
      %v2124 = vld [vmem:[%s2110 + $0x68] sm:$0xff]
      %v2125 = vld [vmem:[%s2110 + $0x70] sm:$0xff]
      %v2126 = vld [vmem:[%s2110 + $0x78] sm:$0xff]
      %v2127 = vld [vmem:[%s2110 + $0x80] sm:$0xff]
      %v2128 = vld [vmem:[%s2110 + $0x88] sm:$0xff]
      %v2129 = vld [vmem:[%s2110 + $0x90] sm:$0xff]
      %v2130 = vld [vmem:[%s2110 + $0x98] sm:$0xff]
      %v2131 = vld [vmem:[%s2110 + $0xa0] sm:$0xff]
      %v2132 = vld [vmem:[%s2110 + $0xa8] sm:$0xff]
      %v2133 = vld [vmem:[%s2110 + $0xb0] sm:$0xff]
      %v2134 = vld [vmem:[%s2110 + $0xb8] sm:$0xff]
      %v2135 = vld [vmem:[%s2110 + $0xc0] sm:$0xff]
      %v2138 = vrot.slane %v1892, 4
      %v2139 = vrot.slane %v1895, 4
      %v2140 = vsel %vm1238, %v2138, %v2139
      %v2141 = vrot.slane %v1930, 4
      %v2142 = vrot.slane %v1933, 4
      %v2143 = vsel %vm1238, %v2141, %v2142
      %v2146 = vsel %vm2008, %v2143, 0
      %v2148 = vsel %vm2008, %v2142, 0
      %2150 = vmatpush.msra.mxu0 %v2126
      %2151 = vmatpush.msra.mxu0 %v2125
      %2152 = vmatpush.msra.mxu0 %v2124
      %2153 = vmatpush.msra.mxu0 %v2123
      %2154 = vmatpush.msra.mxu0 %v2122
      %2155 = vmatpush.msra.mxu0 %v2121
      %2156 = vmatpush.msra.mxu0 %v2120
      %2157 = vmatpush.msra.mxu0 %v2119
      %2158 = vmatpush.msra.mxu0 %v2118
      %2159 = vmatpush.msra.mxu0 %v2117
      %2160 = vmatpush.msra.mxu0 %v2116
      %2161 = vmatpush.msra.mxu0 %v2115
      %2162 = vmatpush.msra.mxu0 %v2114
      %2163 = vmatpush.msra.mxu0 %v2113
      %2164 = vmatpush.msra.mxu0 %v2112
      %2165 = vmatpush.msra.mxu0 %v2111
      %2166 = vmatmul.f32.gmra.mxu0 %v2140
      %v2167 = vpop.f32.mrf.mxu0
      %v2168 = vadd.f32 0.0, %v2167
      %2169 = vmatmul.f32.gmra.mxu0 %v2139
      %v2170 = vpop.f32.mrf.mxu0
      %v2171 = vadd.f32 0.0, %v2170
      %2172 = vdwg.mxu0
      %2173 = vmatpush.msra.mxu0 0.0
      %2174 = vmatpush.msra.mxu0 0.0
      %2175 = vmatpush.msra.mxu0 0.0
      %2176 = vmatpush.msra.mxu0 0.0
      %2177 = vmatpush.msra.mxu0 0.0
      %2178 = vmatpush.msra.mxu0 0.0
      %2179 = vmatpush.msra.mxu0 0.0
      %2180 = vmatpush.msra.mxu0 %v2135
      %2181 = vmatpush.msra.mxu0 %v2134
      %2182 = vmatpush.msra.mxu0 %v2133
      %2183 = vmatpush.msra.mxu0 %v2132
      %2184 = vmatpush.msra.mxu0 %v2131
      %2185 = vmatpush.msra.mxu0 %v2130
      %2186 = vmatpush.msra.mxu0 %v2129
      %2187 = vmatpush.msra.mxu0 %v2128
      %2188 = vmatpush.msra.mxu0 %v2127
      %2189 = vmatmul.f32.gmra.mxu0 %v2146
      %v2190 = vpop.f32.mrf.mxu0
      %v2191 = vadd.f32 %v2168, %v2190
      %2192 = vmatmul.f32.gmra.mxu0 %v2148
      %v2193 = vpop.f32.mrf.mxu0
      %v2194 = vadd.f32 %v2171, %v2193
      %2195 = vdwg.mxu0
      %v2196 = vadd.f32 %v2105, %v2191
      %v2197 = vadd.f32 %v2108, %v2194
      %s2198 = scalar_lea.vmem %s760, 600
      %v2199 = vld [vmem:[%s2198] sm:$0xff]
      %v2200 = vld [vmem:[%s2198 + $0x8] sm:$0xff]
      %v2201 = vld [vmem:[%s2198 + $0x10] sm:$0xff]
      %v2202 = vld [vmem:[%s2198 + $0x18] sm:$0xff]
      %v2203 = vld [vmem:[%s2198 + $0x20] sm:$0xff]
      %v2204 = vld [vmem:[%s2198 + $0x28] sm:$0xff]
      %v2205 = vld [vmem:[%s2198 + $0x30] sm:$0xff]
      %v2206 = vld [vmem:[%s2198 + $0x38] sm:$0xff]
      %v2207 = vld [vmem:[%s2198 + $0x40] sm:$0xff]
      %v2208 = vld [vmem:[%s2198 + $0x48] sm:$0xff]
      %v2209 = vld [vmem:[%s2198 + $0x50] sm:$0xff]
      %v2210 = vld [vmem:[%s2198 + $0x58] sm:$0xff]
      %v2211 = vld [vmem:[%s2198 + $0x60] sm:$0xff]
      %v2212 = vld [vmem:[%s2198 + $0x68] sm:$0xff]
      %v2213 = vld [vmem:[%s2198 + $0x70] sm:$0xff]
      %v2214 = vld [vmem:[%s2198 + $0x78] sm:$0xff]
      %v2215 = vld [vmem:[%s2198 + $0x80] sm:$0xff]
      %v2216 = vld [vmem:[%s2198 + $0x88] sm:$0xff]
      %v2217 = vld [vmem:[%s2198 + $0x90] sm:$0xff]
      %v2218 = vld [vmem:[%s2198 + $0x98] sm:$0xff]
      %v2219 = vld [vmem:[%s2198 + $0xa0] sm:$0xff]
      %v2220 = vld [vmem:[%s2198 + $0xa8] sm:$0xff]
      %v2221 = vld [vmem:[%s2198 + $0xb0] sm:$0xff]
      %v2222 = vld [vmem:[%s2198 + $0xb8] sm:$0xff]
      %v2223 = vld [vmem:[%s2198 + $0xc0] sm:$0xff]
      %v2226 = vrot.slane %v1895, 6
      %v2227 = vrot.slane %v1898, 6
      %v2228 = vsel %vm1266, %v2226, %v2227
      %v2229 = vrot.slane %v1933, 6
      %v2230 = vrot.slane %v1936, 6
      %v2231 = vsel %vm1266, %v2229, %v2230
      %v2234 = vsel %vm2008, %v2231, 0
      %v2236 = vsel %vm2008, %v2230, 0
      %2238 = vmatpush.msra.mxu0 %v2214
      %2239 = vmatpush.msra.mxu0 %v2213
      %2240 = vmatpush.msra.mxu0 %v2212
      %2241 = vmatpush.msra.mxu0 %v2211
      %2242 = vmatpush.msra.mxu0 %v2210
      %2243 = vmatpush.msra.mxu0 %v2209
      %2244 = vmatpush.msra.mxu0 %v2208
      %2245 = vmatpush.msra.mxu0 %v2207
      %2246 = vmatpush.msra.mxu0 %v2206
      %2247 = vmatpush.msra.mxu0 %v2205
      %2248 = vmatpush.msra.mxu0 %v2204
      %2249 = vmatpush.msra.mxu0 %v2203
      %2250 = vmatpush.msra.mxu0 %v2202
      %2251 = vmatpush.msra.mxu0 %v2201
      %2252 = vmatpush.msra.mxu0 %v2200
      %2253 = vmatpush.msra.mxu0 %v2199
      %2254 = vmatmul.f32.gmra.mxu0 %v2228
      %v2255 = vpop.f32.mrf.mxu0
      %v2256 = vadd.f32 0.0, %v2255
      %2257 = vmatmul.f32.gmra.mxu0 %v2227
      %v2258 = vpop.f32.mrf.mxu0
      %v2259 = vadd.f32 0.0, %v2258
      %2260 = vdwg.mxu0
      %2261 = vmatpush.msra.mxu0 0.0
      %2262 = vmatpush.msra.mxu0 0.0
      %2263 = vmatpush.msra.mxu0 0.0
      %2264 = vmatpush.msra.mxu0 0.0
      %2265 = vmatpush.msra.mxu0 0.0
      %2266 = vmatpush.msra.mxu0 0.0
      %2267 = vmatpush.msra.mxu0 0.0
      %2268 = vmatpush.msra.mxu0 %v2223
      %2269 = vmatpush.msra.mxu0 %v2222
      %2270 = vmatpush.msra.mxu0 %v2221
      %2271 = vmatpush.msra.mxu0 %v2220
      %2272 = vmatpush.msra.mxu0 %v2219
      %2273 = vmatpush.msra.mxu0 %v2218
      %2274 = vmatpush.msra.mxu0 %v2217
      %2275 = vmatpush.msra.mxu0 %v2216
      %2276 = vmatpush.msra.mxu0 %v2215
      %2277 = vmatmul.f32.gmra.mxu0 %v2234
      %v2278 = vpop.f32.mrf.mxu0
      %v2279 = vadd.f32 %v2256, %v2278
      %2280 = vmatmul.f32.gmra.mxu0 %v2236
      %v2281 = vpop.f32.mrf.mxu0
      %v2282 = vadd.f32 %v2259, %v2281
      %2283 = vdwg.mxu0
      %v2284 = vadd.f32 %v2196, %v2279
      %v2285 = vadd.f32 %v2197, %v2282
      %s2286 = scalar_lea.vmem %s760, 800
      %v2287 = vld [vmem:[%s2286] sm:$0xff]
      %v2288 = vld [vmem:[%s2286 + $0x8] sm:$0xff]
      %v2289 = vld [vmem:[%s2286 + $0x10] sm:$0xff]
      %v2290 = vld [vmem:[%s2286 + $0x18] sm:$0xff]
      %v2291 = vld [vmem:[%s2286 + $0x20] sm:$0xff]
      %v2292 = vld [vmem:[%s2286 + $0x28] sm:$0xff]
      %v2293 = vld [vmem:[%s2286 + $0x30] sm:$0xff]
      %v2294 = vld [vmem:[%s2286 + $0x38] sm:$0xff]
      %v2295 = vld [vmem:[%s2286 + $0x40] sm:$0xff]
      %v2296 = vld [vmem:[%s2286 + $0x48] sm:$0xff]
      %v2297 = vld [vmem:[%s2286 + $0x50] sm:$0xff]
      %v2298 = vld [vmem:[%s2286 + $0x58] sm:$0xff]
      %v2299 = vld [vmem:[%s2286 + $0x60] sm:$0xff]
      %v2300 = vld [vmem:[%s2286 + $0x68] sm:$0xff]
      %v2301 = vld [vmem:[%s2286 + $0x70] sm:$0xff]
      %v2302 = vld [vmem:[%s2286 + $0x78] sm:$0xff]
      %v2303 = vld [vmem:[%s2286 + $0x80] sm:$0xff]
      %v2304 = vld [vmem:[%s2286 + $0x88] sm:$0xff]
      %v2305 = vld [vmem:[%s2286 + $0x90] sm:$0xff]
      %v2306 = vld [vmem:[%s2286 + $0x98] sm:$0xff]
      %v2307 = vld [vmem:[%s2286 + $0xa0] sm:$0xff]
      %v2308 = vld [vmem:[%s2286 + $0xa8] sm:$0xff]
      %v2309 = vld [vmem:[%s2286 + $0xb0] sm:$0xff]
      %v2310 = vld [vmem:[%s2286 + $0xb8] sm:$0xff]
      %v2311 = vld [vmem:[%s2286 + $0xc0] sm:$0xff]
      %v2313 = vsel %vm2008, %v1939, 0
      %v2316 = vsel %vm2008, %v1942, 0
      %2318 = vmatpush.msra.mxu0 %v2302
      %2319 = vmatpush.msra.mxu0 %v2301
      %2320 = vmatpush.msra.mxu0 %v2300
      %2321 = vmatpush.msra.mxu0 %v2299
      %2322 = vmatpush.msra.mxu0 %v2298
      %2323 = vmatpush.msra.mxu0 %v2297
      %2324 = vmatpush.msra.mxu0 %v2296
      %2325 = vmatpush.msra.mxu0 %v2295
      %2326 = vmatpush.msra.mxu0 %v2294
      %2327 = vmatpush.msra.mxu0 %v2293
      %2328 = vmatpush.msra.mxu0 %v2292
      %2329 = vmatpush.msra.mxu0 %v2291
      %2330 = vmatpush.msra.mxu0 %v2290
      %2331 = vmatpush.msra.mxu0 %v2289
      %2332 = vmatpush.msra.mxu0 %v2288
      %2333 = vmatpush.msra.mxu0 %v2287
      %2334 = vmatmul.f32.gmra.mxu0 %v1901
      %v2335 = vpop.f32.mrf.mxu0
      %v2336 = vadd.f32 0.0, %v2335
      %2337 = vmatmul.f32.gmra.mxu0 %v1904
      %v2338 = vpop.f32.mrf.mxu0
      %v2339 = vadd.f32 0.0, %v2338
      %2340 = vdwg.mxu0
      %2341 = vmatpush.msra.mxu0 0.0
      %2342 = vmatpush.msra.mxu0 0.0
      %2343 = vmatpush.msra.mxu0 0.0
      %2344 = vmatpush.msra.mxu0 0.0
      %2345 = vmatpush.msra.mxu0 0.0
      %2346 = vmatpush.msra.mxu0 0.0
      %2347 = vmatpush.msra.mxu0 0.0
      %2348 = vmatpush.msra.mxu0 %v2311
      %2349 = vmatpush.msra.mxu0 %v2310
      %2350 = vmatpush.msra.mxu0 %v2309
      %2351 = vmatpush.msra.mxu0 %v2308
      %2352 = vmatpush.msra.mxu0 %v2307
      %2353 = vmatpush.msra.mxu0 %v2306
      %2354 = vmatpush.msra.mxu0 %v2305
      %2355 = vmatpush.msra.mxu0 %v2304
      %2356 = vmatpush.msra.mxu0 %v2303
      %2357 = vmatmul.f32.gmra.mxu0 %v2313
      %v2358 = vpop.f32.mrf.mxu0
      %v2359 = vadd.f32 %v2336, %v2358
      %2360 = vmatmul.f32.gmra.mxu0 %v2316
      %v2361 = vpop.f32.mrf.mxu0
      %v2362 = vadd.f32 %v2339, %v2361
      %2363 = vdwg.mxu0
      %v2364 = vadd.f32 %v2284, %v2359
      %v2365 = vadd.f32 %v2285, %v2362
      %v2366 = vld [vmem:[%s771] sm:$0x1]
      %v2368 = vperm.slane %v2366, 0
      %v2370 = vadd.f32 %v2364, %v2368
      %v2371 = vadd.f32 %v2365, %v2368
      %v2372 = vmax.f32 %v2370, 0.0
      %v2373 = vmax.f32 %v2371, 0.0
      %v2374 = vld [vmem:[%s3] sm:$0xff]
      %v2375 = vld [vmem:[%s3 + $0x8] sm:$0xf]
      %vm2376 = vcmask 80896
      %v2378 = vsel %vm2376, %v2374, 0
      %v2381 = vsel %vm2376, %v2375, 0
      %v2384 = vsel %vm1266, %v2373, 0
      %2386 = vmatpush.msra.mxu0 0.0
      %2387 = vmatpush.msra.mxu0 0.0
      %2388 = vmatpush.msra.mxu0 0.0
      %2389 = vmatpush.msra.mxu0 0.0
      %2390 = vmatpush.msra.mxu0 0.0
      %2391 = vmatpush.msra.mxu0 0.0
      %2392 = vmatpush.msra.mxu0 0.0
      %2393 = vmatpush.msra.mxu0 0.0
      %2394 = vmatpush.msra.mxu0 0.0
      %2395 = vmatpush.msra.mxu0 0.0
      %2396 = vmatpush.msra.mxu0 0.0
      %2397 = vmatpush.msra.mxu0 0.0
      %2398 = vmatpush.msra.mxu0 0.0
      %2399 = vmatpush.msra.mxu0 0.0
      %2400 = vmatpush.msra.mxu0 %v2384
      %2401 = vmatpush.msra.mxu0 %v2372
      %2402 = vmatmul.f32.gmra.mxu0 %v2378
      %v2403 = vpop.f32.mrf.mxu0
      %v2404 = vadd.f32 0.0, %v2403
      %2405 = vmatmul.f32.gmra.mxu0 %v2381
      %v2406 = vpop.f32.mrf.mxu0
      %v2407 = vadd.f32 0.0, %v2406
      %2408 = vdwg.mxu0
      %v2409 = vld [vmem:[%s6] sm:$0xff]
      %v2410 = vld [vmem:[%s6 + $0x8] sm:$0xff]
      %v2411 = vld [vmem:[%s6 + $0x10] sm:$0xff]
      %v2412 = vld [vmem:[%s6 + $0x18] sm:$0xff]
      %v2413 = vld [vmem:[%s6 + $0x20] sm:$0xff]
      %v2414 = vld [vmem:[%s6 + $0x28] sm:$0xff]
      %v2415 = vld [vmem:[%s6 + $0x30] sm:$0xff]
      %v2416 = vld [vmem:[%s6 + $0x38] sm:$0xff]
      %v2417 = vld [vmem:[%s6 + $0x40] sm:$0xff]
      %v2418 = vld [vmem:[%s6 + $0x48] sm:$0xff]
      %vm2419 = vcmask 654336
      %v2421 = vsel %vm2419, %v2404, 0
      %v2424 = vsel %vm2419, %v2407, 0
      %2426 = vmatpush.msra.mxu0 0.0
      %2427 = vmatpush.msra.mxu0 0.0
      %2428 = vmatpush.msra.mxu0 0.0
      %2429 = vmatpush.msra.mxu0 0.0
      %2430 = vmatpush.msra.mxu0 0.0
      %2431 = vmatpush.msra.mxu0 0.0
      %2432 = vmatpush.msra.mxu0 %v2418
      %2433 = vmatpush.msra.mxu0 %v2417
      %2434 = vmatpush.msra.mxu0 %v2416
      %2435 = vmatpush.msra.mxu0 %v2415
      %2436 = vmatpush.msra.mxu0 %v2414
      %2437 = vmatpush.msra.mxu0 %v2413
      %2438 = vmatpush.msra.mxu0 %v2412
      %2439 = vmatpush.msra.mxu0 %v2411
      %2440 = vmatpush.msra.mxu0 %v2410
      %2441 = vmatpush.msra.mxu0 %v2409
      %2442 = vmatmul.f32.gmra.mxu0 %v2421
      %v2443 = vpop.f32.mrf.mxu0
      %v2444 = vadd.f32 0.0, %v2443
      %2445 = vmatmul.f32.gmra.mxu0 %v2424
      %v2446 = vpop.f32.mrf.mxu0
      %v2447 = vadd.f32 0.0, %v2446
      %2448 = vdwg.mxu0
      %v2449 = vld [vmem:[%s765] sm:$0xff]
      %v2450 = vld [vmem:[%s765 + $0x8] sm:$0xff]
      %v2451 = vld [vmem:[%s765 + $0x10] sm:$0xff]
      %v2452 = vld [vmem:[%s765 + $0x18] sm:$0xff]
      %v2453 = vld [vmem:[%s765 + $0x20] sm:$0xff]
      %v2454 = vld [vmem:[%s765 + $0x28] sm:$0xff]
      %v2455 = vld [vmem:[%s765 + $0x30] sm:$0xff]
      %v2456 = vld [vmem:[%s765 + $0x38] sm:$0xff]
      %v2457 = vld [vmem:[%s765 + $0x40] sm:$0xff]
      %v2458 = vld [vmem:[%s765 + $0x48] sm:$0xff]
      %v2459 = vld [vmem:[%s765 + $0x50] sm:$0xff]
      %v2460 = vld [vmem:[%s765 + $0x58] sm:$0xff]
      %s2461 = scalar_lea.vmem %s765, 96
      %v2462 = vld [vmem:[%s2461] sm:$0xff]
      %v2463 = vld [vmem:[%s2461 + $0x8] sm:$0xff]
      %v2464 = vld [vmem:[%s2461 + $0x10] sm:$0xff]
      %v2465 = vld [vmem:[%s2461 + $0x18] sm:$0xff]
      %v2466 = vld [vmem:[%s2461 + $0x20] sm:$0xff]
      %v2467 = vld [vmem:[%s2461 + $0x28] sm:$0xff]
      %v2468 = vld [vmem:[%s2461 + $0x30] sm:$0xff]
      %v2469 = vld [vmem:[%s2461 + $0x38] sm:$0xff]
      %v2470 = vld [vmem:[%s2461 + $0x40] sm:$0xff]
      %v2471 = vld [vmem:[%s2461 + $0x48] sm:$0xff]
      %v2472 = vld [vmem:[%s2461 + $0x50] sm:$0xff]
      %v2473 = vld [vmem:[%s2461 + $0x58] sm:$0xff]
      %v2475 = vrot.slane %v2444, 4
      %v2476 = vsel %vm978, %v2475, 0
      %2478 = vmatpush.msra.mxu0 0.0
      %2479 = vmatpush.msra.mxu0 0.0
      %2480 = vmatpush.msra.mxu0 0.0
      %2481 = vmatpush.msra.mxu0 0.0
      %2482 = vmatpush.msra.mxu0 %v2473
      %2483 = vmatpush.msra.mxu0 %v2472
      %2484 = vmatpush.msra.mxu0 %v2471
      %2485 = vmatpush.msra.mxu0 %v2470
      %2486 = vmatpush.msra.mxu0 %v2469
      %2487 = vmatpush.msra.mxu0 %v2468
      %2488 = vmatpush.msra.mxu0 %v2467
      %2489 = vmatpush.msra.mxu0 %v2466
      %2490 = vmatpush.msra.mxu0 %v2465
      %2491 = vmatpush.msra.mxu0 %v2464
      %2492 = vmatpush.msra.mxu0 %v2463
      %2493 = vmatpush.msra.mxu0 %v2462
      %2494 = vmatmul.f32.gmra.mxu0 %v2476
      %v2495 = vpop.f32.mrf.mxu0
      %v2496 = vadd.f32 0.0, %v2495
      %2497 = vdwg.mxu0
      %v2498 = vsel %vm978, %v2444, 0
      %2500 = vmatpush.msra.mxu0 0.0
      %2501 = vmatpush.msra.mxu0 0.0
      %2502 = vmatpush.msra.mxu0 0.0
      %2503 = vmatpush.msra.mxu0 0.0
      %2504 = vmatpush.msra.mxu0 %v2460
      %2505 = vmatpush.msra.mxu0 %v2459
      %2506 = vmatpush.msra.mxu0 %v2458
      %2507 = vmatpush.msra.mxu0 %v2457
      %2508 = vmatpush.msra.mxu0 %v2456
      %2509 = vmatpush.msra.mxu0 %v2455
      %2510 = vmatpush.msra.mxu0 %v2454
      %2511 = vmatpush.msra.mxu0 %v2453
      %2512 = vmatpush.msra.mxu0 %v2452
      %2513 = vmatpush.msra.mxu0 %v2451
      %2514 = vmatpush.msra.mxu0 %v2450
      %2515 = vmatpush.msra.mxu0 %v2449
      %2516 = vmatmul.f32.gmra.mxu0 %v2498
      %v2517 = vpop.f32.mrf.mxu0
      %v2518 = vadd.f32 %v2496, %v2517
      %2519 = vdwg.mxu0
      %s2520 = scalar_lea.vmem %s765, 192
      %v2521 = vld [vmem:[%s2520] sm:$0xff]
      %v2522 = vld [vmem:[%s2520 + $0x8] sm:$0xff]
      %v2523 = vld [vmem:[%s2520 + $0x10] sm:$0xff]
      %v2524 = vld [vmem:[%s2520 + $0x18] sm:$0xff]
      %v2525 = vld [vmem:[%s2520 + $0x20] sm:$0xff]
      %v2526 = vld [vmem:[%s2520 + $0x28] sm:$0xff]
      %v2527 = vld [vmem:[%s2520 + $0x30] sm:$0xff]
      %v2528 = vld [vmem:[%s2520 + $0x38] sm:$0xff]
      %v2529 = vld [vmem:[%s2520 + $0x40] sm:$0xff]
      %v2530 = vld [vmem:[%s2520 + $0x48] sm:$0xff]
      %v2531 = vld [vmem:[%s2520 + $0x50] sm:$0xff]
      %v2532 = vld [vmem:[%s2520 + $0x58] sm:$0xff]
      %v2534 = vsel %vm978, %v2447, 0
      %2536 = vmatpush.msra.mxu0 0.0
      %2537 = vmatpush.msra.mxu0 0.0
      %2538 = vmatpush.msra.mxu0 0.0
      %2539 = vmatpush.msra.mxu0 0.0
      %2540 = vmatpush.msra.mxu0 %v2532
      %2541 = vmatpush.msra.mxu0 %v2531
      %2542 = vmatpush.msra.mxu0 %v2530
      %2543 = vmatpush.msra.mxu0 %v2529
      %2544 = vmatpush.msra.mxu0 %v2528
      %2545 = vmatpush.msra.mxu0 %v2527
      %2546 = vmatpush.msra.mxu0 %v2526
      %2547 = vmatpush.msra.mxu0 %v2525
      %2548 = vmatpush.msra.mxu0 %v2524
      %2549 = vmatpush.msra.mxu0 %v2523
      %2550 = vmatpush.msra.mxu0 %v2522
      %2551 = vmatpush.msra.mxu0 %v2521
      %2552 = vmatmul.f32.gmra.mxu0 %v2534
      %v2553 = vpop.f32.mrf.mxu0
      %v2554 = vadd.f32 0.0, %v2553
      %2555 = vdwg.mxu0
      %v2556 = vadd.f32 %v2518, %v2554
      %v2557 = vld [vmem:[%s774] sm:$0x1]
      %v2559 = vperm.slane %v2557, 0
      %v2561 = vadd.f32 %v2556, %v2559
      %v2562 = vmax.f32 %v2561, 0.0
      %v2563 = vld [vmem:[%s779] sm:$0xff]
      %v2564 = vld [vmem:[%s779 + $0x8] sm:$0xff]
      %v2565 = vld [vmem:[%s779 + $0x10] sm:$0xff]
      %v2566 = vld [vmem:[%s779 + $0x18] sm:$0xff]
      %v2567 = vld [vmem:[%s779 + $0x20] sm:$0xff]
      %v2568 = vld [vmem:[%s779 + $0x28] sm:$0xff]
      %v2569 = vld [vmem:[%s779 + $0x30] sm:$0xff]
      %v2570 = vld [vmem:[%s779 + $0x38] sm:$0xff]
      %s2571 = scalar_lea.vmem %s779, 64
      %v2572 = vld [vmem:[%s2571] sm:$0xff]
      %v2573 = vld [vmem:[%s2571 + $0x8] sm:$0xff]
      %v2574 = vld [vmem:[%s2571 + $0x10] sm:$0xff]
      %v2575 = vld [vmem:[%s2571 + $0x18] sm:$0xff]
      %v2576 = vld [vmem:[%s2571 + $0x20] sm:$0xff]
      %v2577 = vld [vmem:[%s2571 + $0x28] sm:$0xff]
      %v2578 = vld [vmem:[%s2571 + $0x30] sm:$0xff]
      %v2579 = vld [vmem:[%s2571 + $0x38] sm:$0xff]
      %v2581 = vrot.slane %v2562, 2
      %v2582 = vsel %vm828, %v2581, 0
      %2584 = vmatpush.msra.mxu0 0.0
      %2585 = vmatpush.msra.mxu0 0.0
      %2586 = vmatpush.msra.mxu0 0.0
      %2587 = vmatpush.msra.mxu0 0.0
      %2588 = vmatpush.msra.mxu0 0.0
      %2589 = vmatpush.msra.mxu0 0.0
      %2590 = vmatpush.msra.mxu0 0.0
      %2591 = vmatpush.msra.mxu0 0.0
      %2592 = vmatpush.msra.mxu0 %v2579
      %2593 = vmatpush.msra.mxu0 %v2578
      %2594 = vmatpush.msra.mxu0 %v2577
      %2595 = vmatpush.msra.mxu0 %v2576
      %2596 = vmatpush.msra.mxu0 %v2575
      %2597 = vmatpush.msra.mxu0 %v2574
      %2598 = vmatpush.msra.mxu0 %v2573
      %2599 = vmatpush.msra.mxu0 %v2572
      %2600 = vmatmul.f32.gmra.mxu0 %v2582
      %v2601 = vpop.f32.mrf.mxu0
      %v2602 = vadd.f32 0.0, %v2601
      %2603 = vdwg.mxu0
      %v2604 = vsel %vm828, %v2562, 0
      %2606 = vmatpush.msra.mxu0 0.0
      %2607 = vmatpush.msra.mxu0 0.0
      %2608 = vmatpush.msra.mxu0 0.0
      %2609 = vmatpush.msra.mxu0 0.0
      %2610 = vmatpush.msra.mxu0 0.0
      %2611 = vmatpush.msra.mxu0 0.0
      %2612 = vmatpush.msra.mxu0 0.0
      %2613 = vmatpush.msra.mxu0 0.0
      %2614 = vmatpush.msra.mxu0 %v2570
      %2615 = vmatpush.msra.mxu0 %v2569
      %2616 = vmatpush.msra.mxu0 %v2568
      %2617 = vmatpush.msra.mxu0 %v2567
      %2618 = vmatpush.msra.mxu0 %v2566
      %2619 = vmatpush.msra.mxu0 %v2565
      %2620 = vmatpush.msra.mxu0 %v2564
      %2621 = vmatpush.msra.mxu0 %v2563
      %2622 = vmatmul.f32.gmra.mxu0 %v2604
      %v2623 = vpop.f32.mrf.mxu0
      %v2624 = vadd.f32 %v2602, %v2623
      %2625 = vdwg.mxu0
      %v2626 = vld [vmem:[%s782] sm:$0x1]
      %v2628 = vperm.slane %v2626, 0
      %v2630 = vadd.f32 %v2624, %v2628
      %v2631 = vmax.f32 %v2630, 0.0
      %v2632 = vld [vmem:[%s787] sm:$0xff]
      %v2633 = vld [vmem:[%s787 + $0x8] sm:$0xff]
      %v2634 = vld [vmem:[%s790] sm:$0x1]
      %v2636 = vperm.slane %v2634, 0
      %vm2638 = vcmask 130048
      %v2640 = vsel %vm2638, %v2631, 0
      %2642 = vmatpush.msra.mxu0 0.0
      %2643 = vmatpush.msra.mxu0 0.0
      %2644 = vmatpush.msra.mxu0 0.0
      %2645 = vmatpush.msra.mxu0 0.0
      %2646 = vmatpush.msra.mxu0 0.0
      %2647 = vmatpush.msra.mxu0 0.0
      %2648 = vmatpush.msra.mxu0 0.0
      %2649 = vmatpush.msra.mxu0 0.0
      %2650 = vmatpush.msra.mxu0 0.0
      %2651 = vmatpush.msra.mxu0 0.0
      %2652 = vmatpush.msra.mxu0 0.0
      %2653 = vmatpush.msra.mxu0 0.0
      %2654 = vmatpush.msra.mxu0 0.0
      %2655 = vmatpush.msra.mxu0 0.0
      %2656 = vmatpush.msra.mxu0 %v2633
      %2657 = vmatpush.msra.mxu0 %v2632
      %2658 = vmatmul.f32.gmra.mxu0 %v2640
      %v2659 = vpop.f32.mrf.mxu0
      %v2660 = vadd.f32 %v2636, %v2659
      %2661 = vdwg.mxu0
      %v2662 = vmax.f32 %v2660, 0.0
      %v2663 = vld [vmem:[%s794] sm:$0xff]
      %v2664 = vld [vmem:[%s797] sm:$0x1]
      %v2666 = vperm.slane %v2664, 0
      %vm2668 = vcmask 64512
      %v2670 = vsel %vm2668, %v2662, 0
      %2672 = vmatpush.msra.mxu0 0.0
      %2673 = vmatpush.msra.mxu0 0.0
      %2674 = vmatpush.msra.mxu0 0.0
      %2675 = vmatpush.msra.mxu0 0.0
      %2676 = vmatpush.msra.mxu0 0.0
      %2677 = vmatpush.msra.mxu0 0.0
      %2678 = vmatpush.msra.mxu0 0.0
      %2679 = vmatpush.msra.mxu0 0.0
      %2680 = vmatpush.msra.mxu0 0.0
      %2681 = vmatpush.msra.mxu0 0.0
      %2682 = vmatpush.msra.mxu0 0.0
      %2683 = vmatpush.msra.mxu0 0.0
      %2684 = vmatpush.msra.mxu0 0.0
      %2685 = vmatpush.msra.mxu0 0.0
      %2686 = vmatpush.msra.mxu0 0.0
      %2687 = vmatpush.msra.mxu0 %v2663
      %2688 = vmatmul.f32.gmra.mxu0 %v2670
      %v2689 = vpop.f32.mrf.mxu0
      %v2690 = vadd.f32 %v2666, %v2689
      %2691 = vdwg.mxu0
      %vm2692 = vcmask 41984
      %2693 = vst.msk [vmem:[%s801] sm:$0x3] %vm2692, %v2690
      %p2694 = scmp.lt.s32.totalorder %s30, 1
      %s2695 = scalar_select %p2694, %s30, 1
      %s2696 = smul.addr %s2695, 2
      %s2697 = scalar_lea.vmem %s19, %s2696
      // Predicated region
      $region97: #{_lambda_.2} parent=95 // pred_check
        %p2698 = pneg %p512
      $region98: #{_lambda_.2} parent=95 // pred_check_branch
        %2700 = sbr.rel (%p2698) target = $region100
      $region99: #{_lambda_.2} parent=95 // pred_region
        _
      $region100: #{_lambda_.2} parent=95 // pred_fallthru
        _
    $region96: #{_lambda_.2} parent=5 // pred_fallthru
      _
    %p2701 = scmp.le.s32.totalorder 2, %s25
    // Predicated region
    $region101: #{_lambda_.2} parent=5 // pred_check
      %p2702 = pneg %p2701
    $region102: #{_lambda_.2} parent=5 // pred_check_branch
      %2704 = sbr.rel (%p2702) target = $region104
    $region103: #{_lambda_.2} parent=5 // pred_region
      %s2705 = ssub.s32 %s25, 2
      // Predicated region
      $region105: #{_lambda_.2} parent=103 // pred_check
        %p2706 = pneg %p518
      $region106: #{_lambda_.2} parent=103 // pred_check_branch
        %2708 = sbr.rel (%p2706) target = $region108
      $region107: #{_lambda_.2} parent=103 // pred_region
        %p2709 = scmp.lt.s32.totalorder %s31, 1
        %s2710 = scalar_select %p2709, %s31, 1
        %s2711 = smul.addr %s2710, 2
        %s2712 = scalar_lea.vmem %s19, %s2711
      $region108: #{_lambda_.2} parent=103 // pred_fallthru
        _
    $region104: #{_lambda_.2} parent=5 // pred_fallthru
      _
  $region6: #{_lambda_.2} parent=0 // loop_footer
    %s29 = sadd.s32 1, %s25
  $region7: #{_lambda_.2} parent=0 // loop_footer_branch
    %24 = sbr.rel target = $region3
  $region8: #{_lambda_.2} parent=0 // loop_exit
    _

</llo_original>
